<compile_context>
chip_gen: v6e
topology: v6e:2x2x1
jax: 0.10.0
libtpu: 0.0.40
codegen_flags: <defaults>
</compile_context>

<pallas_src>
import functools
import numpy as np
import jax
import jax.numpy as jnp
from jax.experimental import pallas as pl
from jax.experimental.pallas import tpu as pltpu


# -----------------------------------------------------------------------------
# helpers
# -----------------------------------------------------------------------------

def _default_vmem_limit():
    """Per-generation scoped VMEM limit (~3/4 of physical, clamped)."""
    try:
        cap = int(pltpu.get_tpu_info().vmem_capacity_bytes)
        lim = cap * 3 // 4
    except Exception:
        lim = 48 * 1024 * 1024           # safe on v5e/v6e (128 MiB) and v7x (64 MiB)
    return max(32 * 1024 * 1024, min(lim, 96 * 1024 * 1024))


_VMEM_LIMIT = _default_vmem_limit()


def _cparams(*semantics):
    return pltpu.CompilerParams(dimension_semantics=tuple(semantics),
                                vmem_limit_bytes=_VMEM_LIMIT)


def _row_block(m, max_bm=512):
    """Largest row tile <= max_bm that divides m with >=2 blocks (multiple of 8)."""
    for bm in (512, 256, 128, 64, 32, 16, 8):
        if bm <= max_bm and bm < m and m % bm == 0:
            return bm
    return m


def _col_block(n):
    """Vocab/N tile: prefer multiples of 256 (v6e/v7x MXU is 256-wide)."""
    for bn in (2048, 1024, 512, 256):
        if bn <= n and n % bn == 0:
            return bn
    return n


# -----------------------------------------------------------------------------
# Pallas kernels
# -----------------------------------------------------------------------------

def _qkv_self_kernel(x_ref, w_ref, b_ref, q_ref, k_ref, v_ref, *, scale, D):
    """Fused Q|K|V projection (single [D,3D] weight); q pre-scaled by 1/sqrt(Dh)."""
    x = x_ref[...].astype(jnp.bfloat16)
    y = jnp.dot(x, w_ref[...], preferred_element_type=jnp.float32) + b_ref[...]
    q_ref[...] = (y[:, :D] * scale).astype(q_ref.dtype)
    k_ref[...] = y[:, D:2 * D].astype(k_ref.dtype)
    v_ref[...] = y[:, 2 * D:].astype(v_ref.dtype)


def _q_proj_kernel(x_ref, w_ref, b_ref, o_ref, *, scale):
    x = x_ref[...].astype(jnp.bfloat16)
    y = (jnp.dot(x, w_ref[...], preferred_element_type=jnp.float32) + b_ref[...]) * scale
    o_ref[...] = y.astype(o_ref.dtype)


def _kv_proj_kernel(x_ref, w_ref, b_ref, k_ref, v_ref, *, D):
    """K|V projection with a concatenated [D,2D] weight, split into two outputs."""
    x = x_ref[...].astype(jnp.bfloat16)
    y = jnp.dot(x, w_ref[...], preferred_element_type=jnp.float32) + b_ref[...]
    k_ref[...] = y[:, :D].astype(k_ref.dtype)
    v_ref[...] = y[:, D:].astype(v_ref.dtype)


def _attn_kernel(q_ref, k_ref, v_ref, m_ref, ctx_ref, attn_ref):
    """One (head, q-tile) block: scores, masked softmax, context."""
    q = q_ref[0]                        # [tq, Dh] bf16 (already 1/sqrt(Dh)-scaled)
    k = k_ref[0]                        # [Lk, Dh] bf16
    s = jax.lax.dot_general(q, k, (((1,), (1,)), ((), ())),
                            preferred_element_type=jnp.float32)   # [tq, Lk]
    s = jnp.where(m_ref[0] != 0, jnp.float32(-1e30), s)  # finite fill: no NaN rows
    mx = jnp.max(s, axis=-1, keepdims=True)
    e = jnp.exp(s - mx)
    p = e * pl.reciprocal(jnp.sum(e, axis=-1, keepdims=True), approx=True)
    attn_ref[0] = p
    ctx = jnp.dot(p.astype(jnp.bfloat16), v_ref[0],
                  preferred_element_type=jnp.float32)
    ctx_ref[0] = ctx.astype(ctx_ref.dtype)


def _proj_ln_kernel(ctx_ref, res_ref, wo_ref, bo_ref, g_ref, b_ref, o_ref, *, eps):
    """Output projection + residual add + LayerNorm (fused).  ctx is bf16."""
    y = jnp.dot(ctx_ref[...], wo_ref[...], preferred_element_type=jnp.float32)
    y = y + bo_ref[...] + res_ref[...]
    mu = jnp.mean(y, axis=-1, keepdims=True)
    var = jnp.mean(jnp.square(y - mu), axis=-1, keepdims=True)
    o_ref[...] = (y - mu) * jax.lax.rsqrt(var + eps) * g_ref[...] + b_ref[...]


def _ffn_ln_kernel(x_ref, w1_ref, b1_ref, w2_ref, b2_ref, g_ref, b_ref, o_ref, *, eps):
    """Position-wise FFN (conv1d k=1 == matmul) + residual + LayerNorm (fused)."""
    x = x_ref[...]
    h = jnp.dot(x.astype(jnp.bfloat16), w1_ref[...],
                preferred_element_type=jnp.float32) + b1_ref[...]
    h = jnp.maximum(h, 0.0)
    y = jnp.dot(h.astype(jnp.bfloat16), w2_ref[...],
                preferred_element_type=jnp.float32) + b2_ref[...]
    y = y + x
    mu = jnp.mean(y, axis=-1, keepdims=True)
    var = jnp.mean(jnp.square(y - mu), axis=-1, keepdims=True)
    o_ref[...] = (y - mu) * jax.lax.rsqrt(var + eps) * g_ref[...] + b_ref[...]


def _softmax_stats_kernel(x_ref, w_ref, m_out_ref, inv_out_ref, m_sc, l_sc):
    """Pass 1 of the N-tiled softmax: running max + running sum over vocab tiles."""
    n = pl.program_id(1)

    @pl.when(n == 0)
    def _():
        m_sc[...] = jnp.full_like(m_sc, -jnp.inf)
        l_sc[...] = jnp.zeros_like(l_sc)

    s = jnp.dot(x_ref[...].astype(jnp.bfloat16), w_ref[...],
                preferred_element_type=jnp.float32)          # [bm, bn]
    m_prev = m_sc[...]
    m_new = jnp.maximum(m_prev, jnp.max(s, axis=-1, keepdims=True))
    l_sc[...] = (jnp.exp(m_prev - m_new) * l_sc[...]
                 + jnp.sum(jnp.exp(s - m_new), axis=-1, keepdims=True))
    m_sc[...] = m_new

    @pl.when(n == pl.num_programs(1) - 1)
    def _():
        m_out_ref[...] = m_sc[...]
        inv_out_ref[...] = 1.0 / l_sc[...]    # exact reciprocal for the classifier


def _softmax_emit_kernel(x_ref, w_ref, m_ref, inv_ref, o_ref):
    """Pass 2: recompute logits for this vocab tile and write normalized probs."""
    s = jnp.dot(x_ref[...].astype(jnp.bfloat16), w_ref[...],
                preferred_element_type=jnp.float32)
    o_ref[...] = jnp.exp(s - m_ref[...]) * inv_ref[...]


# -----------------------------------------------------------------------------
# pallas_call wrappers
# -----------------------------------------------------------------------------

def qkv_self_project(x, wqkv, bqkv, scale):
    M, D = x.shape
    bm = _row_block(M, 512)
    kernel = functools.partial(_qkv_self_kernel, scale=scale, D=D)
    return pl.pallas_call(
        kernel,
        out_shape=tuple(jax.ShapeDtypeStruct((M, D), jnp.bfloat16) for _ in range(3)),
        grid=(M // bm,),
        in_specs=[
            pl.BlockSpec((bm, D), lambda i: (i, 0)),
            pl.BlockSpec((D, 3 * D), lambda i: (0, 0)),
            pl.BlockSpec((1, 3 * D), lambda i: (0, 0)),
        ],
        out_specs=tuple(pl.BlockSpec((bm, D), lambda i: (i, 0)) for _ in range(3)),
        compiler_params=_cparams("parallel"),
    )(x, wqkv, bqkv)


def q_project(x, wq, bq, scale):
    M, D = x.shape
    bm = _row_block(M, 512)
    kernel = functools.partial(_q_proj_kernel, scale=scale)
    return pl.pallas_call(
        kernel,
        out_shape=jax.ShapeDtypeStruct((M, D), jnp.bfloat16),
        grid=(M // bm,),
        in_specs=[
            pl.BlockSpec((bm, D), lambda i: (i, 0)),
            pl.BlockSpec((D, D), lambda i: (0, 0)),
            pl.BlockSpec((1, D), lambda i: (0, 0)),
        ],
        out_specs=pl.BlockSpec((bm, D), lambda i: (i, 0)),
        compiler_params=_cparams("parallel"),
    )(x, wq, bq)


def kv_project(x, wkv, bkv):
    M, D = x.shape
    bm = _row_block(M, 512)
    kernel = functools.partial(_kv_proj_kernel, D=D)
    return pl.pallas_call(
        kernel,
        out_shape=(jax.ShapeDtypeStruct((M, D), jnp.bfloat16),
                   jax.ShapeDtypeStruct((M, D), jnp.bfloat16)),
        grid=(M // bm,),
        in_specs=[
            pl.BlockSpec((bm, D), lambda i: (i, 0)),
            pl.BlockSpec((D, 2 * D), lambda i: (0, 0)),
            pl.BlockSpec((1, 2 * D), lambda i: (0, 0)),
        ],
        out_specs=(pl.BlockSpec((bm, D), lambda i: (i, 0)),
                   pl.BlockSpec((bm, D), lambda i: (i, 0))),
        compiler_params=_cparams("parallel"),
    )(x, wkv, bkv)


def attention_all_heads(q3, k3, v3, mask, batch_size):
    """Grid over (B*H, q-tiles); mask block selected by index_map (bh -> bh % B),
    faithfully reproducing the reference's repeat/view head<->batch quirk."""
    BH, Lq, Dh = q3.shape
    Lk = k3.shape[1]
    B = batch_size
    tq = _row_block(Lq, 256)
    return pl.pallas_call(
        _attn_kernel,
        out_shape=(jax.ShapeDtypeStruct((BH, Lq, Dh), jnp.bfloat16),
                   jax.ShapeDtypeStruct((BH, Lq, Lk), jnp.float32)),
        grid=(BH, Lq // tq),
        in_specs=[
            pl.BlockSpec((1, tq, Dh), lambda bh, qi: (bh, qi, 0)),
            pl.BlockSpec((1, Lk, Dh), lambda bh, qi: (bh, 0, 0)),
            pl.BlockSpec((1, Lk, Dh), lambda bh, qi: (bh, 0, 0)),
            pl.BlockSpec((1, tq, Lk), lambda bh, qi: (bh % B, qi, 0)),
        ],
        out_specs=(pl.BlockSpec((1, tq, Dh), lambda bh, qi: (bh, qi, 0)),
                   pl.BlockSpec((1, tq, Lk), lambda bh, qi: (bh, qi, 0))),
        compiler_params=_cparams("parallel", "parallel"),
    )(q3, k3, v3, mask)


def out_proj_ln(ctx, residual, wo, bo, gamma, beta, eps=1e-5):
    M, D = ctx.shape
    bm = _row_block(M, 512)
    kernel = functools.partial(_proj_ln_kernel, eps=eps)
    return pl.pallas_call(
        kernel,
        out_shape=jax.ShapeDtypeStruct((M, D), jnp.float32),
        grid=(M // bm,),
        in_specs=[
            pl.BlockSpec((bm, D), lambda i: (i, 0)),
            pl.BlockSpec((bm, D), lambda i: (i, 0)),
            pl.BlockSpec((D, D), lambda i: (0, 0)),
            pl.BlockSpec((1, D), lambda i: (0, 0)),
            pl.BlockSpec((1, D), lambda i: (0, 0)),
            pl.BlockSpec((1, D), lambda i: (0, 0)),
        ],
        out_specs=pl.BlockSpec((bm, D), lambda i: (i, 0)),
        compiler_params=_cparams("parallel"),
    )(ctx, residual, wo, bo, gamma, beta)


def ffn_ln(x, w1, b1, w2, b2, gamma, beta, eps=1e-5):
    M, D = x.shape
    F = w1.shape[1]
    bm = _row_block(M, 256)          # 256-cap keeps v5e inside its scoped VMEM
    kernel = functools.partial(_ffn_ln_kernel, eps=eps)
    return pl.pallas_call(
        kernel,
        out_shape=jax.ShapeDtypeStruct((M, D), jnp.float32),
        grid=(M // bm,),
        in_specs=[
            pl.BlockSpec((bm, D), lambda i: (i, 0)),
            pl.BlockSpec((D, F), lambda i: (0, 0)),
            pl.BlockSpec((1, F), lambda i: (0, 0)),
            pl.BlockSpec((F, D), lambda i: (0, 0)),
            pl.BlockSpec((1, D), lambda i: (0, 0)),
            pl.BlockSpec((1, D), lambda i: (0, 0)),
            pl.BlockSpec((1, D), lambda i: (0, 0)),
        ],
        out_specs=pl.BlockSpec((bm, D), lambda i: (i, 0)),
        compiler_params=_cparams("parallel"),
    )(x, w1, b1, w2, b2, gamma, beta)


def linear_softmax(x, w):
    """Final projection (no bias) + softmax, tiled over rows AND vocab (two-pass)."""
    M, D = x.shape
    V = w.shape[1]
    bm = _row_block(M, 512)
    bn = _col_block(V)

    row_max, row_inv = pl.pallas_call(
        _softmax_stats_kernel,
        out_shape=(jax.ShapeDtypeStruct((M, 1), jnp.float32),
                   jax.ShapeDtypeStruct((M, 1), jnp.float32)),
        grid=(M // bm, V // bn),
        in_specs=[
            pl.BlockSpec((bm, D), lambda i, n: (i, 0)),
            pl.BlockSpec((D, bn), lambda i, n: (0, n)),
        ],
        out_specs=(pl.BlockSpec((bm, 1), lambda i, n: (i, 0)),
                   pl.BlockSpec((bm, 1), lambda i, n: (i, 0))),
        scratch_shapes=[pltpu.VMEM((bm, 1), jnp.float32),
                        pltpu.VMEM((bm, 1), jnp.float32)],
        compiler_params=_cparams("parallel", "arbitrary"),
    )(x, w)

    return pl.pallas_call(
        _softmax_emit_kernel,
        out_shape=jax.ShapeDtypeStruct((M, V), jnp.float32),
        grid=(M // bm, V // bn),
        in_specs=[
            pl.BlockSpec((bm, D), lambda i, n: (i, 0)),
            pl.BlockSpec((D, bn), lambda i, n: (0, n)),
            pl.BlockSpec((bm, 1), lambda i, n: (i, 0)),
            pl.BlockSpec((bm, 1), lambda i, n: (i, 0)),
        ],
        out_specs=pl.BlockSpec((bm, bn), lambda i, n: (i, n)),
        compiler_params=_cparams("parallel", "parallel"),
    )(x, w, row_max, row_inv)


# -----------------------------------------------------------------------------
# Plain-JAX glue (masks, embeddings, module wiring) — fused/hoisted by jax.jit
# -----------------------------------------------------------------------------

def padding_mask(seq_k, seq_q):
    len_q = seq_q.shape[1]
    pad = (seq_k == 0)
    return jnp.broadcast_to(pad[:, None, :], (seq_k.shape[0], len_q, seq_k.shape[1]))


def sequence_mask(seq):
    b, L = seq.shape
    m = jnp.triu(jnp.ones((L, L), dtype=jnp.int32), k=1)
    return jnp.broadcast_to(m[None], (b, L, L))


def build_pos_encoding(d_model, max_seq_len):
    pe = np.array(
        [[pos / np.power(10000, 2.0 * (j // 2) / d_model) for j in range(d_model)]
         for pos in range(max_seq_len)]
    )
    pe[:, 0::2] = np.sin(pe[:, 0::2])
    pe[:, 1::2] = np.cos(pe[:, 1::2])
    pe = np.concatenate([np.zeros((1, d_model)), pe], axis=0)  # pad row 0
    return jnp.asarray(pe, dtype=jnp.float32)


def pos_encoding_lookup(pe_table, input_len, seq_len):
    # positions 1..len, then 0 (pad row); assumes max(input_len) == seq_len
    pos = jnp.arange(1, seq_len + 1, dtype=jnp.int32)[None, :]
    input_pos = jnp.where(pos <= input_len[:, None], pos, 0)
    return pe_table[input_pos]


def multi_head_attention(p, key_value, query, attn_mask, num_heads):
    """Reference MultiHeadAttention (key == value at every call site)."""
    B, Lq, D = query.shape
    Lk = key_value.shape[1]
    dh = D // num_heads
    scale = float(dh) ** -0.5
    residual = query.reshape(-1, D)

    if key_value is query:
        # self-attention: single fused [D, 3D] projection (one MXU pass)
        q2, k2, v2 = qkv_self_project(residual, p["wqkv"], p["bqkv"], scale)
    else:
        # cross-attention: q from the query stream, (K|V) from the memory stream
        q2 = q_project(residual, p["wq"], p["bq"], scale)
        k2, v2 = kv_project(key_value.reshape(-1, D), p["wkv"], p["bkv"])

    # reference head split: row-major reinterpretation of [B*L, D] as [B*H, L, Dh]
    q3 = q2.reshape(B * num_heads, -1, dh)
    k3 = k2.reshape(B * num_heads, -1, dh)
    v3 = v2.reshape(B * num_heads, -1, dh)

    if attn_mask is None:
        mask = jnp.zeros((B, Lq, Lk), dtype=jnp.int32)
    else:
        mask = attn_mask.astype(jnp.int32)     # untiled [B, Lq, Lk]

    ctx, attn = attention_all_heads(q3, k3, v3, mask, B)

    # == torch .view(B, -1, Dh*H), then fused out-proj + residual + LayerNorm
    out = out_proj_ln(ctx.reshape(-1, D), residual,
                      p["wo"], p["bo"], p["ln_g"], p["ln_b"])
    return out.reshape(B, Lq, D), attn


def feed_forward(p, x):
    B, L, D = x.shape
    out = ffn_ln(x.reshape(-1, D), p["w1"], p["b1"], p["w2"], p["b2"],
                 p["ln_g"], p["ln_b"])
    return out.reshape(B, L, D)


def encoder_forward(p, inputs, inputs_len, num_heads):
    output = p["emb"][inputs] + pos_encoding_lookup(p["pe"], inputs_len, inputs.shape[1])
    self_attention_mask = padding_mask(inputs, inputs)
    attentions = []
    for lp in p["layers"]:
        # TODO(synk): reference Encoder_Layer passes the global `padding_mask`
        # *function* as the mask (a runtime bug); the intended per-batch padding
        # mask is used instead.
        output, attn = multi_head_attention(
            lp["mha"], output, output, self_attention_mask, num_heads)
        output = feed_forward(lp["ffn"], output)
        attentions.append(attn)
    return output, attentions


def decoder_forward(p, inputs, inputs_len, enc_output, context_attn_mask, num_heads):
    output = p["emb"][inputs] + pos_encoding_lookup(p["pe"], inputs_len, inputs.shape[1])
    pad_m = padding_mask(inputs, inputs)
    seq_m = sequence_mask(inputs)
    self_attn_mask = (pad_m.astype(jnp.int32) + seq_m) > 0
    self_attns, ctx_attns = [], []
    for lp in p["layers"]:
        # same attention module (shared weights) for self- and context-attention,
        # exactly as in the reference Decoder_Layer
        output, sa = multi_head_attention(
            lp["mha"], output, output, self_attn_mask, num_heads)
        output, ca = multi_head_attention(
            lp["mha"], enc_output, output, context_attn_mask, num_heads)
        output = feed_forward(lp["ffn"], output)
        self_attns.append(sa)
        ctx_attns.append(ca)
    return output, self_attns, ctx_attns


def transformer_forward(params, src_seq, src_len, tgt_seq, tgt_len, num_heads):
    context_attn_mask = padding_mask(tgt_seq, src_seq)
    enc_out, enc_self_attn = encoder_forward(params["encoder"], src_seq, src_len, num_heads)
    dec_out, dec_self_attn, ctx_attn = decoder_forward(
        params["decoder"], tgt_seq, tgt_len, enc_out, context_attn_mask, num_heads)
    B, Lt, D = dec_out.shape
    out = linear_softmax(dec_out.reshape(-1, D), params["linear_w"]).reshape(B, Lt, -1)
    return out, enc_self_attn, dec_self_attn, ctx_attn


# -----------------------------------------------------------------------------
# Deterministic parameter init (matmul weights stored in bf16, rest in f32)
# -----------------------------------------------------------------------------

def _dense(key, in_dim, out_dim):
    return (jax.random.normal(key, (in_dim, out_dim), jnp.float32) * 0.05
            ).astype(jnp.bfloat16)


def init_mha(key, D):
    ks = jax.random.split(key, 4)
    wq = _dense(ks[0], D, D)
    wk = _dense(ks[1], D, D)
    wv = _dense(ks[2], D, D)
    return dict(
        wq=wq, bq=jnp.zeros((1, D), jnp.float32),
        wkv=jnp.concatenate([wk, wv], axis=1),
        bkv=jnp.zeros((1, 2 * D), jnp.float32),
        wqkv=jnp.concatenate([wq, wk, wv], axis=1),
        bqkv=jnp.zeros((1, 3 * D), jnp.float32),
        wo=_dense(ks[3], D, D), bo=jnp.zeros((1, D), jnp.float32),
        ln_g=jnp.ones((1, D), jnp.float32), ln_b=jnp.zeros((1, D), jnp.float32),
    )


def init_ffn(key, D, F):
    k1, k2 = jax.random.split(key)
    return dict(
        w1=_dense(k1, D, F), b1=jnp.zeros((1, F), jnp.float32),
        w2=_dense(k2, F, D), b2=jnp.zeros((1, D), jnp.float32),
        ln_g=jnp.ones((1, D), jnp.float32), ln_b=jnp.zeros((1, D), jnp.float32),
    )


def init_stack(key, num_layers, D, F):
    layers = []
    for _ in range(num_layers):
        k1, k2, key = jax.random.split(key, 3)
        layers.append(dict(mha=init_mha(k1, D), ffn=init_ffn(k2, D, F)))
    return layers


def init_transformer(key, src_vocab, src_max_len, tgt_vocab, tgt_max_len,
                     num_layers, D, F):
    k_enc_emb, k_dec_emb, k_enc, k_dec, k_out = jax.random.split(key, 5)
    enc_emb = jax.random.normal(k_enc_emb, (src_vocab + 1, D), jnp.float32) * 0.05
    enc_emb = enc_emb.at[0].set(0.0)          # padding_idx=0
    dec_emb = jax.random.normal(k_dec_emb, (tgt_vocab + 1, D), jnp.float32) * 0.05
    dec_emb = dec_emb.at[0].set(0.0)
    return dict(
        encoder=dict(emb=enc_emb, pe=build_pos_encoding(D, src_max_len),
                     layers=init_stack(k_enc, num_layers, D, F)),
        decoder=dict(emb=dec_emb, pe=build_pos_encoding(D, tgt_max_len),
                     layers=init_stack(k_dec, num_layers, D, F)),
        linear_w=_dense(k_out, D, tgt_vocab),
    )


# -----------------------------------------------------------------------------
# Demo
# -----------------------------------------------------------------------------

if __name__ == "__main__":
    # small config
    B = 2
    L = 8                      # src_max_len == tgt_max_len == seq length
    num_layers = 2
    model_dim = 32
    num_heads = 4
    ffn_dim = 64
    src_vocab = 11
    tgt_vocab = 11

    root = jax.random.PRNGKey(0)
    kp, ks, kt = jax.random.split(root, 3)

    params = init_transformer(kp, src_vocab, L, tgt_vocab, L,
                              num_layers, model_dim, ffn_dim)

    # token ids in [1, vocab], with 0-padding past the true lengths
    src_len = jnp.array([8, 5], dtype=jnp.int32)
    tgt_len = jnp.array([8, 6], dtype=jnp.int32)
    pos = jnp.arange(L, dtype=jnp.int32)[None, :]
    src_seq = jax.random.randint(ks, (B, L), 1, src_vocab + 1, dtype=jnp.int32)
    src_seq = jnp.where(pos < src_len[:, None], src_seq, 0)
    tgt_seq = jax.random.randint(kt, (B, L), 1, tgt_vocab + 1, dtype=jnp.int32)
    tgt_seq = jnp.where(pos < tgt_len[:, None], tgt_seq, 0)

    fwd = jax.jit(transformer_forward, static_argnames=("num_heads",))
    out, enc_attn, dec_attn, ctx_attn = fwd(
        params, src_seq, src_len, tgt_seq, tgt_len, num_heads=num_heads)

    jax.block_until_ready((out, enc_attn, dec_attn, ctx_attn))

    assert out.shape == (B, L, tgt_vocab)
    assert enc_attn[-1].shape == (B * num_heads, L, L)
    assert dec_attn[-1].shape == (B * num_heads, L, L)
    assert ctx_attn[-1].shape == (B * num_heads, L, L)
    assert bool(jnp.all(jnp.isfinite(out)))
    # final softmax uses an exact reciprocal -> rows sum to 1 tightly
    assert bool(jnp.allclose(out.sum(-1), 1.0, atol=1e-3))
    print("KERNEL_OK")
</pallas_src>

<mosaic_0001>
module attributes {stable_mosaic.version = 11 : i64} {
  func.func @_attn_kernel(%arg0: i32, %arg1: i32, %arg2: memref<1x8x8xbf16, #tpu.memory_space<vmem>>, %arg3: memref<1x8x8xbf16, #tpu.memory_space<vmem>>, %arg4: memref<1x8x8xbf16, #tpu.memory_space<vmem>>, %arg5: memref<1x8x8xi32, #tpu.memory_space<vmem>>, %arg6: memref<1x8x8xbf16, #tpu.memory_space<vmem>>, %arg7: memref<1x8x8xf32, #tpu.memory_space<vmem>>) attributes {dimension_semantics = [#tpu.dimension_semantics<parallel>, #tpu.dimension_semantics<parallel>], iteration_bounds = array<i64: 8, 1>, scalar_prefetch = 0 : i64, scratch_operands = 0 : i64, tpu.core_type = #tpu.core_type<tc>, window_params = [{transform_indices = @transform_0, window_bounds = array<i64: 1, 8, 8>}, {transform_indices = @transform_1, window_bounds = array<i64: 1, 8, 8>}, {transform_indices = @transform_2, window_bounds = array<i64: 1, 8, 8>}, {transform_indices = @transform_3, window_bounds = array<i64: 1, 8, 8>}, {transform_indices = @transform_4, window_bounds = array<i64: 1, 8, 8>}, {transform_indices = @transform_5, window_bounds = array<i64: 1, 8, 8>}]} {
    %c0 = arith.constant 0 : index
    %c0_0 = arith.constant 0 : index
    %c0_1 = arith.constant 0 : index
    %0 = vector.load %arg2[%c0, %c0_0, %c0_1] : memref<1x8x8xbf16, #tpu.memory_space<vmem>>, vector<1x8x8xbf16>
    %1 = vector.shape_cast %0 : vector<1x8x8xbf16> to vector<8x8xbf16>
    %c0_2 = arith.constant 0 : index
    %c0_3 = arith.constant 0 : index
    %c0_4 = arith.constant 0 : index
    %2 = vector.load %arg3[%c0_2, %c0_3, %c0_4] : memref<1x8x8xbf16, #tpu.memory_space<vmem>>, vector<1x8x8xbf16>
    %3 = vector.shape_cast %2 : vector<1x8x8xbf16> to vector<8x8xbf16>
    %cst = arith.constant dense<0.000000e+00> : vector<8x8xf32>
    %4 = tpu.matmul %1, %3, %cst {dimension_numbers = #tpu.dot_dimension_numbers<[1], [1], [0], [0], [0, 0, 1, 0], [], []>} : vector<8x8xbf16>, vector<8x8xbf16>, vector<8x8xf32> -> vector<8x8xf32>
    %c0_5 = arith.constant 0 : index
    %c0_6 = arith.constant 0 : index
    %c0_7 = arith.constant 0 : index
    %5 = vector.load %arg5[%c0_5, %c0_6, %c0_7] : memref<1x8x8xi32, #tpu.memory_space<vmem>>, vector<1x8x8xi32>
    %6 = vector.shape_cast %5 : vector<1x8x8xi32> to vector<8x8xi32>
    %c0_i32 = arith.constant 0 : i32
    %7 = vector.broadcast %c0_i32 : i32 to vector<8x8xi32>
    %8 = arith.cmpi ne, %6, %7 : vector<8x8xi32>
    %cst_8 = arith.constant -1.000000e+30 : f32
    %9 = vector.broadcast %cst_8 : f32 to vector<8x8xf32>
    %10 = arith.select %8, %9, %4 : vector<8x8xi1>, vector<8x8xf32>
    %cst_9 = arith.constant dense<0xFF800000> : vector<8xf32>
    %11 = vector.multi_reduction <maximumf>, %10, %cst_9 [1] : vector<8x8xf32> to vector<8xf32>
    %12 = vector.shape_cast %11 : vector<8xf32> to vector<8x1xf32>
    %13 = vector.broadcast %12 : vector<8x1xf32> to vector<8x8xf32>
    %14 = arith.subf %10, %13 : vector<8x8xf32>
    %15 = math.exp %14 : vector<8x8xf32>
    %cst_10 = arith.constant dense<0.000000e+00> : vector<8xf32>
    %16 = vector.multi_reduction <add>, %15, %cst_10 [1] : vector<8x8xf32> to vector<8xf32>
    %17 = vector.shape_cast %16 : vector<8xf32> to vector<8x1xf32>
    %18 = tpu.reciprocal %17 {approx = true} : vector<8x1xf32> -> vector<8x1xf32>
    %19 = vector.broadcast %18 : vector<8x1xf32> to vector<8x8xf32>
    %20 = arith.mulf %15, %19 : vector<8x8xf32>
    %c0_11 = arith.constant 0 : index
    %c0_12 = arith.constant 0 : index
    %c0_13 = arith.constant 0 : index
    %21 = vector.load %arg7[%c0_11, %c0_12, %c0_13] : memref<1x8x8xf32, #tpu.memory_space<vmem>>, vector<1x8x8xf32>
    %22 = vector.shape_cast %21 : vector<1x8x8xf32> to vector<8x8xf32>
    %23 = vector.shape_cast %20 : vector<8x8xf32> to vector<1x8x8xf32>
    tpu.vector_store %arg7[%c0_11, %c0_12, %c0_13], %23 {strides = array<i32>} : memref<1x8x8xf32, #tpu.memory_space<vmem>>, vector<1x8x8xf32>,
    %24 = arith.truncf %20 : vector<8x8xf32> to vector<8x8xbf16>
    %c0_14 = arith.constant 0 : index
    %c0_15 = arith.constant 0 : index
    %c0_16 = arith.constant 0 : index
    %25 = vector.load %arg4[%c0_14, %c0_15, %c0_16] : memref<1x8x8xbf16, #tpu.memory_space<vmem>>, vector<1x8x8xbf16>
    %26 = vector.shape_cast %25 : vector<1x8x8xbf16> to vector<8x8xbf16>
    %cst_17 = arith.constant dense<0.000000e+00> : vector<8x8xf32>
    %27 = tpu.matmul %24, %26, %cst_17 {dimension_numbers = #tpu.dot_dimension_numbers<[1], [0], [0], [1], [0, 0, 1, 1], [], []>} : vector<8x8xbf16>, vector<8x8xbf16>, vector<8x8xf32> -> vector<8x8xf32>
    %28 = arith.truncf %27 : vector<8x8xf32> to vector<8x8xbf16>
    %c0_18 = arith.constant 0 : index
    %c0_19 = arith.constant 0 : index
    %c0_20 = arith.constant 0 : index
    %29 = vector.load %arg6[%c0_18, %c0_19, %c0_20] : memref<1x8x8xbf16, #tpu.memory_space<vmem>>, vector<1x8x8xbf16>
    %30 = vector.shape_cast %29 : vector<1x8x8xbf16> to vector<8x8xbf16>
    %31 = vector.shape_cast %28 : vector<8x8xbf16> to vector<1x8x8xbf16>
    tpu.vector_store %arg6[%c0_18, %c0_19, %c0_20], %31 {strides = array<i32>} : memref<1x8x8xbf16, #tpu.memory_space<vmem>>, vector<1x8x8xbf16>,
    return
  }
  func.func @transform_0(%arg0: i32, %arg1: i32) -> (i32, i32, i32) {
    %c0_i32 = arith.constant 0 : i32
    %c0_i32_0 = arith.constant 0 : i32
    return %arg0, %arg1, %c0_i32 : i32, i32, i32
  }
  func.func @transform_1(%arg0: i32, %arg1: i32) -> (i32, i32, i32) {
    %c0_i32 = arith.constant 0 : i32
    %c0_i32_0 = arith.constant 0 : i32
    %c0_i32_1 = arith.constant 0 : i32
    return %arg0, %c0_i32, %c0_i32_0 : i32, i32, i32
  }
  func.func @transform_2(%arg0: i32, %arg1: i32) -> (i32, i32, i32) {
    %c0_i32 = arith.constant 0 : i32
    %c0_i32_0 = arith.constant 0 : i32
    %c0_i32_1 = arith.constant 0 : i32
    return %arg0, %c0_i32, %c0_i32_0 : i32, i32, i32
  }
  func.func @transform_3(%arg0: i32, %arg1: i32) -> (i32, i32, i32) {
    %c2_i32 = arith.constant 2 : i32
    %c0_i32 = arith.constant 0 : i32
    %0 = arith.cmpi eq, %c2_i32, %c0_i32 : i32
    %c1_i32 = arith.constant 1 : i32
    %1 = arith.select %0, %c1_i32, %c2_i32 : i32
    %2 = arith.remsi %arg0, %1 : i32
    %c0_i32_0 = arith.constant 0 : i32
    %3 = arith.cmpi ne, %2, %c0_i32_0 : i32
    %c0_i32_1 = arith.constant 0 : i32
    %4 = arith.cmpi slt, %2, %c0_i32_1 : i32
    %c0_i32_2 = arith.constant 0 : i32
    %5 = arith.cmpi slt, %1, %c0_i32_2 : i32
    %6 = arith.xori %4, %5 : i1
    %7 = arith.andi %6, %3 : i1
    %8 = arith.addi %2, %1 : i32
    %9 = arith.select %7, %8, %2 : i32
    %c0_i32_3 = arith.constant 0 : i32
    %c0_i32_4 = arith.constant 0 : i32
    return %9, %arg1, %c0_i32_3 : i32, i32, i32
  }
  func.func @transform_4(%arg0: i32, %arg1: i32) -> (i32, i32, i32) {
    %c0_i32 = arith.constant 0 : i32
    %c0_i32_0 = arith.constant 0 : i32
    return %arg0, %arg1, %c0_i32 : i32, i32, i32
  }
  func.func @transform_5(%arg0: i32, %arg1: i32) -> (i32, i32, i32) {
    %c0_i32 = arith.constant 0 : i32
    %c0_i32_0 = arith.constant 0 : i32
    return %arg0, %arg1, %c0_i32 : i32, i32, i32
  }
}

module attributes {stable_mosaic.version = 11 : i64} {
  func.func @_qkv_self_kernel(%arg0: i32, %arg1: memref<8x32xf32, #tpu.memory_space<vmem>>, %arg2: memref<32x96xbf16, #tpu.memory_space<vmem>>, %arg3: memref<1x96xf32, #tpu.memory_space<vmem>>, %arg4: memref<8x32xbf16, #tpu.memory_space<vmem>>, %arg5: memref<8x32xbf16, #tpu.memory_space<vmem>>, %arg6: memref<8x32xbf16, #tpu.memory_space<vmem>>) attributes {dimension_semantics = [#tpu.dimension_semantics<parallel>], iteration_bounds = array<i64: 2>, scalar_prefetch = 0 : i64, scratch_operands = 0 : i64, tpu.core_type = #tpu.core_type<tc>, window_params = [{transform_indices = @transform_0, window_bounds = array<i64: 8, 32>}, {pipeline_mode = #tpu.pipeline_mode<synchronous>, transform_indices = @transform_1, window_bounds = array<i64: 32, 96>}, {pipeline_mode = #tpu.pipeline_mode<synchronous>, transform_indices = @transform_2, window_bounds = array<i64: 1, 96>}, {transform_indices = @transform_3, window_bounds = array<i64: 8, 32>}, {transform_indices = @transform_4, window_bounds = array<i64: 8, 32>}, {transform_indices = @transform_5, window_bounds = array<i64: 8, 32>}]} {
    %c0 = arith.constant 0 : index
    %c0_0 = arith.constant 0 : index
    %0 = vector.load %arg1[%c0, %c0_0] : memref<8x32xf32, #tpu.memory_space<vmem>>, vector<8x32xf32>
    %1 = arith.truncf %0 : vector<8x32xf32> to vector<8x32xbf16>
    %c0_1 = arith.constant 0 : index
    %c0_2 = arith.constant 0 : index
    %2 = vector.load %arg2[%c0_1, %c0_2] : memref<32x96xbf16, #tpu.memory_space<vmem>>, vector<32x96xbf16>
    %cst = arith.constant dense<0.000000e+00> : vector<8x96xf32>
    %3 = tpu.matmul %1, %2, %cst {dimension_numbers = #tpu.dot_dimension_numbers<[1], [0], [0], [1], [0, 0, 1, 1], [], []>} : vector<8x32xbf16>, vector<32x96xbf16>, vector<8x96xf32> -> vector<8x96xf32>
    %c0_3 = arith.constant 0 : index
    %c0_4 = arith.constant 0 : index
    %4 = vector.load %arg3[%c0_3, %c0_4] : memref<1x96xf32, #tpu.memory_space<vmem>>, vector<1x96xf32>
    %5 = vector.broadcast %4 : vector<1x96xf32> to vector<8x96xf32>
    %6 = arith.addf %3, %5 : vector<8x96xf32>
    %7 = vector.extract_strided_slice %6 {offsets = [0, 0], sizes = [8, 32], strides = [1, 1]} : vector<8x96xf32> to vector<8x32xf32>
    %cst_5 = arith.constant 0.353553385 : f32
    %8 = vector.broadcast %cst_5 : f32 to vector<8x32xf32>
    %9 = arith.mulf %7, %8 : vector<8x32xf32>
    %10 = arith.truncf %9 : vector<8x32xf32> to vector<8x32xbf16>
    %c0_6 = arith.constant 0 : index
    %c0_7 = arith.constant 0 : index
    %11 = vector.load %arg4[%c0_6, %c0_7] : memref<8x32xbf16, #tpu.memory_space<vmem>>, vector<8x32xbf16>
    tpu.vector_store %arg4[%c0_6, %c0_7], %10 {strides = array<i32>} : memref<8x32xbf16, #tpu.memory_space<vmem>>, vector<8x32xbf16>,
    %12 = vector.extract_strided_slice %6 {offsets = [0, 32], sizes = [8, 32], strides = [1, 1]} : vector<8x96xf32> to vector<8x32xf32>
    %13 = arith.truncf %12 : vector<8x32xf32> to vector<8x32xbf16>
    %c0_8 = arith.constant 0 : index
    %c0_9 = arith.constant 0 : index
    %14 = vector.load %arg5[%c0_8, %c0_9] : memref<8x32xbf16, #tpu.memory_space<vmem>>, vector<8x32xbf16>
    tpu.vector_store %arg5[%c0_8, %c0_9], %13 {strides = array<i32>} : memref<8x32xbf16, #tpu.memory_space<vmem>>, vector<8x32xbf16>,
    %15 = vector.extract_strided_slice %6 {offsets = [0, 64], sizes = [8, 32], strides = [1, 1]} : vector<8x96xf32> to vector<8x32xf32>
    %16 = arith.truncf %15 : vector<8x32xf32> to vector<8x32xbf16>
    %c0_10 = arith.constant 0 : index
    %c0_11 = arith.constant 0 : index
    %17 = vector.load %arg6[%c0_10, %c0_11] : memref<8x32xbf16, #tpu.memory_space<vmem>>, vector<8x32xbf16>
    tpu.vector_store %arg6[%c0_10, %c0_11], %16 {strides = array<i32>} : memref<8x32xbf16, #tpu.memory_space<vmem>>, vector<8x32xbf16>,
    return
  }
  func.func @transform_0(%arg0: i32) -> (i32, i32) {
    %c0_i32 = arith.constant 0 : i32
    %c0_i32_0 = arith.constant 0 : i32
    return %arg0, %c0_i32 : i32, i32
  }
  func.func @transform_1(%arg0: i32) -> (i32, i32) {
    %c0_i32 = arith.constant 0 : i32
    %c0_i32_0 = arith.constant 0 : i32
    %c0_i32_1 = arith.constant 0 : i32
    return %c0_i32, %c0_i32_0 : i32, i32
  }
  func.func @transform_2(%arg0: i32) -> (i32, i32) {
    %c0_i32 = arith.constant 0 : i32
    %c0_i32_0 = arith.constant 0 : i32
    %c0_i32_1 = arith.constant 0 : i32
    return %c0_i32, %c0_i32_0 : i32, i32
  }
  func.func @transform_3(%arg0: i32) -> (i32, i32) {
    %c0_i32 = arith.constant 0 : i32
    %c0_i32_0 = arith.constant 0 : i32
    return %arg0, %c0_i32 : i32, i32
  }
  func.func @transform_4(%arg0: i32) -> (i32, i32) {
    %c0_i32 = arith.constant 0 : i32
    %c0_i32_0 = arith.constant 0 : i32
    return %arg0, %c0_i32 : i32, i32
  }
  func.func @transform_5(%arg0: i32) -> (i32, i32) {
    %c0_i32 = arith.constant 0 : i32
    %c0_i32_0 = arith.constant 0 : i32
    return %arg0, %c0_i32 : i32, i32
  }
}

module attributes {stable_mosaic.version = 11 : i64} {
  func.func @_proj_ln_kernel(%arg0: i32, %arg1: memref<8x32xbf16, #tpu.memory_space<vmem>>, %arg2: memref<8x32xf32, #tpu.memory_space<vmem>>, %arg3: memref<32x32xbf16, #tpu.memory_space<vmem>>, %arg4: memref<1x32xf32, #tpu.memory_space<vmem>>, %arg5: memref<1x32xf32, #tpu.memory_space<vmem>>, %arg6: memref<1x32xf32, #tpu.memory_space<vmem>>, %arg7: memref<8x32xf32, #tpu.memory_space<vmem>>) attributes {dimension_semantics = [#tpu.dimension_semantics<parallel>], iteration_bounds = array<i64: 2>, scalar_prefetch = 0 : i64, scratch_operands = 0 : i64, tpu.core_type = #tpu.core_type<tc>, window_params = [{transform_indices = @transform_0, window_bounds = array<i64: 8, 32>}, {transform_indices = @transform_1, window_bounds = array<i64: 8, 32>}, {pipeline_mode = #tpu.pipeline_mode<synchronous>, transform_indices = @transform_2, window_bounds = array<i64: 32, 32>}, {pipeline_mode = #tpu.pipeline_mode<synchronous>, transform_indices = @transform_3, window_bounds = array<i64: 1, 32>}, {pipeline_mode = #tpu.pipeline_mode<synchronous>, transform_indices = @transform_4, window_bounds = array<i64: 1, 32>}, {pipeline_mode = #tpu.pipeline_mode<synchronous>, transform_indices = @transform_5, window_bounds = array<i64: 1, 32>}, {transform_indices = @transform_6, window_bounds = array<i64: 8, 32>}]} {
    %c0 = arith.constant 0 : index
    %c0_0 = arith.constant 0 : index
    %0 = vector.load %arg1[%c0, %c0_0] : memref<8x32xbf16, #tpu.memory_space<vmem>>, vector<8x32xbf16>
    %c0_1 = arith.constant 0 : index
    %c0_2 = arith.constant 0 : index
    %1 = vector.load %arg3[%c0_1, %c0_2] : memref<32x32xbf16, #tpu.memory_space<vmem>>, vector<32x32xbf16>
    %cst = arith.constant dense<0.000000e+00> : vector<8x32xf32>
    %2 = tpu.matmul %0, %1, %cst {dimension_numbers = #tpu.dot_dimension_numbers<[1], [0], [0], [1], [0, 0, 1, 1], [], []>} : vector<8x32xbf16>, vector<32x32xbf16>, vector<8x32xf32> -> vector<8x32xf32>
    %c0_3 = arith.constant 0 : index
    %c0_4 = arith.constant 0 : index
    %3 = vector.load %arg4[%c0_3, %c0_4] : memref<1x32xf32, #tpu.memory_space<vmem>>, vector<1x32xf32>
    %4 = vector.broadcast %3 : vector<1x32xf32> to vector<8x32xf32>
    %5 = arith.addf %2, %4 : vector<8x32xf32>
    %c0_5 = arith.constant 0 : index
    %c0_6 = arith.constant 0 : index
    %6 = vector.load %arg2[%c0_5, %c0_6] : memref<8x32xf32, #tpu.memory_space<vmem>>, vector<8x32xf32>
    %7 = arith.addf %5, %6 : vector<8x32xf32>
    %cst_7 = arith.constant dense<0.000000e+00> : vector<8xf32>
    %8 = vector.multi_reduction <add>, %7, %cst_7 [1] : vector<8x32xf32> to vector<8xf32>
    %9 = vector.shape_cast %8 : vector<8xf32> to vector<8x1xf32>
    %cst_8 = arith.constant 3.200000e+01 : f32
    %10 = vector.broadcast %cst_8 : f32 to vector<8x1xf32>
    %11 = arith.divf %9, %10 : vector<8x1xf32>
    %12 = vector.broadcast %11 : vector<8x1xf32> to vector<8x32xf32>
    %13 = arith.subf %7, %12 : vector<8x32xf32>
    %14 = arith.mulf %13, %13 : vector<8x32xf32>
    %cst_9 = arith.constant dense<0.000000e+00> : vector<8xf32>
    %15 = vector.multi_reduction <add>, %14, %cst_9 [1] : vector<8x32xf32> to vector<8xf32>
    %16 = vector.shape_cast %15 : vector<8xf32> to vector<8x1xf32>
    %cst_10 = arith.constant 3.200000e+01 : f32
    %17 = vector.broadcast %cst_10 : f32 to vector<8x1xf32>
    %18 = arith.divf %16, %17 : vector<8x1xf32>
    %19 = vector.broadcast %11 : vector<8x1xf32> to vector<8x32xf32>
    %20 = arith.subf %7, %19 : vector<8x32xf32>
    %cst_11 = arith.constant 9.99999974E-6 : f32
    %21 = vector.broadcast %cst_11 : f32 to vector<8x1xf32>
    %22 = arith.addf %18, %21 : vector<8x1xf32>
    %23 = math.rsqrt %22 : vector<8x1xf32>
    %24 = vector.broadcast %23 : vector<8x1xf32> to vector<8x32xf32>
    %25 = arith.mulf %20, %24 : vector<8x32xf32>
    %c0_12 = arith.constant 0 : index
    %c0_13 = arith.constant 0 : index
    %26 = vector.load %arg5[%c0_12, %c0_13] : memref<1x32xf32, #tpu.memory_space<vmem>>, vector<1x32xf32>
    %27 = vector.broadcast %26 : vector<1x32xf32> to vector<8x32xf32>
    %28 = arith.mulf %25, %27 : vector<8x32xf32>
    %c0_14 = arith.constant 0 : index
    %c0_15 = arith.constant 0 : index
    %29 = vector.load %arg6[%c0_14, %c0_15] : memref<1x32xf32, #tpu.memory_space<vmem>>, vector<1x32xf32>
    %30 = vector.broadcast %29 : vector<1x32xf32> to vector<8x32xf32>
    %31 = arith.addf %28, %30 : vector<8x32xf32>
    %c0_16 = arith.constant 0 : index
    %c0_17 = arith.constant 0 : index
    %32 = vector.load %arg7[%c0_16, %c0_17] : memref<8x32xf32, #tpu.memory_space<vmem>>, vector<8x32xf32>
    tpu.vector_store %arg7[%c0_16, %c0_17], %31 {strides = array<i32>} : memref<8x32xf32, #tpu.memory_space<vmem>>, vector<8x32xf32>,
    return
  }
  func.func @transform_0(%arg0: i32) -> (i32, i32) {
    %c0_i32 = arith.constant 0 : i32
    %c0_i32_0 = arith.constant 0 : i32
    return %arg0, %c0_i32 : i32, i32
  }
  func.func @transform_1(%arg0: i32) -> (i32, i32) {
    %c0_i32 = arith.constant 0 : i32
    %c0_i32_0 = arith.constant 0 : i32
    return %arg0, %c0_i32 : i32, i32
  }
  func.func @transform_2(%arg0: i32) -> (i32, i32) {
    %c0_i32 = arith.constant 0 : i32
    %c0_i32_0 = arith.constant 0 : i32
    %c0_i32_1 = arith.constant 0 : i32
    return %c0_i32, %c0_i32_0 : i32, i32
  }
  func.func @transform_3(%arg0: i32) -> (i32, i32) {
    %c0_i32 = arith.constant 0 : i32
    %c0_i32_0 = arith.constant 0 : i32
    %c0_i32_1 = arith.constant 0 : i32
    return %c0_i32, %c0_i32_0 : i32, i32
  }
  func.func @transform_4(%arg0: i32) -> (i32, i32) {
    %c0_i32 = arith.constant 0 : i32
    %c0_i32_0 = arith.constant 0 : i32
    %c0_i32_1 = arith.constant 0 : i32
    return %c0_i32, %c0_i32_0 : i32, i32
  }
  func.func @transform_5(%arg0: i32) -> (i32, i32) {
    %c0_i32 = arith.constant 0 : i32
    %c0_i32_0 = arith.constant 0 : i32
    %c0_i32_1 = arith.constant 0 : i32
    return %c0_i32, %c0_i32_0 : i32, i32
  }
  func.func @transform_6(%arg0: i32) -> (i32, i32) {
    %c0_i32 = arith.constant 0 : i32
    %c0_i32_0 = arith.constant 0 : i32
    return %arg0, %c0_i32 : i32, i32
  }
}

module attributes {stable_mosaic.version = 11 : i64} {
  func.func @_ffn_ln_kernel(%arg0: i32, %arg1: memref<8x32xf32, #tpu.memory_space<vmem>>, %arg2: memref<32x64xbf16, #tpu.memory_space<vmem>>, %arg3: memref<1x64xf32, #tpu.memory_space<vmem>>, %arg4: memref<64x32xbf16, #tpu.memory_space<vmem>>, %arg5: memref<1x32xf32, #tpu.memory_space<vmem>>, %arg6: memref<1x32xf32, #tpu.memory_space<vmem>>, %arg7: memref<1x32xf32, #tpu.memory_space<vmem>>, %arg8: memref<8x32xf32, #tpu.memory_space<vmem>>) attributes {dimension_semantics = [#tpu.dimension_semantics<parallel>], iteration_bounds = array<i64: 2>, scalar_prefetch = 0 : i64, scratch_operands = 0 : i64, tpu.core_type = #tpu.core_type<tc>, window_params = [{transform_indices = @transform_0, window_bounds = array<i64: 8, 32>}, {pipeline_mode = #tpu.pipeline_mode<synchronous>, transform_indices = @transform_1, window_bounds = array<i64: 32, 64>}, {pipeline_mode = #tpu.pipeline_mode<synchronous>, transform_indices = @transform_2, window_bounds = array<i64: 1, 64>}, {pipeline_mode = #tpu.pipeline_mode<synchronous>, transform_indices = @transform_3, window_bounds = array<i64: 64, 32>}, {pipeline_mode = #tpu.pipeline_mode<synchronous>, transform_indices = @transform_4, window_bounds = array<i64: 1, 32>}, {pipeline_mode = #tpu.pipeline_mode<synchronous>, transform_indices = @transform_5, window_bounds = array<i64: 1, 32>}, {pipeline_mode = #tpu.pipeline_mode<synchronous>, transform_indices = @transform_6, window_bounds = array<i64: 1, 32>}, {transform_indices = @transform_7, window_bounds = array<i64: 8, 32>}]} {
    %c0 = arith.constant 0 : index
    %c0_0 = arith.constant 0 : index
    %0 = vector.load %arg1[%c0, %c0_0] : memref<8x32xf32, #tpu.memory_space<vmem>>, vector<8x32xf32>
    %1 = arith.truncf %0 : vector<8x32xf32> to vector<8x32xbf16>
    %c0_1 = arith.constant 0 : index
    %c0_2 = arith.constant 0 : index
    %2 = vector.load %arg2[%c0_1, %c0_2] : memref<32x64xbf16, #tpu.memory_space<vmem>>, vector<32x64xbf16>
    %cst = arith.constant dense<0.000000e+00> : vector<8x64xf32>
    %3 = tpu.matmul %1, %2, %cst {dimension_numbers = #tpu.dot_dimension_numbers<[1], [0], [0], [1], [0, 0, 1, 1], [], []>} : vector<8x32xbf16>, vector<32x64xbf16>, vector<8x64xf32> -> vector<8x64xf32>
    %c0_3 = arith.constant 0 : index
    %c0_4 = arith.constant 0 : index
    %4 = vector.load %arg3[%c0_3, %c0_4] : memref<1x64xf32, #tpu.memory_space<vmem>>, vector<1x64xf32>
    %5 = vector.broadcast %4 : vector<1x64xf32> to vector<8x64xf32>
    %6 = arith.addf %3, %5 : vector<8x64xf32>
    %cst_5 = arith.constant 0.000000e+00 : f32
    %7 = vector.broadcast %cst_5 : f32 to vector<8x64xf32>
    %8 = arith.maximumf %6, %7 : vector<8x64xf32>
    %9 = arith.truncf %8 : vector<8x64xf32> to vector<8x64xbf16>
    %c0_6 = arith.constant 0 : index
    %c0_7 = arith.constant 0 : index
    %10 = vector.load %arg4[%c0_6, %c0_7] : memref<64x32xbf16, #tpu.memory_space<vmem>>, vector<64x32xbf16>
    %cst_8 = arith.constant dense<0.000000e+00> : vector<8x32xf32>
    %11 = tpu.matmul %9, %10, %cst_8 {dimension_numbers = #tpu.dot_dimension_numbers<[1], [0], [0], [1], [0, 0, 1, 1], [], []>} : vector<8x64xbf16>, vector<64x32xbf16>, vector<8x32xf32> -> vector<8x32xf32>
    %c0_9 = arith.constant 0 : index
    %c0_10 = arith.constant 0 : index
    %12 = vector.load %arg5[%c0_9, %c0_10] : memref<1x32xf32, #tpu.memory_space<vmem>>, vector<1x32xf32>
    %13 = vector.broadcast %12 : vector<1x32xf32> to vector<8x32xf32>
    %14 = arith.addf %11, %13 : vector<8x32xf32>
    %15 = arith.addf %14, %0 : vector<8x32xf32>
    %cst_11 = arith.constant dense<0.000000e+00> : vector<8xf32>
    %16 = vector.multi_reduction <add>, %15, %cst_11 [1] : vector<8x32xf32> to vector<8xf32>
    %17 = vector.shape_cast %16 : vector<8xf32> to vector<8x1xf32>
    %cst_12 = arith.constant 3.200000e+01 : f32
    %18 = vector.broadcast %cst_12 : f32 to vector<8x1xf32>
    %19 = arith.divf %17, %18 : vector<8x1xf32>
    %20 = vector.broadcast %19 : vector<8x1xf32> to vector<8x32xf32>
    %21 = arith.subf %15, %20 : vector<8x32xf32>
    %22 = arith.mulf %21, %21 : vector<8x32xf32>
    %cst_13 = arith.constant dense<0.000000e+00> : vector<8xf32>
    %23 = vector.multi_reduction <add>, %22, %cst_13 [1] : vector<8x32xf32> to vector<8xf32>
    %24 = vector.shape_cast %23 : vector<8xf32> to vector<8x1xf32>
    %cst_14 = arith.constant 3.200000e+01 : f32
    %25 = vector.broadcast %cst_14 : f32 to vector<8x1xf32>
    %26 = arith.divf %24, %25 : vector<8x1xf32>
    %27 = vector.broadcast %19 : vector<8x1xf32> to vector<8x32xf32>
    %28 = arith.subf %15, %27 : vector<8x32xf32>
    %cst_15 = arith.constant 9.99999974E-6 : f32
    %29 = vector.broadcast %cst_15 : f32 to vector<8x1xf32>
    %30 = arith.addf %26, %29 : vector<8x1xf32>
    %31 = math.rsqrt %30 : vector<8x1xf32>
    %32 = vector.broadcast %31 : vector<8x1xf32> to vector<8x32xf32>
    %33 = arith.mulf %28, %32 : vector<8x32xf32>
    %c0_16 = arith.constant 0 : index
    %c0_17 = arith.constant 0 : index
    %34 = vector.load %arg6[%c0_16, %c0_17] : memref<1x32xf32, #tpu.memory_space<vmem>>, vector<1x32xf32>
    %35 = vector.broadcast %34 : vector<1x32xf32> to vector<8x32xf32>
    %36 = arith.mulf %33, %35 : vector<8x32xf32>
    %c0_18 = arith.constant 0 : index
    %c0_19 = arith.constant 0 : index
    %37 = vector.load %arg7[%c0_18, %c0_19] : memref<1x32xf32, #tpu.memory_space<vmem>>, vector<1x32xf32>
    %38 = vector.broadcast %37 : vector<1x32xf32> to vector<8x32xf32>
    %39 = arith.addf %36, %38 : vector<8x32xf32>
    %c0_20 = arith.constant 0 : index
    %c0_21 = arith.constant 0 : index
    %40 = vector.load %arg8[%c0_20, %c0_21] : memref<8x32xf32, #tpu.memory_space<vmem>>, vector<8x32xf32>
    tpu.vector_store %arg8[%c0_20, %c0_21], %39 {strides = array<i32>} : memref<8x32xf32, #tpu.memory_space<vmem>>, vector<8x32xf32>,
    return
  }
  func.func @transform_0(%arg0: i32) -> (i32, i32) {
    %c0_i32 = arith.constant 0 : i32
    %c0_i32_0 = arith.constant 0 : i32
    return %arg0, %c0_i32 : i32, i32
  }
  func.func @transform_1(%arg0: i32) -> (i32, i32) {
    %c0_i32 = arith.constant 0 : i32
    %c0_i32_0 = arith.constant 0 : i32
    %c0_i32_1 = arith.constant 0 : i32
    return %c0_i32, %c0_i32_0 : i32, i32
  }
  func.func @transform_2(%arg0: i32) -> (i32, i32) {
    %c0_i32 = arith.constant 0 : i32
    %c0_i32_0 = arith.constant 0 : i32
    %c0_i32_1 = arith.constant 0 : i32
    return %c0_i32, %c0_i32_0 : i32, i32
  }
  func.func @transform_3(%arg0: i32) -> (i32, i32) {
    %c0_i32 = arith.constant 0 : i32
    %c0_i32_0 = arith.constant 0 : i32
    %c0_i32_1 = arith.constant 0 : i32
    return %c0_i32, %c0_i32_0 : i32, i32
  }
  func.func @transform_4(%arg0: i32) -> (i32, i32) {
    %c0_i32 = arith.constant 0 : i32
    %c0_i32_0 = arith.constant 0 : i32
    %c0_i32_1 = arith.constant 0 : i32
    return %c0_i32, %c0_i32_0 : i32, i32
  }
  func.func @transform_5(%arg0: i32) -> (i32, i32) {
    %c0_i32 = arith.constant 0 : i32
    %c0_i32_0 = arith.constant 0 : i32
    %c0_i32_1 = arith.constant 0 : i32
    return %c0_i32, %c0_i32_0 : i32, i32
  }
  func.func @transform_6(%arg0: i32) -> (i32, i32) {
    %c0_i32 = arith.constant 0 : i32
    %c0_i32_0 = arith.constant 0 : i32
    %c0_i32_1 = arith.constant 0 : i32
    return %c0_i32, %c0_i32_0 : i32, i32
  }
  func.func @transform_7(%arg0: i32) -> (i32, i32) {
    %c0_i32 = arith.constant 0 : i32
    %c0_i32_0 = arith.constant 0 : i32
    return %arg0, %c0_i32 : i32, i32
  }
}

module attributes {stable_mosaic.version = 11 : i64} {
  func.func @_kv_proj_kernel(%arg0: i32, %arg1: memref<8x32xf32, #tpu.memory_space<vmem>>, %arg2: memref<32x64xbf16, #tpu.memory_space<vmem>>, %arg3: memref<1x64xf32, #tpu.memory_space<vmem>>, %arg4: memref<8x32xbf16, #tpu.memory_space<vmem>>, %arg5: memref<8x32xbf16, #tpu.memory_space<vmem>>) attributes {dimension_semantics = [#tpu.dimension_semantics<parallel>], iteration_bounds = array<i64: 2>, scalar_prefetch = 0 : i64, scratch_operands = 0 : i64, tpu.core_type = #tpu.core_type<tc>, window_params = [{transform_indices = @transform_0, window_bounds = array<i64: 8, 32>}, {pipeline_mode = #tpu.pipeline_mode<synchronous>, transform_indices = @transform_1, window_bounds = array<i64: 32, 64>}, {pipeline_mode = #tpu.pipeline_mode<synchronous>, transform_indices = @transform_2, window_bounds = array<i64: 1, 64>}, {transform_indices = @transform_3, window_bounds = array<i64: 8, 32>}, {transform_indices = @transform_4, window_bounds = array<i64: 8, 32>}]} {
    %c0 = arith.constant 0 : index
    %c0_0 = arith.constant 0 : index
    %0 = vector.load %arg1[%c0, %c0_0] : memref<8x32xf32, #tpu.memory_space<vmem>>, vector<8x32xf32>
    %1 = arith.truncf %0 : vector<8x32xf32> to vector<8x32xbf16>
    %c0_1 = arith.constant 0 : index
    %c0_2 = arith.constant 0 : index
    %2 = vector.load %arg2[%c0_1, %c0_2] : memref<32x64xbf16, #tpu.memory_space<vmem>>, vector<32x64xbf16>
    %cst = arith.constant dense<0.000000e+00> : vector<8x64xf32>
    %3 = tpu.matmul %1, %2, %cst {dimension_numbers = #tpu.dot_dimension_numbers<[1], [0], [0], [1], [0, 0, 1, 1], [], []>} : vector<8x32xbf16>, vector<32x64xbf16>, vector<8x64xf32> -> vector<8x64xf32>
    %c0_3 = arith.constant 0 : index
    %c0_4 = arith.constant 0 : index
    %4 = vector.load %arg3[%c0_3, %c0_4] : memref<1x64xf32, #tpu.memory_space<vmem>>, vector<1x64xf32>
    %5 = vector.broadcast %4 : vector<1x64xf32> to vector<8x64xf32>
    %6 = arith.addf %3, %5 : vector<8x64xf32>
    %7 = vector.extract_strided_slice %6 {offsets = [0, 0], sizes = [8, 32], strides = [1, 1]} : vector<8x64xf32> to vector<8x32xf32>
    %8 = arith.truncf %7 : vector<8x32xf32> to vector<8x32xbf16>
    %c0_5 = arith.constant 0 : index
    %c0_6 = arith.constant 0 : index
    %9 = vector.load %arg4[%c0_5, %c0_6] : memref<8x32xbf16, #tpu.memory_space<vmem>>, vector<8x32xbf16>
    tpu.vector_store %arg4[%c0_5, %c0_6], %8 {strides = array<i32>} : memref<8x32xbf16, #tpu.memory_space<vmem>>, vector<8x32xbf16>,
    %10 = vector.extract_strided_slice %6 {offsets = [0, 32], sizes = [8, 32], strides = [1, 1]} : vector<8x64xf32> to vector<8x32xf32>
    %11 = arith.truncf %10 : vector<8x32xf32> to vector<8x32xbf16>
    %c0_7 = arith.constant 0 : index
    %c0_8 = arith.constant 0 : index
    %12 = vector.load %arg5[%c0_7, %c0_8] : memref<8x32xbf16, #tpu.memory_space<vmem>>, vector<8x32xbf16>
    tpu.vector_store %arg5[%c0_7, %c0_8], %11 {strides = array<i32>} : memref<8x32xbf16, #tpu.memory_space<vmem>>, vector<8x32xbf16>,
    return
  }
  func.func @transform_0(%arg0: i32) -> (i32, i32) {
    %c0_i32 = arith.constant 0 : i32
    %c0_i32_0 = arith.constant 0 : i32
    return %arg0, %c0_i32 : i32, i32
  }
  func.func @transform_1(%arg0: i32) -> (i32, i32) {
    %c0_i32 = arith.constant 0 : i32
    %c0_i32_0 = arith.constant 0 : i32
    %c0_i32_1 = arith.constant 0 : i32
    return %c0_i32, %c0_i32_0 : i32, i32
  }
  func.func @transform_2(%arg0: i32) -> (i32, i32) {
    %c0_i32 = arith.constant 0 : i32
    %c0_i32_0 = arith.constant 0 : i32
    %c0_i32_1 = arith.constant 0 : i32
    return %c0_i32, %c0_i32_0 : i32, i32
  }
  func.func @transform_3(%arg0: i32) -> (i32, i32) {
    %c0_i32 = arith.constant 0 : i32
    %c0_i32_0 = arith.constant 0 : i32
    return %arg0, %c0_i32 : i32, i32
  }
  func.func @transform_4(%arg0: i32) -> (i32, i32) {
    %c0_i32 = arith.constant 0 : i32
    %c0_i32_0 = arith.constant 0 : i32
    return %arg0, %c0_i32 : i32, i32
  }
}

module attributes {stable_mosaic.version = 11 : i64} {
  func.func @_q_proj_kernel(%arg0: i32, %arg1: memref<8x32xf32, #tpu.memory_space<vmem>>, %arg2: memref<32x32xbf16, #tpu.memory_space<vmem>>, %arg3: memref<1x32xf32, #tpu.memory_space<vmem>>, %arg4: memref<8x32xbf16, #tpu.memory_space<vmem>>) attributes {dimension_semantics = [#tpu.dimension_semantics<parallel>], iteration_bounds = array<i64: 2>, scalar_prefetch = 0 : i64, scratch_operands = 0 : i64, tpu.core_type = #tpu.core_type<tc>, window_params = [{transform_indices = @transform_0, window_bounds = array<i64: 8, 32>}, {pipeline_mode = #tpu.pipeline_mode<synchronous>, transform_indices = @transform_1, window_bounds = array<i64: 32, 32>}, {pipeline_mode = #tpu.pipeline_mode<synchronous>, transform_indices = @transform_2, window_bounds = array<i64: 1, 32>}, {transform_indices = @transform_3, window_bounds = array<i64: 8, 32>}]} {
    %c0 = arith.constant 0 : index
    %c0_0 = arith.constant 0 : index
    %0 = vector.load %arg1[%c0, %c0_0] : memref<8x32xf32, #tpu.memory_space<vmem>>, vector<8x32xf32>
    %1 = arith.truncf %0 : vector<8x32xf32> to vector<8x32xbf16>
    %c0_1 = arith.constant 0 : index
    %c0_2 = arith.constant 0 : index
    %2 = vector.load %arg2[%c0_1, %c0_2] : memref<32x32xbf16, #tpu.memory_space<vmem>>, vector<32x32xbf16>
    %cst = arith.constant dense<0.000000e+00> : vector<8x32xf32>
    %3 = tpu.matmul %1, %2, %cst {dimension_numbers = #tpu.dot_dimension_numbers<[1], [0], [0], [1], [0, 0, 1, 1], [], []>} : vector<8x32xbf16>, vector<32x32xbf16>, vector<8x32xf32> -> vector<8x32xf32>
    %c0_3 = arith.constant 0 : index
    %c0_4 = arith.constant 0 : index
    %4 = vector.load %arg3[%c0_3, %c0_4] : memref<1x32xf32, #tpu.memory_space<vmem>>, vector<1x32xf32>
    %5 = vector.broadcast %4 : vector<1x32xf32> to vector<8x32xf32>
    %6 = arith.addf %3, %5 : vector<8x32xf32>
    %cst_5 = arith.constant 0.353553385 : f32
    %7 = vector.broadcast %cst_5 : f32 to vector<8x32xf32>
    %8 = arith.mulf %6, %7 : vector<8x32xf32>
    %9 = arith.truncf %8 : vector<8x32xf32> to vector<8x32xbf16>
    %c0_6 = arith.constant 0 : index
    %c0_7 = arith.constant 0 : index
    %10 = vector.load %arg4[%c0_6, %c0_7] : memref<8x32xbf16, #tpu.memory_space<vmem>>, vector<8x32xbf16>
    tpu.vector_store %arg4[%c0_6, %c0_7], %9 {strides = array<i32>} : memref<8x32xbf16, #tpu.memory_space<vmem>>, vector<8x32xbf16>,
    return
  }
  func.func @transform_0(%arg0: i32) -> (i32, i32) {
    %c0_i32 = arith.constant 0 : i32
    %c0_i32_0 = arith.constant 0 : i32
    return %arg0, %c0_i32 : i32, i32
  }
  func.func @transform_1(%arg0: i32) -> (i32, i32) {
    %c0_i32 = arith.constant 0 : i32
    %c0_i32_0 = arith.constant 0 : i32
    %c0_i32_1 = arith.constant 0 : i32
    return %c0_i32, %c0_i32_0 : i32, i32
  }
  func.func @transform_2(%arg0: i32) -> (i32, i32) {
    %c0_i32 = arith.constant 0 : i32
    %c0_i32_0 = arith.constant 0 : i32
    %c0_i32_1 = arith.constant 0 : i32
    return %c0_i32, %c0_i32_0 : i32, i32
  }
  func.func @transform_3(%arg0: i32) -> (i32, i32) {
    %c0_i32 = arith.constant 0 : i32
    %c0_i32_0 = arith.constant 0 : i32
    return %arg0, %c0_i32 : i32, i32
  }
}

module attributes {stable_mosaic.version = 11 : i64} {
  func.func @_softmax_stats_kernel(%arg0: i32, %arg1: i32, %arg2: memref<8x32xf32, #tpu.memory_space<vmem>>, %arg3: memref<32x11xbf16, #tpu.memory_space<vmem>>, %arg4: memref<8x1xf32, #tpu.memory_space<vmem>>, %arg5: memref<8x1xf32, #tpu.memory_space<vmem>>, %arg6: memref<8x1xf32, #tpu.memory_space<vmem>>, %arg7: memref<8x1xf32, #tpu.memory_space<vmem>>) attributes {dimension_semantics = [#tpu.dimension_semantics<parallel>, #tpu.dimension_semantics<arbitrary>], iteration_bounds = array<i64: 2, 1>, scalar_prefetch = 0 : i64, scratch_operands = 2 : i64, tpu.core_type = #tpu.core_type<tc>, window_params = [{transform_indices = @transform_0, window_bounds = array<i64: 8, 32>}, {transform_indices = @transform_1, window_bounds = array<i64: 32, 11>}, {transform_indices = @transform_2, window_bounds = array<i64: 8, 1>}, {transform_indices = @transform_3, window_bounds = array<i64: 8, 1>}]} {
    %c0_i32 = arith.constant 0 : i32
    %0 = arith.cmpi eq, %arg1, %c0_i32 : i32
    %1 = arith.extui %0 : i1 to i32
    %c0_i32_0 = arith.constant 0 : i32
    %2 = arith.cmpi ne, %1, %c0_i32_0 : i32
    scf.if %2 {
      %cst_16 = arith.constant 0xFF800000 : f32
      %26 = vector.broadcast %cst_16 : f32 to vector<8x1xf32>
      %c0_17 = arith.constant 0 : index
      %c0_18 = arith.constant 0 : index
      %27 = vector.load %arg6[%c0_17, %c0_18] : memref<8x1xf32, #tpu.memory_space<vmem>>, vector<8x1xf32>
      tpu.vector_store %arg6[%c0_17, %c0_18], %26 {strides = array<i32>} : memref<8x1xf32, #tpu.memory_space<vmem>>, vector<8x1xf32>,
      %cst_19 = arith.constant 0.000000e+00 : f32
      %28 = vector.broadcast %cst_19 : f32 to vector<8x1xf32>
      %c0_20 = arith.constant 0 : index
      %c0_21 = arith.constant 0 : index
      %29 = vector.load %arg7[%c0_20, %c0_21] : memref<8x1xf32, #tpu.memory_space<vmem>>, vector<8x1xf32>
      tpu.vector_store %arg7[%c0_20, %c0_21], %28 {strides = array<i32>} : memref<8x1xf32, #tpu.memory_space<vmem>>, vector<8x1xf32>,
    } else {
    }
    %c0 = arith.constant 0 : index
    %c0_1 = arith.constant 0 : index
    %3 = vector.load %arg2[%c0, %c0_1] : memref<8x32xf32, #tpu.memory_space<vmem>>, vector<8x32xf32>
    %4 = arith.truncf %3 : vector<8x32xf32> to vector<8x32xbf16>
    %c0_2 = arith.constant 0 : index
    %c0_3 = arith.constant 0 : index
    %5 = vector.load %arg3[%c0_2, %c0_3] : memref<32x11xbf16, #tpu.memory_space<vmem>>, vector<32x11xbf16>
    %cst = arith.constant dense<0.000000e+00> : vector<8x11xf32>
    %6 = tpu.matmul %4, %5, %cst {dimension_numbers = #tpu.dot_dimension_numbers<[1], [0], [0], [1], [0, 0, 1, 1], [], []>} : vector<8x32xbf16>, vector<32x11xbf16>, vector<8x11xf32> -> vector<8x11xf32>
    %c0_4 = arith.constant 0 : index
    %c0_5 = arith.constant 0 : index
    %7 = vector.load %arg6[%c0_4, %c0_5] : memref<8x1xf32, #tpu.memory_space<vmem>>, vector<8x1xf32>
    %cst_6 = arith.constant dense<0xFF800000> : vector<8xf32>
    %8 = vector.multi_reduction <maximumf>, %6, %cst_6 [1] : vector<8x11xf32> to vector<8xf32>
    %9 = vector.shape_cast %8 : vector<8xf32> to vector<8x1xf32>
    %10 = arith.maximumf %7, %9 : vector<8x1xf32>
    %11 = arith.subf %7, %10 : vector<8x1xf32>
    %12 = math.exp %11 : vector<8x1xf32>
    %c0_7 = arith.constant 0 : index
    %c0_8 = arith.constant 0 : index
    %13 = vector.load %arg7[%c0_7, %c0_8] : memref<8x1xf32, #tpu.memory_space<vmem>>, vector<8x1xf32>
    %14 = arith.mulf %12, %13 : vector<8x1xf32>
    %15 = vector.broadcast %10 : vector<8x1xf32> to vector<8x11xf32>
    %16 = arith.subf %6, %15 : vector<8x11xf32>
    %17 = math.exp %16 : vector<8x11xf32>
    %cst_9 = arith.constant dense<0.000000e+00> : vector<8xf32>
    %18 = vector.multi_reduction <add>, %17, %cst_9 [1] : vector<8x11xf32> to vector<8xf32>
    %19 = vector.shape_cast %18 : vector<8xf32> to vector<8x1xf32>
    %20 = arith.addf %14, %19 : vector<8x1xf32>
    %c0_10 = arith.constant 0 : index
    %c0_11 = arith.constant 0 : index
    %21 = vector.load %arg7[%c0_10, %c0_11] : memref<8x1xf32, #tpu.memory_space<vmem>>, vector<8x1xf32>
    tpu.vector_store %arg7[%c0_10, %c0_11], %20 {strides = array<i32>} : memref<8x1xf32, #tpu.memory_space<vmem>>, vector<8x1xf32>,
    %c0_12 = arith.constant 0 : index
    %c0_13 = arith.constant 0 : index
    %22 = vector.load %arg6[%c0_12, %c0_13] : memref<8x1xf32, #tpu.memory_space<vmem>>, vector<8x1xf32>
    tpu.vector_store %arg6[%c0_12, %c0_13], %10 {strides = array<i32>} : memref<8x1xf32, #tpu.memory_space<vmem>>, vector<8x1xf32>,
    %c0_i32_14 = arith.constant 0 : i32
    %23 = arith.cmpi eq, %arg1, %c0_i32_14 : i32
    %24 = arith.extui %23 : i1 to i32
    %c0_i32_15 = arith.constant 0 : i32
    %25 = arith.cmpi ne, %24, %c0_i32_15 : i32
    scf.if %25 {
      %c0_16 = arith.constant 0 : index
      %c0_17 = arith.constant 0 : index
      %26 = vector.load %arg6[%c0_16, %c0_17] : memref<8x1xf32, #tpu.memory_space<vmem>>, vector<8x1xf32>
      %c0_18 = arith.constant 0 : index
      %c0_19 = arith.constant 0 : index
      %27 = vector.load %arg4[%c0_18, %c0_19] : memref<8x1xf32, #tpu.memory_space<vmem>>, vector<8x1xf32>
      tpu.vector_store %arg4[%c0_18, %c0_19], %26 {strides = array<i32>} : memref<8x1xf32, #tpu.memory_space<vmem>>, vector<8x1xf32>,
      %c0_20 = arith.constant 0 : index
      %c0_21 = arith.constant 0 : index
      %28 = vector.load %arg7[%c0_20, %c0_21] : memref<8x1xf32, #tpu.memory_space<vmem>>, vector<8x1xf32>
      %cst_22 = arith.constant 1.000000e+00 : f32
      %29 = vector.broadcast %cst_22 : f32 to vector<8x1xf32>
      %30 = arith.divf %29, %28 : vector<8x1xf32>
      %c0_23 = arith.constant 0 : index
      %c0_24 = arith.constant 0 : index
      %31 = vector.load %arg5[%c0_23, %c0_24] : memref<8x1xf32, #tpu.memory_space<vmem>>, vector<8x1xf32>
      tpu.vector_store %arg5[%c0_23, %c0_24], %30 {strides = array<i32>} : memref<8x1xf32, #tpu.memory_space<vmem>>, vector<8x1xf32>,
    } else {
    }
    return
  }
  func.func @transform_0(%arg0: i32, %arg1: i32) -> (i32, i32) {
    %c0_i32 = arith.constant 0 : i32
    %c0_i32_0 = arith.constant 0 : i32
    return %arg0, %c0_i32 : i32, i32
  }
  func.func @transform_1(%arg0: i32, %arg1: i32) -> (i32, i32) {
    %c0_i32 = arith.constant 0 : i32
    %c0_i32_0 = arith.constant 0 : i32
    return %c0_i32, %arg1 : i32, i32
  }
  func.func @transform_2(%arg0: i32, %arg1: i32) -> (i32, i32) {
    %c0_i32 = arith.constant 0 : i32
    %c0_i32_0 = arith.constant 0 : i32
    return %arg0, %c0_i32 : i32, i32
  }
  func.func @transform_3(%arg0: i32, %arg1: i32) -> (i32, i32) {
    %c0_i32 = arith.constant 0 : i32
    %c0_i32_0 = arith.constant 0 : i32
    return %arg0, %c0_i32 : i32, i32
  }
}

module attributes {stable_mosaic.version = 11 : i64} {
  func.func @_softmax_emit_kernel(%arg0: i32, %arg1: i32, %arg2: memref<8x32xf32, #tpu.memory_space<vmem>>, %arg3: memref<32x11xbf16, #tpu.memory_space<vmem>>, %arg4: memref<8x1xf32, #tpu.memory_space<vmem>>, %arg5: memref<8x1xf32, #tpu.memory_space<vmem>>, %arg6: memref<8x11xf32, #tpu.memory_space<vmem>>) attributes {dimension_semantics = [#tpu.dimension_semantics<parallel>, #tpu.dimension_semantics<parallel>], iteration_bounds = array<i64: 2, 1>, scalar_prefetch = 0 : i64, scratch_operands = 0 : i64, tpu.core_type = #tpu.core_type<tc>, window_params = [{transform_indices = @transform_0, window_bounds = array<i64: 8, 32>}, {transform_indices = @transform_1, window_bounds = array<i64: 32, 11>}, {transform_indices = @transform_2, window_bounds = array<i64: 8, 1>}, {transform_indices = @transform_3, window_bounds = array<i64: 8, 1>}, {transform_indices = @transform_4, window_bounds = array<i64: 8, 11>}]} {
    %c0 = arith.constant 0 : index
    %c0_0 = arith.constant 0 : index
    %0 = vector.load %arg2[%c0, %c0_0] : memref<8x32xf32, #tpu.memory_space<vmem>>, vector<8x32xf32>
    %1 = arith.truncf %0 : vector<8x32xf32> to vector<8x32xbf16>
    %c0_1 = arith.constant 0 : index
    %c0_2 = arith.constant 0 : index
    %2 = vector.load %arg3[%c0_1, %c0_2] : memref<32x11xbf16, #tpu.memory_space<vmem>>, vector<32x11xbf16>
    %cst = arith.constant dense<0.000000e+00> : vector<8x11xf32>
    %3 = tpu.matmul %1, %2, %cst {dimension_numbers = #tpu.dot_dimension_numbers<[1], [0], [0], [1], [0, 0, 1, 1], [], []>} : vector<8x32xbf16>, vector<32x11xbf16>, vector<8x11xf32> -> vector<8x11xf32>
    %c0_3 = arith.constant 0 : index
    %c0_4 = arith.constant 0 : index
    %4 = vector.load %arg4[%c0_3, %c0_4] : memref<8x1xf32, #tpu.memory_space<vmem>>, vector<8x1xf32>
    %5 = vector.broadcast %4 : vector<8x1xf32> to vector<8x11xf32>
    %6 = arith.subf %3, %5 : vector<8x11xf32>
    %7 = math.exp %6 : vector<8x11xf32>
    %c0_5 = arith.constant 0 : index
    %c0_6 = arith.constant 0 : index
    %8 = vector.load %arg5[%c0_5, %c0_6] : memref<8x1xf32, #tpu.memory_space<vmem>>, vector<8x1xf32>
    %9 = vector.broadcast %8 : vector<8x1xf32> to vector<8x11xf32>
    %10 = arith.mulf %7, %9 : vector<8x11xf32>
    %c0_7 = arith.constant 0 : index
    %c0_8 = arith.constant 0 : index
    %11 = vector.load %arg6[%c0_7, %c0_8] : memref<8x11xf32, #tpu.memory_space<vmem>>, vector<8x11xf32>
    tpu.vector_store %arg6[%c0_7, %c0_8], %10 {strides = array<i32>} : memref<8x11xf32, #tpu.memory_space<vmem>>, vector<8x11xf32>,
    return
  }
  func.func @transform_0(%arg0: i32, %arg1: i32) -> (i32, i32) {
    %c0_i32 = arith.constant 0 : i32
    %c0_i32_0 = arith.constant 0 : i32
    return %arg0, %c0_i32 : i32, i32
  }
  func.func @transform_1(%arg0: i32, %arg1: i32) -> (i32, i32) {
    %c0_i32 = arith.constant 0 : i32
    %c0_i32_0 = arith.constant 0 : i32
    return %c0_i32, %arg1 : i32, i32
  }
  func.func @transform_2(%arg0: i32, %arg1: i32) -> (i32, i32) {
    %c0_i32 = arith.constant 0 : i32
    %c0_i32_0 = arith.constant 0 : i32
    return %arg0, %c0_i32 : i32, i32
  }
  func.func @transform_3(%arg0: i32, %arg1: i32) -> (i32, i32) {
    %c0_i32 = arith.constant 0 : i32
    %c0_i32_0 = arith.constant 0 : i32
    return %arg0, %c0_i32 : i32, i32
  }
  func.func @transform_4(%arg0: i32, %arg1: i32) -> (i32, i32) {
    %c0_i32 = arith.constant 0 : i32
    return %arg0, %arg1 : i32, i32
  }
}

</mosaic_0001>

<llo_original>
// kernel: transformer_forward.26
$region0: #{transformer_forward.26}
  #allocation0 [shape = 'u32[]', space=smem, size = 0x4, offset = 0x4, fixed_abs, tag = 'smem constant byte address 0x4 - core index']
  #allocation1 [shape = 'u32[144,128]{1,0:T(1,128)}', space=vmem, size = 0x12000, scoped, tag = 'internal scratch']
  %s0 = inlined_call_operand.vmem [shape: f32[16,32], index: 0, kind: input, shape index: {}]
  %s1 = inlined_call_operand.vmem [shape: bf16[32,96], index: 1, kind: input, shape index: {}]
  %s2 = inlined_call_operand.vmem [shape: f32[1,96], index: 2, kind: input, shape index: {}]
  %s3 = inlined_call_operand.vmem [shape: bf16[16,32], index: 3, kind: output, shape index: {0}]
  %s4 = inlined_call_operand.vmem [shape: bf16[16,32], index: 4, kind: output, shape index: {1}]
  %s5 = inlined_call_operand.vmem [shape: bf16[16,32], index: 5, kind: output, shape index: {2}]
  %6 = xla_tuple %s3, %s4, %s5
  %s7 = sld [smem:[#allocation0]]
  $region61: #{transformer_forward.26} parent=0
    _
  %s9 = ssub.s32 1, %s7
  %s10 = scalar_select 0, %s9, %s7
  loop: start=0, step=1, limit=4
  $region2: #{transformer_forward.26} parent=0 // loop_pre_header
    _
  $region3: #{transformer_forward.26} parent=0 // loop_header
    %s12 = sphi 0, %s16
    %p13 = scmp.ge.s32.totalorder %s12, 4
    %s22 = sphi 0, %s24
    %s25 = sphi 0, %s22
    %s26 = sphi 0, %s25
    %s42 = sphi 0, %s26
    %s46 = sphi 0, %s46
    %s48 = sphi 0, %s46
    %s49 = sphi 0, %s48
    %s63 = sphi 0, %s49
    %s67 = sphi 0, %s67
    %s69 = sphi 0, %s67
    %s70 = sphi 0, %s69
    %s84 = sphi 0, %s70
    %s90 = sphi 0, %s92
    %s93 = sphi 0, %s90
    %s94 = sphi 0, %s93
    %s110 = sphi 0, %s94
    %s116 = sphi 0, %s118
    %s119 = sphi 0, %s116
    %s120 = sphi 0, %s119
    %s136 = sphi 0, %s120
    %s142 = sphi 0, %s144
    %s145 = sphi 0, %s142
    %s146 = sphi 0, %s145
    %s162 = sphi 0, %s146
  $region4: #{transformer_forward.26} parent=0 // loop_header_branch
    %15 = sbr.rel (%p13) target = $region8
  $region5: #{transformer_forward.26} parent=0 // loop_body
    %s17 = ssub.s32 %s12, 1
    %s18 = ssub.s32 %s12, 2
    %s19 = sadd.s32 %s12, 1
    %s20 = ssub.s32 %s12, %s19
    %p21 = scmp.eq.s32.totalorder %s20, 0
    %s23 = sadd.s32 %s22, 1
    %s24 = scalar_select %p21, %s22, %s23
    %p27 = pneg %p21
    %p28 = scmp.eq.s32.totalorder %s12, 1
    %p29 = por %p27, %p28
    %p30 = scmp.ne.s32.totalorder %s22, %s25
    %p31 = scmp.eq.s32.totalorder %s12, 0
    %p32 = por %p30, %p31
    %p33 = scmp.ne.s32.totalorder %s22, %s25
    %p34 = scmp.eq.s32.totalorder %s17, 1
    %p35 = por %p33, %p34
    %p36 = scmp.ne.s32.totalorder %s25, %s26
    %p37 = scmp.eq.s32.totalorder %s17, 0
    %p38 = por %p36, %p37
    %p39 = scmp.ne.s32.totalorder %s25, %s26
    %p40 = scmp.eq.s32.totalorder %s18, 1
    %p41 = por %p39, %p40
    %p43 = scmp.ne.s32.totalorder %s26, %s42
    %p44 = scmp.eq.s32.totalorder %s18, 0
    %p45 = por %p43, %p44
    %s47 = sadd.s32 %s46, 1
    %p50 = scmp.eq.s32.totalorder %s12, 1
    %p51 = scmp.ne.s32.totalorder %s46, %s48
    %p52 = scmp.eq.s32.totalorder %s12, 0
    %p53 = por %p51, %p52
    %p54 = scmp.ne.s32.totalorder %s46, %s48
    %p55 = scmp.eq.s32.totalorder %s17, 1
    %p56 = por %p54, %p55
    %p57 = scmp.ne.s32.totalorder %s48, %s49
    %p58 = scmp.eq.s32.totalorder %s17, 0
    %p59 = por %p57, %p58
    %p60 = scmp.ne.s32.totalorder %s48, %s49
    %p61 = scmp.eq.s32.totalorder %s18, 1
    %p62 = por %p60, %p61
    %p64 = scmp.ne.s32.totalorder %s49, %s63
    %p65 = scmp.eq.s32.totalorder %s18, 0
    %p66 = por %p64, %p65
    %s68 = sadd.s32 %s67, 1
    %p71 = scmp.eq.s32.totalorder %s12, 1
    %p72 = scmp.ne.s32.totalorder %s67, %s69
    %p73 = scmp.eq.s32.totalorder %s12, 0
    %p74 = por %p72, %p73
    %p75 = scmp.ne.s32.totalorder %s67, %s69
    %p76 = scmp.eq.s32.totalorder %s17, 1
    %p77 = por %p75, %p76
    %p78 = scmp.ne.s32.totalorder %s69, %s70
    %p79 = scmp.eq.s32.totalorder %s17, 0
    %p80 = por %p78, %p79
    %p81 = scmp.ne.s32.totalorder %s69, %s70
    %p82 = scmp.eq.s32.totalorder %s18, 1
    %p83 = por %p81, %p82
    %p85 = scmp.ne.s32.totalorder %s70, %s84
    %p86 = scmp.eq.s32.totalorder %s18, 0
    %p87 = por %p85, %p86
    %s88 = ssub.s32 %s12, %s19
    %p89 = scmp.eq.s32.totalorder %s88, 0
    %s91 = sadd.s32 %s90, 1
    %s92 = scalar_select %p89, %s90, %s91
    %p95 = pneg %p89
    %p96 = scmp.eq.s32.totalorder %s12, 1
    %p97 = por %p95, %p96
    %p98 = scmp.ne.s32.totalorder %s90, %s93
    %p99 = scmp.eq.s32.totalorder %s12, 0
    %p100 = por %p98, %p99
    %p101 = scmp.ne.s32.totalorder %s90, %s93
    %p102 = scmp.eq.s32.totalorder %s17, 1
    %p103 = por %p101, %p102
    %p104 = scmp.ne.s32.totalorder %s93, %s94
    %p105 = scmp.eq.s32.totalorder %s17, 0
    %p106 = por %p104, %p105
    %p107 = scmp.ne.s32.totalorder %s93, %s94
    %p108 = scmp.eq.s32.totalorder %s18, 1
    %p109 = por %p107, %p108
    %p111 = scmp.ne.s32.totalorder %s94, %s110
    %p112 = scmp.eq.s32.totalorder %s18, 0
    %p113 = por %p111, %p112
    %s114 = ssub.s32 %s12, %s19
    %p115 = scmp.eq.s32.totalorder %s114, 0
    %s117 = sadd.s32 %s116, 1
    %s118 = scalar_select %p115, %s116, %s117
    %p121 = pneg %p115
    %p122 = scmp.eq.s32.totalorder %s12, 1
    %p123 = por %p121, %p122
    %p124 = scmp.ne.s32.totalorder %s116, %s119
    %p125 = scmp.eq.s32.totalorder %s12, 0
    %p126 = por %p124, %p125
    %p127 = scmp.ne.s32.totalorder %s116, %s119
    %p128 = scmp.eq.s32.totalorder %s17, 1
    %p129 = por %p127, %p128
    %p130 = scmp.ne.s32.totalorder %s119, %s120
    %p131 = scmp.eq.s32.totalorder %s17, 0
    %p132 = por %p130, %p131
    %p133 = scmp.ne.s32.totalorder %s119, %s120
    %p134 = scmp.eq.s32.totalorder %s18, 1
    %p135 = por %p133, %p134
    %p137 = scmp.ne.s32.totalorder %s120, %s136
    %p138 = scmp.eq.s32.totalorder %s18, 0
    %p139 = por %p137, %p138
    %s140 = ssub.s32 %s12, %s19
    %p141 = scmp.eq.s32.totalorder %s140, 0
    %s143 = sadd.s32 %s142, 1
    %s144 = scalar_select %p141, %s142, %s143
    %p147 = pneg %p141
    %p148 = scmp.eq.s32.totalorder %s12, 1
    %p149 = por %p147, %p148
    %p150 = scmp.ne.s32.totalorder %s142, %s145
    %p151 = scmp.eq.s32.totalorder %s12, 0
    %p152 = por %p150, %p151
    %p153 = scmp.ne.s32.totalorder %s142, %s145
    %p154 = scmp.eq.s32.totalorder %s17, 1
    %p155 = por %p153, %p154
    %p156 = scmp.ne.s32.totalorder %s145, %s146
    %p157 = scmp.eq.s32.totalorder %s17, 0
    %p158 = por %p156, %p157
    %p159 = scmp.ne.s32.totalorder %s145, %s146
    %p160 = scmp.eq.s32.totalorder %s18, 1
    %p161 = por %p159, %p160
    %p163 = scmp.ne.s32.totalorder %s146, %s162
    %p164 = scmp.eq.s32.totalorder %s18, 0
    %p165 = por %p163, %p164
    %p166 = scmp.le.s32.totalorder 1, %s12
    %p167 = scmp.lt.s32.totalorder %s12, 3
    %p168 = pnand %p166, %p167
    %p169 = pneg %p168
    // Predicated region
    $region9: #{transformer_forward.26} parent=5 // pred_check
      _
    $region10: #{transformer_forward.26} parent=5 // pred_check_branch
      %171 = sbr.rel (%p168) target = $region12
    $region11: #{transformer_forward.26} parent=5 // pred_region
      %s172 = ssub.s32 %s12, 1
      // Predicated region
      $region13: #{transformer_forward.26} parent=11 // pred_check
        %p173 = pneg %p59
      $region14: #{transformer_forward.26} parent=11 // pred_check_branch
        %175 = sbr.rel (%p173) target = $region16
      $region15: #{transformer_forward.26} parent=11 // pred_region
        _
      $region16: #{transformer_forward.26} parent=11 // pred_fallthru
        _
      // Predicated region
      $region17: #{transformer_forward.26} parent=11 // pred_check
        %p176 = pneg %p80
      $region18: #{transformer_forward.26} parent=11 // pred_check_branch
        %178 = sbr.rel (%p176) target = $region20
      $region19: #{transformer_forward.26} parent=11 // pred_region
        _
      $region20: #{transformer_forward.26} parent=11 // pred_fallthru
        _
    $region12: #{transformer_forward.26} parent=5 // pred_fallthru
      _
    %p179 = scmp.lt.s32.totalorder %s12, 2
    // Predicated region
    $region21: #{transformer_forward.26} parent=5 // pred_check
      %p180 = pneg %p179
    $region22: #{transformer_forward.26} parent=5 // pred_check_branch
      %182 = sbr.rel (%p180) target = $region24
    $region23: #{transformer_forward.26} parent=5 // pred_region
      // Predicated region
      $region25: #{transformer_forward.26} parent=23 // pred_check
        %p183 = pneg %p32
      $region26: #{transformer_forward.26} parent=23 // pred_check_branch
        %185 = sbr.rel (%p183) target = $region28
      $region27: #{transformer_forward.26} parent=23 // pred_region
        %p186 = scmp.lt.s32.totalorder %s12, 1
        %s187 = scalar_select %p186, %s12, 1
        %s188 = smul.addr %s187, 8
        %s189 = scalar_lea.vmem %s0, %s188
      $region28: #{transformer_forward.26} parent=23 // pred_fallthru
        _
    $region24: #{transformer_forward.26} parent=5 // pred_fallthru
      _
    %p190 = scmp.le.s32.totalorder 1, %s12
    %p191 = scmp.lt.s32.totalorder %s12, 3
    %p192 = pnand %p190, %p191
    %p193 = pneg %p192
    // Predicated region
    $region29: #{transformer_forward.26} parent=5 // pred_check
      _
    $region30: #{transformer_forward.26} parent=5 // pred_check_branch
      %195 = sbr.rel (%p192) target = $region32
    $region31: #{transformer_forward.26} parent=5 // pred_region
      %s196 = ssub.s32 %s12, 1
      %p197 = scmp.lt.s32.totalorder %s17, 1
      %s198 = scalar_select %p197, %s17, 1
      %s199 = smul.addr %s198, 8
      %s200 = scalar_lea.vmem %s0, %s199
      %p201 = pneg %p38
      %p202 = pneg %p35
      %p203 = pneg %p59
      %p204 = pneg %p56
      %p205 = pneg %p80
      %p206 = pneg %p77
      %p207 = pneg %p106
      %p208 = pneg %p103
      %p209 = scmp.lt.s32.totalorder %s17, 1
      %s210 = scalar_select %p209, %s17, 1
      %s211 = smul.addr %s210, 4
      %s212 = scalar_lea.vmem %s3, %s211
      %p213 = pneg %p132
      %p214 = pneg %p129
      %p215 = scmp.lt.s32.totalorder %s17, 1
      %s216 = scalar_select %p215, %s17, 1
      %s217 = smul.addr %s216, 4
      %s218 = scalar_lea.vmem %s4, %s217
      %p219 = pneg %p158
      %p220 = pneg %p155
      %p221 = scmp.lt.s32.totalorder %s17, 1
      %s222 = scalar_select %p221, %s17, 1
      %s223 = smul.addr %s222, 4
      %s224 = scalar_lea.vmem %s5, %s223
      %p225 = scmp.lt.s32.totalorder %s17, 1
      %s226 = scalar_select %p225, %s17, 1
      %s227 = smul.addr %s226, 8
      %s228 = scalar_lea.vmem %s0, %s227
      %p229 = scmp.lt.s32.totalorder %s17, 1
      %s230 = scalar_select %p229, %s17, 1
      %s231 = smul.addr %s230, 4
      %s232 = scalar_lea.vmem %s3, %s231
      %p233 = scmp.lt.s32.totalorder %s17, 1
      %s234 = scalar_select %p233, %s17, 1
      %s235 = smul.addr %s234, 4
      %s236 = scalar_lea.vmem %s4, %s235
      %p237 = scmp.lt.s32.totalorder %s17, 1
      %s238 = scalar_select %p237, %s17, 1
      %s239 = smul.addr %s238, 4
      %s240 = scalar_lea.vmem %s5, %s239
      %v242 = vld [vmem:[%s228] sm:$0xff]
      %v243 = vpack.c.bf16 %v242, %v242
      %v244 = vld [vmem:[%s1] sm:$0xf]
      %v245 = vld [vmem:[%s1 + $0x4] sm:$0xf]
      %v246 = vld [vmem:[%s1 + $0x8] sm:$0xf]
      %v247 = vld [vmem:[%s1 + $0xc] sm:$0xf]
      %v248 = vld [vmem:[%s2] sm:$0x1]
      %v250 = vlaneseq
      %v251 = vshrl.u32 %v250, 7
      %v252 = vsub.s32 0, %v251
      %v253 = vrot.slane %v248, %v252
      %v259 = vunpack.c.l.b16 %v244
      %v260 = vunpack.c.l.b16 %v245
      %v261 = vunpack.c.l.b16 %v246
      %v262 = vunpack.c.l.b16 %v247
      %v263 = vpack.c.b16 %v260, %v259
      %v264 = vpack.c.b16 %v262, %v261
      %vm267 = vcmask 261120
      %v269 = vsel %vm267, %v243, 0
      %271 = vmatprep.subr.bf16.mxu0 0
      %272 = vmatpush1.bf16.msra.mxu0 0
      %273 = vmatprep.subr.bf16.mxu0 0
      %274 = vmatpush1.bf16.msra.mxu0 0
      %275 = vmatprep.subr.bf16.mxu0 0
      %276 = vmatpush1.bf16.msra.mxu0 0
      %277 = vmatprep.subr.bf16.mxu0 0
      %278 = vmatpush1.bf16.msra.mxu0 0
      %279 = vmatprep.subr.bf16.mxu0 0
      %280 = vmatpush1.bf16.msra.mxu0 0
      %281 = vmatprep.subr.bf16.mxu0 0
      %282 = vmatpush1.bf16.msra.mxu0 0
      %283 = vmatprep.subr.bf16.mxu0 0
      %284 = vmatpush1.bf16.msra.mxu0 %v264
      %285 = vmatprep.subr.bf16.mxu0 0
      %286 = vmatpush1.bf16.msra.mxu0 %v263
      %287 = vmatprep.subr.bf16.mxu0 0
      %288 = vmatpush2.bf16.msra.mxu0 0
      %289 = vmatprep.subr.bf16.mxu0 0
      %290 = vmatpush2.bf16.msra.mxu0 0
      %291 = vmatprep.subr.bf16.mxu0 0
      %292 = vmatpush2.bf16.msra.mxu0 0
      %293 = vmatprep.subr.bf16.mxu0 0
      %294 = vmatpush2.bf16.msra.mxu0 0
      %295 = vmatprep.subr.bf16.mxu0 0
      %296 = vmatpush2.bf16.msra.mxu0 0
      %297 = vmatprep.subr.bf16.mxu0 0
      %298 = vmatpush2.bf16.msra.mxu0 0
      %299 = vmatprep.subr.bf16.mxu0 0
      %300 = vmatpush2.bf16.msra.mxu0 0
      %301 = vmatprep.subr.bf16.mxu0 0
      %302 = vmatpush2.bf16.msra.mxu0 0
      %303 = vmatprep.mubr.bf16.mxu0 0
      %304 = vmatmul.mubr.bf16.gmra.mxu0 %v269
      %v305 = vpop.f32.mrf.mxu0
      %v306 = vadd.f32 %v253, %v305
      %v307 = vpop.f32.mrf.mxu0
      %v308 = vpop.f32.mrf.mxu0
      %v309 = vpop.f32.mrf.mxu0
      %310 = vdwg.mxu0
      %v311 = vmul.f32 %v306, 0.35355338
      %v312 = vpack.c.bf16 %v311, %v311
      %vm313 = vcmask 257024
      %314 = vst.msk [vmem:[%s232] sm:$0xf] %vm313, %v312
      %v315 = vpack.c.bf16 %v306, %v306
      %v317 = vunpack.c.l.b16 %v315
      %v318 = vpack.c.b16 %v317, %v317
      %319 = vrot.lane.b32.xlu0 %v318, 96
      %v320 = vpop.permute.xlu0 %319
      %322 = vst.msk [vmem:[%s236] sm:$0xf] %vm313, %v320
      %323 = vrot.lane.b32.xlu0 %v318, 64
      %v324 = vpop.permute.xlu0 %323
      %326 = vst.msk [vmem:[%s240] sm:$0xf] %vm313, %v324
      %p327 = scmp.lt.s32.totalorder %s17, 1
      %s328 = scalar_select %p327, %s17, 1
      %s329 = smul.addr %s328, 4
      %s330 = scalar_lea.vmem %s3, %s329
      %p331 = scmp.lt.s32.totalorder %s17, 1
      %s332 = scalar_select %p331, %s17, 1
      %s333 = smul.addr %s332, 4
      %s334 = scalar_lea.vmem %s4, %s333
      %p335 = scmp.lt.s32.totalorder %s17, 1
      %s336 = scalar_select %p335, %s17, 1
      %s337 = smul.addr %s336, 4
      %s338 = scalar_lea.vmem %s5, %s337
      // Predicated region
      $region33: #{transformer_forward.26} parent=31 // pred_check
        %p339 = pneg %p103
      $region34: #{transformer_forward.26} parent=31 // pred_check_branch
        %341 = sbr.rel (%p339) target = $region36
      $region35: #{transformer_forward.26} parent=31 // pred_region
        _
      $region36: #{transformer_forward.26} parent=31 // pred_fallthru
        _
      // Predicated region
      $region37: #{transformer_forward.26} parent=31 // pred_check
        %p342 = pneg %p129
      $region38: #{transformer_forward.26} parent=31 // pred_check_branch
        %344 = sbr.rel (%p342) target = $region40
      $region39: #{transformer_forward.26} parent=31 // pred_region
        _
      $region40: #{transformer_forward.26} parent=31 // pred_fallthru
        _
      // Predicated region
      $region41: #{transformer_forward.26} parent=31 // pred_check
        %p345 = pneg %p155
      $region42: #{transformer_forward.26} parent=31 // pred_check_branch
        %347 = sbr.rel (%p345) target = $region44
      $region43: #{transformer_forward.26} parent=31 // pred_region
        _
      $region44: #{transformer_forward.26} parent=31 // pred_fallthru
        _
    $region32: #{transformer_forward.26} parent=5 // pred_fallthru
      _
    %p348 = scmp.le.s32.totalorder 2, %s12
    // Predicated region
    $region45: #{transformer_forward.26} parent=5 // pred_check
      %p349 = pneg %p348
    $region46: #{transformer_forward.26} parent=5 // pred_check_branch
      %351 = sbr.rel (%p349) target = $region48
    $region47: #{transformer_forward.26} parent=5 // pred_region
      %s352 = ssub.s32 %s12, 2
      // Predicated region
      $region49: #{transformer_forward.26} parent=47 // pred_check
        %p353 = pneg %p109
      $region50: #{transformer_forward.26} parent=47 // pred_check_branch
        %355 = sbr.rel (%p353) target = $region52
      $region51: #{transformer_forward.26} parent=47 // pred_region
        %p356 = scmp.lt.s32.totalorder %s18, 1
        %s357 = scalar_select %p356, %s18, 1
        %s358 = smul.addr %s357, 4
        %s359 = scalar_lea.vmem %s3, %s358
      $region52: #{transformer_forward.26} parent=47 // pred_fallthru
        _
      // Predicated region
      $region53: #{transformer_forward.26} parent=47 // pred_check
        %p360 = pneg %p135
      $region54: #{transformer_forward.26} parent=47 // pred_check_branch
        %362 = sbr.rel (%p360) target = $region56
      $region55: #{transformer_forward.26} parent=47 // pred_region
        %p363 = scmp.lt.s32.totalorder %s18, 1
        %s364 = scalar_select %p363, %s18, 1
        %s365 = smul.addr %s364, 4
        %s366 = scalar_lea.vmem %s4, %s365
      $region56: #{transformer_forward.26} parent=47 // pred_fallthru
        _
      // Predicated region
      $region57: #{transformer_forward.26} parent=47 // pred_check
        %p367 = pneg %p161
      $region58: #{transformer_forward.26} parent=47 // pred_check_branch
        %369 = sbr.rel (%p367) target = $region60
      $region59: #{transformer_forward.26} parent=47 // pred_region
        %p370 = scmp.lt.s32.totalorder %s18, 1
        %s371 = scalar_select %p370, %s18, 1
        %s372 = smul.addr %s371, 4
        %s373 = scalar_lea.vmem %s5, %s372
      $region60: #{transformer_forward.26} parent=47 // pred_fallthru
        _
    $region48: #{transformer_forward.26} parent=5 // pred_fallthru
      _
  $region6: #{transformer_forward.26} parent=0 // loop_footer
    %s16 = sadd.s32 1, %s12
  $region7: #{transformer_forward.26} parent=0 // loop_footer_branch
    %11 = sbr.rel target = $region3
  $region8: #{transformer_forward.26} parent=0 // loop_exit
    _

// kernel: transformer_forward.27
$region0: #{transformer_forward.27}
  #allocation0 [shape = 'u32[]', space=smem, size = 0x4, offset = 0x4, fixed_abs, tag = 'smem constant byte address 0x4 - core index']
  #allocation1 [shape = 'u32[144,128]{1,0:T(1,128)}', space=vmem, size = 0x12000, scoped, tag = 'internal scratch']
  %s0 = inlined_call_operand.vmem [shape: bf16[8,8,8], index: 0, kind: input, shape index: {}]
  %s1 = inlined_call_operand.vmem [shape: bf16[8,8,8], index: 1, kind: input, shape index: {}]
  %s2 = inlined_call_operand.vmem [shape: bf16[8,8,8], index: 2, kind: input, shape index: {}]
  %s3 = inlined_call_operand.vmem [shape: s32[2,8,8], index: 3, kind: input, shape index: {}]
  %s4 = inlined_call_operand.vmem [shape: bf16[8,8,8], index: 4, kind: output, shape index: {0}]
  %s5 = inlined_call_operand.hbm [shape: f32[8,8,8], index: 5, kind: output, shape index: {1}]
  %6 = xla_tuple %s4, %s5
  %s7 = sld [smem:[#allocation0]]
  $region57: #{transformer_forward.27} parent=0
    _
  %s9 = ssub.s32 1, %s7
  %s10 = scalar_select 0, %s9, %s7
  $region1: #{transformer_forward.27} parent=0
    #allocation2 [shape = 'u8[8192]{0}', space=vmem, size = 0x2000, scoped, tag = 'output window, operand 1']
    #allocation3 [shape = 's32[2]{0}', space=sflag, size = 0x8, scoped, tag = 'scoped memory for transformer_forward.27']
    %11 = vsyncpa [#allocation3], 0
    %s12 = scalar_lea.sflag [#allocation3], 1
    %13 = vsyncpa %s12, 0
    loop: start=0, step=1, limit=10
    $region2: #{transformer_forward.27} parent=1 // loop_pre_header
      _
    $region3: #{transformer_forward.27} parent=1 // loop_header
      %s15 = sphi 0, %s19
      %p16 = scmp.ge.s32.totalorder %s15, 10
      %s22 = sphi 0, %s34
      %s23 = sphi 0, %s30
      %s24 = sphi 0, %s22
      %s25 = sphi 0, %s23
      %s26 = sphi 0, %s24
      %s27 = sphi 0, %s25
      %s39 = sphi 0, %s41
      %s42 = sphi 0, %s39
      %s43 = sphi 0, %s42
      %s59 = sphi 0, %s43
      %s65 = sphi 0, %s67
      %s68 = sphi 0, %s65
      %s69 = sphi 0, %s68
      %s85 = sphi 0, %s69
      %s91 = sphi 0, %s93
      %s94 = sphi 0, %s91
      %s95 = sphi 0, %s94
      %s111 = sphi 0, %s95
      %s143 = sphi 0, %s145
      %s146 = sphi 0, %s143
      %s147 = sphi 0, %s146
      %s163 = sphi 0, %s147
      %s171 = sphi 0, %s173
      %s174 = sphi 0, %s171
      %s175 = sphi 0, %s174
      %s191 = sphi 0, %s175
      %s199 = sphi 0, %s201
      %s202 = sphi 0, %s199
      %s203 = sphi 0, %s202
      %s219 = sphi 0, %s203
    $region4: #{transformer_forward.27} parent=1 // loop_header_branch
      %18 = sbr.rel (%p16) target = $region8
    $region5: #{transformer_forward.27} parent=1 // loop_body
      %s20 = ssub.s32 %s15, 1
      %s21 = ssub.s32 %s15, 2
      %s28 = sadd.s32 1, %s23
      %p29 = scmp.ge.s32.totalorder %s28, 1
      %s30 = scalar_select %p29, 0, %s28
      %s31 = sadd.s32 1, %s22
      %s32 = scalar_select %p29, %s31, %s22
      %p33 = scmp.ge.s32.totalorder %s32, 8
      %s34 = scalar_select %p33, 0, %s32
      %s35 = ssub.s32 %s22, %s34
      %s36 = ssub.s32 %s23, %s30
      %s37 = sor.u32 %s35, %s36
      %p38 = scmp.eq.s32.totalorder %s37, 0
      %s40 = sadd.s32 %s39, 1
      %s41 = scalar_select %p38, %s39, %s40
      %p44 = pneg %p38
      %p45 = scmp.eq.s32.totalorder %s15, 7
      %p46 = por %p44, %p45
      %p47 = scmp.ne.s32.totalorder %s39, %s42
      %p48 = scmp.eq.s32.totalorder %s15, 0
      %p49 = por %p47, %p48
      %p50 = scmp.ne.s32.totalorder %s39, %s42
      %p51 = scmp.eq.s32.totalorder %s20, 7
      %p52 = por %p50, %p51
      %p53 = scmp.ne.s32.totalorder %s42, %s43
      %p54 = scmp.eq.s32.totalorder %s20, 0
      %p55 = por %p53, %p54
      %p56 = scmp.ne.s32.totalorder %s42, %s43
      %p57 = scmp.eq.s32.totalorder %s21, 7
      %p58 = por %p56, %p57
      %p60 = scmp.ne.s32.totalorder %s43, %s59
      %p61 = scmp.eq.s32.totalorder %s21, 0
      %p62 = por %p60, %p61
      %s63 = ssub.s32 %s22, %s34
      %p64 = scmp.eq.s32.totalorder %s63, 0
      %s66 = sadd.s32 %s65, 1
      %s67 = scalar_select %p64, %s65, %s66
      %p70 = pneg %p64
      %p71 = scmp.eq.s32.totalorder %s15, 7
      %p72 = por %p70, %p71
      %p73 = scmp.ne.s32.totalorder %s65, %s68
      %p74 = scmp.eq.s32.totalorder %s15, 0
      %p75 = por %p73, %p74
      %p76 = scmp.ne.s32.totalorder %s65, %s68
      %p77 = scmp.eq.s32.totalorder %s20, 7
      %p78 = por %p76, %p77
      %p79 = scmp.ne.s32.totalorder %s68, %s69
      %p80 = scmp.eq.s32.totalorder %s20, 0
      %p81 = por %p79, %p80
      %p82 = scmp.ne.s32.totalorder %s68, %s69
      %p83 = scmp.eq.s32.totalorder %s21, 7
      %p84 = por %p82, %p83
      %p86 = scmp.ne.s32.totalorder %s69, %s85
      %p87 = scmp.eq.s32.totalorder %s21, 0
      %p88 = por %p86, %p87
      %s89 = ssub.s32 %s22, %s34
      %p90 = scmp.eq.s32.totalorder %s89, 0
      %s92 = sadd.s32 %s91, 1
      %s93 = scalar_select %p90, %s91, %s92
      %p96 = pneg %p90
      %p97 = scmp.eq.s32.totalorder %s15, 7
      %p98 = por %p96, %p97
      %p99 = scmp.ne.s32.totalorder %s91, %s94
      %p100 = scmp.eq.s32.totalorder %s15, 0
      %p101 = por %p99, %p100
      %p102 = scmp.ne.s32.totalorder %s91, %s94
      %p103 = scmp.eq.s32.totalorder %s20, 7
      %p104 = por %p102, %p103
      %p105 = scmp.ne.s32.totalorder %s94, %s95
      %p106 = scmp.eq.s32.totalorder %s20, 0
      %p107 = por %p105, %p106
      %p108 = scmp.ne.s32.totalorder %s94, %s95
      %p109 = scmp.eq.s32.totalorder %s21, 7
      %p110 = por %p108, %p109
      %p112 = scmp.ne.s32.totalorder %s95, %s111
      %p113 = scmp.eq.s32.totalorder %s21, 0
      %p114 = por %p112, %p113
      %p115 = scmp.lt.s32.totalorder %s22, 0
      %s116 = ssub.s32 0, %s22
      %s117 = scalar_select %p115, %s116, %s22
      %s118 = sand.u32 %s117, 1
      %s119 = ssub.s32 0, %s118
      %s120 = scalar_select %p115, %s119, %s118
      %p121 = scmp.ne.s32.totalorder %s120, 0
      %p122 = scmp.lt.s32.totalorder %s120, 0
      %p123 = pnand %p122, %p121
      %p124 = pneg %p123
      %s125 = sadd.s32 %s120, 2
      %s126 = scalar_select %p124, %s125, %s120
      %p127 = scmp.lt.s32.totalorder %s34, 0
      %s128 = ssub.s32 0, %s34
      %s129 = scalar_select %p127, %s128, %s34
      %s130 = sand.u32 %s129, 1
      %s131 = ssub.s32 0, %s130
      %s132 = scalar_select %p127, %s131, %s130
      %p133 = scmp.ne.s32.totalorder %s132, 0
      %p134 = scmp.lt.s32.totalorder %s132, 0
      %p135 = pnand %p134, %p133
      %p136 = pneg %p135
      %s137 = sadd.s32 %s132, 2
      %s138 = scalar_select %p136, %s137, %s132
      %s139 = ssub.s32 %s126, %s138
      %s140 = ssub.s32 %s23, %s30
      %s141 = sor.u32 %s139, %s140
      %p142 = scmp.eq.s32.totalorder %s141, 0
      %s144 = sadd.s32 %s143, 1
      %s145 = scalar_select %p142, %s143, %s144
      %p148 = pneg %p142
      %p149 = scmp.eq.s32.totalorder %s15, 7
      %p150 = por %p148, %p149
      %p151 = scmp.ne.s32.totalorder %s143, %s146
      %p152 = scmp.eq.s32.totalorder %s15, 0
      %p153 = por %p151, %p152
      %p154 = scmp.ne.s32.totalorder %s143, %s146
      %p155 = scmp.eq.s32.totalorder %s20, 7
      %p156 = por %p154, %p155
      %p157 = scmp.ne.s32.totalorder %s146, %s147
      %p158 = scmp.eq.s32.totalorder %s20, 0
      %p159 = por %p157, %p158
      %p160 = scmp.ne.s32.totalorder %s146, %s147
      %p161 = scmp.eq.s32.totalorder %s21, 7
      %p162 = por %p160, %p161
      %p164 = scmp.ne.s32.totalorder %s147, %s163
      %p165 = scmp.eq.s32.totalorder %s21, 0
      %p166 = por %p164, %p165
      %s167 = ssub.s32 %s22, %s34
      %s168 = ssub.s32 %s23, %s30
      %s169 = sor.u32 %s167, %s168
      %p170 = scmp.eq.s32.totalorder %s169, 0
      %s172 = sadd.s32 %s171, 1
      %s173 = scalar_select %p170, %s171, %s172
      %p176 = pneg %p170
      %p177 = scmp.eq.s32.totalorder %s15, 7
      %p178 = por %p176, %p177
      %p179 = scmp.ne.s32.totalorder %s171, %s174
      %p180 = scmp.eq.s32.totalorder %s15, 0
      %p181 = por %p179, %p180
      %p182 = scmp.ne.s32.totalorder %s171, %s174
      %p183 = scmp.eq.s32.totalorder %s20, 7
      %p184 = por %p182, %p183
      %p185 = scmp.ne.s32.totalorder %s174, %s175
      %p186 = scmp.eq.s32.totalorder %s20, 0
      %p187 = por %p185, %p186
      %p188 = scmp.ne.s32.totalorder %s174, %s175
      %p189 = scmp.eq.s32.totalorder %s21, 7
      %p190 = por %p188, %p189
      %p192 = scmp.ne.s32.totalorder %s175, %s191
      %p193 = scmp.eq.s32.totalorder %s21, 0
      %p194 = por %p192, %p193
      %s195 = ssub.s32 %s22, %s34
      %s196 = ssub.s32 %s23, %s30
      %s197 = sor.u32 %s195, %s196
      %p198 = scmp.eq.s32.totalorder %s197, 0
      %s200 = sadd.s32 %s199, 1
      %s201 = scalar_select %p198, %s199, %s200
      %p204 = pneg %p198
      %p205 = scmp.eq.s32.totalorder %s15, 7
      %p206 = por %p204, %p205
      %p207 = scmp.ne.s32.totalorder %s199, %s202
      %p208 = scmp.eq.s32.totalorder %s15, 0
      %p209 = por %p207, %p208
      %p210 = scmp.ne.s32.totalorder %s199, %s202
      %p211 = scmp.eq.s32.totalorder %s20, 7
      %p212 = por %p210, %p211
      %p213 = scmp.ne.s32.totalorder %s202, %s203
      %p214 = scmp.eq.s32.totalorder %s20, 0
      %p215 = por %p213, %p214
      %p216 = scmp.ne.s32.totalorder %s202, %s203
      %p217 = scmp.eq.s32.totalorder %s21, 7
      %p218 = por %p216, %p217
      %p220 = scmp.ne.s32.totalorder %s203, %s219
      %p221 = scmp.eq.s32.totalorder %s21, 0
      %p222 = por %p220, %p221
      %p223 = scmp.le.s32.totalorder 1, %s15
      %p224 = scmp.lt.s32.totalorder %s15, 9
      %p225 = pnand %p223, %p224
      %p226 = pneg %p225
      // Predicated region
      $region9: #{transformer_forward.27} parent=5 // pred_check
        _
      $region10: #{transformer_forward.27} parent=5 // pred_check_branch
        %228 = sbr.rel (%p225) target = $region12
      $region11: #{transformer_forward.27} parent=5 // pred_region
        %s229 = ssub.s32 %s15, 1
      $region12: #{transformer_forward.27} parent=5 // pred_fallthru
        _
      %p230 = scmp.lt.s32.totalorder %s15, 8
      // Predicated region
      $region13: #{transformer_forward.27} parent=5 // pred_check
        %p231 = pneg %p230
      $region14: #{transformer_forward.27} parent=5 // pred_check_branch
        %233 = sbr.rel (%p231) target = $region16
      $region15: #{transformer_forward.27} parent=5 // pred_region
        // Predicated region
        $region17: #{transformer_forward.27} parent=15 // pred_check
          %p234 = pneg %p49
        $region18: #{transformer_forward.27} parent=15 // pred_check_branch
          %236 = sbr.rel (%p234) target = $region20
        $region19: #{transformer_forward.27} parent=15 // pred_region
          %p237 = scmp.lt.s32.totalorder %s22, 7
          %s238 = scalar_select %p237, %s22, 7
          %p239 = scmp.lt.s32.totalorder %s23, 0
          %s240 = scalar_select %p239, %s23, 0
          %s241 = sadd.s32 %s240, %s238
          %s242 = smul.addr %s241, 4
          %s243 = scalar_lea.vmem %s0, %s242
        $region20: #{transformer_forward.27} parent=15 // pred_fallthru
          _
        // Predicated region
        $region21: #{transformer_forward.27} parent=15 // pred_check
          %p244 = pneg %p75
        $region22: #{transformer_forward.27} parent=15 // pred_check_branch
          %246 = sbr.rel (%p244) target = $region24
        $region23: #{transformer_forward.27} parent=15 // pred_region
          %p247 = scmp.lt.s32.totalorder %s22, 7
          %s248 = scalar_select %p247, %s22, 7
          %s249 = smul.addr %s248, 4
          %s250 = scalar_lea.vmem %s1, %s249
        $region24: #{transformer_forward.27} parent=15 // pred_fallthru
          _
        // Predicated region
        $region25: #{transformer_forward.27} parent=15 // pred_check
          %p251 = pneg %p101
        $region26: #{transformer_forward.27} parent=15 // pred_check_branch
          %253 = sbr.rel (%p251) target = $region28
        $region27: #{transformer_forward.27} parent=15 // pred_region
          %p254 = scmp.lt.s32.totalorder %s22, 7
          %s255 = scalar_select %p254, %s22, 7
          %s256 = smul.addr %s255, 4
          %s257 = scalar_lea.vmem %s2, %s256
        $region28: #{transformer_forward.27} parent=15 // pred_fallthru
          _
        // Predicated region
        $region29: #{transformer_forward.27} parent=15 // pred_check
          %p258 = pneg %p153
        $region30: #{transformer_forward.27} parent=15 // pred_check_branch
          %260 = sbr.rel (%p258) target = $region32
        $region31: #{transformer_forward.27} parent=15 // pred_region
          %p261 = scmp.lt.s32.totalorder %s22, 0
          %s262 = ssub.s32 0, %s22
          %s263 = scalar_select %p261, %s262, %s22
          %s264 = sand.u32 %s263, 1
          %s265 = ssub.s32 0, %s264
          %s266 = scalar_select %p261, %s265, %s264
          %p267 = scmp.ne.s32.totalorder %s266, 0
          %p268 = scmp.lt.s32.totalorder %s266, 0
          %p269 = pnand %p268, %p267
          %p270 = pneg %p269
          %s271 = sadd.s32 %s266, 2
          %s272 = scalar_select %p270, %s271, %s266
          %p273 = scmp.lt.s32.totalorder %s272, 1
          %s274 = scalar_select %p273, %s272, 1
          %p275 = scmp.lt.s32.totalorder %s23, 0
          %s276 = scalar_select %p275, %s23, 0
          %s277 = sadd.s32 %s276, %s274
          %s278 = smul.addr %s277, 8
          %s279 = scalar_lea.vmem %s3, %s278
          %p280 = scmp.lt.s32.totalorder %s22, 0
          %s281 = ssub.s32 0, %s22
          %s282 = scalar_select %p280, %s281, %s22
          %s283 = sand.u32 %s282, 1
          %s284 = ssub.s32 0, %s283
          %s285 = scalar_select %p280, %s284, %s283
          %p286 = scmp.ne.s32.totalorder %s285, 0
          %p287 = scmp.lt.s32.totalorder %s285, 0
          %p288 = pnand %p287, %p286
          %p289 = pneg %p288
          %s290 = sadd.s32 %s285, 2
          %s291 = scalar_select %p289, %s290, %s285
        $region32: #{transformer_forward.27} parent=15 // pred_fallthru
          _
      $region16: #{transformer_forward.27} parent=5 // pred_fallthru
        _
      %p292 = scmp.le.s32.totalorder 1, %s15
      %p293 = scmp.lt.s32.totalorder %s15, 9
      %p294 = pnand %p292, %p293
      %p295 = pneg %p294
      // Predicated region
      $region33: #{transformer_forward.27} parent=5 // pred_check
        _
      $region34: #{transformer_forward.27} parent=5 // pred_check_branch
        %297 = sbr.rel (%p294) target = $region36
      $region35: #{transformer_forward.27} parent=5 // pred_region
        %s298 = ssub.s32 %s15, 1
        %p299 = scmp.lt.s32.totalorder %s24, 7
        %s300 = scalar_select %p299, %s24, 7
        %p301 = scmp.lt.s32.totalorder %s25, 0
        %s302 = scalar_select %p301, %s25, 0
        %s303 = sadd.s32 %s302, %s300
        %s304 = smul.addr %s303, 4
        %s305 = scalar_lea.vmem %s0, %s304
        %p306 = pneg %p55
        %p307 = pneg %p52
        %p308 = scmp.lt.s32.totalorder %s24, 7
        %s309 = scalar_select %p308, %s24, 7
        %s310 = smul.addr %s309, 4
        %s311 = scalar_lea.vmem %s1, %s310
        %p312 = pneg %p81
        %p313 = pneg %p78
        %p314 = scmp.lt.s32.totalorder %s24, 7
        %s315 = scalar_select %p314, %s24, 7
        %s316 = smul.addr %s315, 4
        %s317 = scalar_lea.vmem %s2, %s316
        %p318 = pneg %p107
        %p319 = pneg %p104
        %p320 = scmp.lt.s32.totalorder %s24, 0
        %s321 = ssub.s32 0, %s24
        %s322 = scalar_select %p320, %s321, %s24
        %s323 = sand.u32 %s322, 1
        %s324 = ssub.s32 0, %s323
        %s325 = scalar_select %p320, %s324, %s323
        %p326 = scmp.ne.s32.totalorder %s325, 0
        %p327 = scmp.lt.s32.totalorder %s325, 0
        %p328 = pnand %p327, %p326
        %p329 = pneg %p328
        %s330 = sadd.s32 %s325, 2
        %s331 = scalar_select %p329, %s330, %s325
        %p332 = scmp.lt.s32.totalorder %s331, 1
        %s333 = scalar_select %p332, %s331, 1
        %p334 = scmp.lt.s32.totalorder %s25, 0
        %s335 = scalar_select %p334, %s25, 0
        %s336 = sadd.s32 %s335, %s333
        %s337 = smul.addr %s336, 8
        %s338 = scalar_lea.vmem %s3, %s337
        %p339 = pneg %p159
        %p340 = pneg %p156
        %p341 = pneg %p187
        %p342 = pneg %p184
        %p343 = scmp.lt.s32.totalorder %s24, 7
        %s344 = scalar_select %p343, %s24, 7
        %p345 = scmp.lt.s32.totalorder %s25, 0
        %s346 = scalar_select %p345, %s25, 0
        %s347 = sadd.s32 %s346, %s344
        %s348 = smul.addr %s347, 4
        %s349 = scalar_lea.vmem %s4, %s348
        %p350 = pneg %p215
        %p351 = pneg %p212
        %s352 = sand.u32 %s202, 1
        %s353 = scalar_lea.sflag [#allocation3], %s352
        %s354 = sand.u32 %s202, 1
        %s355 = smul.addr %s354, 8
        %s356 = scalar_lea.vmem [#allocation2], %s355
        %p357 = scmp.lt.s32.totalorder %s24, 7
        %s358 = scalar_select %p357, %s24, 7
        %p359 = scmp.lt.s32.totalorder %s25, 0
        %s360 = scalar_select %p359, %s25, 0
        %s361 = sadd.s32 %s360, %s358
        %s362 = smul.addr %s361, 4
        %s363 = scalar_lea.vmem %s0, %s362
        %p364 = scmp.lt.s32.totalorder %s24, 7
        %s365 = scalar_select %p364, %s24, 7
        %s366 = smul.addr %s365, 4
        %s367 = scalar_lea.vmem %s1, %s366
        %p368 = scmp.lt.s32.totalorder %s24, 7
        %s369 = scalar_select %p368, %s24, 7
        %s370 = smul.addr %s369, 4
        %s371 = scalar_lea.vmem %s2, %s370
        %p372 = scmp.lt.s32.totalorder %s24, 0
        %s373 = ssub.s32 0, %s24
        %s374 = scalar_select %p372, %s373, %s24
        %s375 = sand.u32 %s374, 1
        %s376 = ssub.s32 0, %s375
        %s377 = scalar_select %p372, %s376, %s375
        %p378 = scmp.ne.s32.totalorder %s377, 0
        %p379 = scmp.lt.s32.totalorder %s377, 0
        %p380 = pnand %p379, %p378
        %p381 = pneg %p380
        %s382 = sadd.s32 %s377, 2
        %s383 = scalar_select %p381, %s382, %s377
        %p384 = scmp.lt.s32.totalorder %s383, 1
        %s385 = scalar_select %p384, %s383, 1
        %p386 = scmp.lt.s32.totalorder %s25, 0
        %s387 = scalar_select %p386, %s25, 0
        %s388 = sadd.s32 %s387, %s385
        %s389 = smul.addr %s388, 8
        %s390 = scalar_lea.vmem %s3, %s389
        %p391 = scmp.lt.s32.totalorder %s24, 0
        %s392 = ssub.s32 0, %s24
        %s393 = scalar_select %p391, %s392, %s24
        %s394 = sand.u32 %s393, 1
        %s395 = ssub.s32 0, %s394
        %s396 = scalar_select %p391, %s395, %s394
        %p397 = scmp.ne.s32.totalorder %s396, 0
        %p398 = scmp.lt.s32.totalorder %s396, 0
        %p399 = pnand %p398, %p397
        %p400 = pneg %p399
        %s401 = sadd.s32 %s396, 2
        %s402 = scalar_select %p400, %s401, %s396
        %p403 = scmp.lt.s32.totalorder %s24, 7
        %s404 = scalar_select %p403, %s24, 7
        %p405 = scmp.lt.s32.totalorder %s25, 0
        %s406 = scalar_select %p405, %s25, 0
        %s407 = sadd.s32 %s406, %s404
        %s408 = smul.addr %s407, 4
        %s409 = scalar_lea.vmem %s4, %s408
        %v411 = vld [vmem:[%s363] sm:$0xf]
        %v412 = vld [vmem:[%s367] sm:$0xf]
        %vm413 = vcmask 64512
        %v415 = vsel %vm413, %v411, 0
        %v418 = vsel %vm413, %v412, 0
        %420 = vmatprep.subr.bf16.mxu0 0
        %421 = vmatpush1.bf16.xpose.msra.mxu0 0
        %422 = vmatprep.subr.bf16.mxu0 0
        %423 = vmatpush1.bf16.xpose.msra.mxu0 0
        %424 = vmatprep.subr.bf16.mxu0 0
        %425 = vmatpush1.bf16.xpose.msra.mxu0 0
        %426 = vmatprep.subr.bf16.mxu0 0
        %427 = vmatpush1.bf16.xpose.msra.mxu0 0
        %428 = vmatprep.subr.bf16.mxu0 0
        %429 = vmatpush1.bf16.xpose.msra.mxu0 0
        %430 = vmatprep.subr.bf16.mxu0 0
        %431 = vmatpush1.bf16.xpose.msra.mxu0 0
        %432 = vmatprep.subr.bf16.mxu0 0
        %433 = vmatpush1.bf16.xpose.msra.mxu0 0
        %434 = vmatprep.subr.bf16.mxu0 0
        %435 = vmatpush1.bf16.xpose.msra.mxu0 %v418
        %436 = vmatprep.subr.bf16.mxu0 0
        %437 = vmatpush2.bf16.xpose.msra.mxu0 0
        %438 = vmatprep.subr.bf16.mxu0 0
        %439 = vmatpush2.bf16.xpose.msra.mxu0 0
        %440 = vmatprep.subr.bf16.mxu0 0
        %441 = vmatpush2.bf16.xpose.msra.mxu0 0
        %442 = vmatprep.subr.bf16.mxu0 0
        %443 = vmatpush2.bf16.xpose.msra.mxu0 0
        %444 = vmatprep.subr.bf16.mxu0 0
        %445 = vmatpush2.bf16.xpose.msra.mxu0 0
        %446 = vmatprep.subr.bf16.mxu0 0
        %447 = vmatpush2.bf16.xpose.msra.mxu0 0
        %448 = vmatprep.subr.bf16.mxu0 0
        %449 = vmatpush2.bf16.xpose.msra.mxu0 0
        %450 = vmatprep.subr.bf16.mxu0 0
        %451 = vmatpush2.bf16.xpose.msra.mxu0 0
        %452 = vmatprep.mubr.bf16.mxu0 0
        %453 = vmatmul.mubr.bf16.gmra.mxu0 %v415
        %v454 = vpop.f32.mrf.mxu0
        %v455 = vadd.f32 0.0, %v454
        %v456 = vpop.f32.mrf.mxu0
        %v457 = vpop.f32.mrf.mxu0
        %v458 = vpop.f32.mrf.mxu0
        %459 = vdwg.mxu0
        %v460 = vld [vmem:[%s390] sm:$0xff]
        %vm461 = vcmp.ne.s32.totalorder %v460, 0
        %v462 = vsel %vm461, -1e+30, %v455
        %v463 = vsel %vm413, %v462, -inf
        %464 = vmax.xlane.f32.xlu0 %v463
        %v465 = vpop.xlane.xlu0 %464
        %v466 = vsub.f32 %v462, %v465
        %v467 = vmul.f32 %v466, 1.442695
        %v468 = vpow.pop %v467
        %v469 = vsel %vm413, %v468, 0.0
        %470 = vadd.xlane.f32.xlu0 %v469
        %v471 = vpop.xlane.xlu0 %470
        %v472 = vrcp.pop %v471
        %v473 = vmul.f32 %v468, %v472
        %474 = vst.msk [vmem:[%s356] sm:$0xff] %vm413, %v473
        %v475 = vpack.c.bf16 %v473, %v473
        %v476 = vld [vmem:[%s371] sm:$0xf]
        %v478 = vsel %vm413, %v475, 0
        %vm480 = vcmask 1043456
        %v482 = vsel %vm480, %v476, 0
        %484 = vmatprep.subr.bf16.mxu0 0
        %485 = vmatpush1.bf16.msra.mxu0 0
        %486 = vmatprep.subr.bf16.mxu0 0
        %487 = vmatpush1.bf16.msra.mxu0 0
        %488 = vmatprep.subr.bf16.mxu0 0
        %489 = vmatpush1.bf16.msra.mxu0 0
        %490 = vmatprep.subr.bf16.mxu0 0
        %491 = vmatpush1.bf16.msra.mxu0 0
        %492 = vmatprep.subr.bf16.mxu0 0
        %493 = vmatpush1.bf16.msra.mxu0 0
        %494 = vmatprep.subr.bf16.mxu0 0
        %495 = vmatpush1.bf16.msra.mxu0 0
        %496 = vmatprep.subr.bf16.mxu0 0
        %497 = vmatpush1.bf16.msra.mxu0 0
        %498 = vmatprep.subr.bf16.mxu0 0
        %499 = vmatpush1.bf16.msra.mxu0 %v482
        %500 = vmatprep.subr.bf16.mxu0 0
        %501 = vmatpush2.bf16.msra.mxu0 0
        %502 = vmatprep.subr.bf16.mxu0 0
        %503 = vmatpush2.bf16.msra.mxu0 0
        %504 = vmatprep.subr.bf16.mxu0 0
        %505 = vmatpush2.bf16.msra.mxu0 0
        %506 = vmatprep.subr.bf16.mxu0 0
        %507 = vmatpush2.bf16.msra.mxu0 0
        %508 = vmatprep.subr.bf16.mxu0 0
        %509 = vmatpush2.bf16.msra.mxu0 0
        %510 = vmatprep.subr.bf16.mxu0 0
        %511 = vmatpush2.bf16.msra.mxu0 0
        %512 = vmatprep.subr.bf16.mxu0 0
        %513 = vmatpush2.bf16.msra.mxu0 0
        %514 = vmatprep.subr.bf16.mxu0 0
        %515 = vmatpush2.bf16.msra.mxu0 0
        %516 = vmatprep.mubr.bf16.mxu0 0
        %517 = vmatmul.mubr.bf16.gmra.mxu0 %v478
        %v518 = vpop.f32.mrf.mxu0
        %v519 = vadd.f32 0.0, %v518
        %v520 = vpop.f32.mrf.mxu0
        %v521 = vpop.f32.mrf.mxu0
        %v522 = vpop.f32.mrf.mxu0
        %523 = vdwg.mxu0
        %v524 = vpack.c.bf16 %v519, %v519
        %vm525 = vcmask 60416
        %526 = vst.msk [vmem:[%s409] sm:$0xf] %vm525, %v524
        %p527 = scmp.lt.s32.totalorder %s24, 7
        %s528 = scalar_select %p527, %s24, 7
        %p529 = scmp.lt.s32.totalorder %s25, 0
        %s530 = scalar_select %p529, %s25, 0
        %s531 = sadd.s32 %s530, %s528
        %s532 = smul.addr %s531, 4
        %s533 = scalar_lea.vmem %s4, %s532
        %s534 = sand.u32 %s202, 1
        %s535 = scalar_lea.sflag [#allocation3], %s534
        %s536 = sand.u32 %s202, 1
        %s537 = smul.addr %s536, 8
        %s538 = scalar_lea.vmem [#allocation2], %s537
        // Predicated region
        $region37: #{transformer_forward.27} parent=35 // pred_check
          %p539 = pneg %p184
        $region38: #{transformer_forward.27} parent=35 // pred_check_branch
          %541 = sbr.rel (%p539) target = $region40
        $region39: #{transformer_forward.27} parent=35 // pred_region
          _
        $region40: #{transformer_forward.27} parent=35 // pred_fallthru
          _
        // Predicated region
        $region41: #{transformer_forward.27} parent=35 // pred_check
          %p542 = pneg %p212
        $region42: #{transformer_forward.27} parent=35 // pred_check_branch
          %544 = sbr.rel (%p542) target = $region44
        $region43: #{transformer_forward.27} parent=35 // pred_region
          %s546 = ssub.s32 128, 128
          %547 = vsyncadd %s535, %s546
          %s548 = sadd.s32 %s25, %s24
          %s549 = smul.addr %s548, 128
          %s550 = scalar_lea.hbm %s5, %s549
          %s552 = sshll.u32 %s538, 4
          %s553 = int_to_ptr.vmem [resolvable:$true] %s552
          %555 = dma.vmem_to_hbm [thread:$0]  %s553, 128, %s550, %s535
        $region44: #{transformer_forward.27} parent=35 // pred_fallthru
          _
      $region36: #{transformer_forward.27} parent=5 // pred_fallthru
        _
      %p556 = scmp.le.s32.totalorder 2, %s15
      // Predicated region
      $region45: #{transformer_forward.27} parent=5 // pred_check
        %p557 = pneg %p556
      $region46: #{transformer_forward.27} parent=5 // pred_check_branch
        %559 = sbr.rel (%p557) target = $region48
      $region47: #{transformer_forward.27} parent=5 // pred_region
        %s560 = ssub.s32 %s15, 2
        // Predicated region
        $region49: #{transformer_forward.27} parent=47 // pred_check
          %p561 = pneg %p190
        $region50: #{transformer_forward.27} parent=47 // pred_check_branch
          %563 = sbr.rel (%p561) target = $region52
        $region51: #{transformer_forward.27} parent=47 // pred_region
          %p564 = scmp.lt.s32.totalorder %s26, 7
          %s565 = scalar_select %p564, %s26, 7
          %p566 = scmp.lt.s32.totalorder %s27, 0
          %s567 = scalar_select %p566, %s27, 0
          %s568 = sadd.s32 %s567, %s565
          %s569 = smul.addr %s568, 4
          %s570 = scalar_lea.vmem %s4, %s569
        $region52: #{transformer_forward.27} parent=47 // pred_fallthru
          _
        // Predicated region
        $region53: #{transformer_forward.27} parent=47 // pred_check
          %p571 = pneg %p218
        $region54: #{transformer_forward.27} parent=47 // pred_check_branch
          %573 = sbr.rel (%p571) target = $region56
        $region55: #{transformer_forward.27} parent=47 // pred_region
          %s574 = sand.u32 %s203, 1
          %s575 = scalar_lea.sflag [#allocation3], %s574
          %s576 = sand.u32 %s203, 1
          %s577 = smul.addr %s576, 8
          %s578 = scalar_lea.vmem [#allocation2], %s577
          %579 = dma.done %s575, 128
        $region56: #{transformer_forward.27} parent=47 // pred_fallthru
          _
      $region48: #{transformer_forward.27} parent=5 // pred_fallthru
        _
    $region6: #{transformer_forward.27} parent=1 // loop_footer
      %s19 = sadd.s32 1, %s15
    $region7: #{transformer_forward.27} parent=1 // loop_footer_branch
      %14 = sbr.rel target = $region3
    $region8: #{transformer_forward.27} parent=1 // loop_exit
      _
    %580 = vsyncpa [#allocation3], 1
    %s581 = scalar_lea.sflag [#allocation3], 1
    %582 = vsyncpa %s581, 1

// kernel: transformer_forward.28
$region0: #{transformer_forward.28}
  #allocation0 [shape = 'u32[]', space=smem, size = 0x4, offset = 0x4, fixed_abs, tag = 'smem constant byte address 0x4 - core index']
  #allocation1 [shape = 'u32[144,128]{1,0:T(1,128)}', space=vmem, size = 0x12000, scoped, tag = 'internal scratch']
  %s0 = inlined_call_operand.vmem [shape: bf16[16,32], index: 0, kind: input, shape index: {}]
  %s1 = inlined_call_operand.vmem [shape: f32[16,32], index: 1, kind: input, shape index: {}]
  %s2 = inlined_call_operand.vmem [shape: bf16[32,32], index: 2, kind: input, shape index: {}]
  %s3 = inlined_call_operand.vmem [shape: f32[1,32], index: 3, kind: input, shape index: {}]
  %s4 = inlined_call_operand.vmem [shape: f32[1,32], index: 4, kind: input, shape index: {}]
  %s5 = inlined_call_operand.vmem [shape: f32[1,32], index: 5, kind: input, shape index: {}]
  %s6 = inlined_call_operand.vmem [shape: f32[16,32], index: 6, kind: output, shape index: {}]
  %s7 = sld [smem:[#allocation0]]
  $region57: #{transformer_forward.28} parent=0
    _
  %s9 = ssub.s32 1, %s7
  %s10 = scalar_select 0, %s9, %s7
  loop: start=0, step=1, limit=4
  $region2: #{transformer_forward.28} parent=0 // loop_pre_header
    _
  $region3: #{transformer_forward.28} parent=0 // loop_header
    %s12 = sphi 0, %s16
    %p13 = scmp.ge.s32.totalorder %s12, 4
    %s22 = sphi 0, %s24
    %s25 = sphi 0, %s22
    %s26 = sphi 0, %s25
    %s42 = sphi 0, %s26
    %s48 = sphi 0, %s50
    %s51 = sphi 0, %s48
    %s52 = sphi 0, %s51
    %s68 = sphi 0, %s52
    %s72 = sphi 0, %s72
    %s74 = sphi 0, %s72
    %s75 = sphi 0, %s74
    %s89 = sphi 0, %s75
    %s93 = sphi 0, %s93
    %s95 = sphi 0, %s93
    %s96 = sphi 0, %s95
    %s110 = sphi 0, %s96
    %s114 = sphi 0, %s114
    %s116 = sphi 0, %s114
    %s117 = sphi 0, %s116
    %s131 = sphi 0, %s117
    %s135 = sphi 0, %s135
    %s137 = sphi 0, %s135
    %s138 = sphi 0, %s137
    %s152 = sphi 0, %s138
    %s158 = sphi 0, %s160
    %s161 = sphi 0, %s158
    %s162 = sphi 0, %s161
    %s178 = sphi 0, %s162
  $region4: #{transformer_forward.28} parent=0 // loop_header_branch
    %15 = sbr.rel (%p13) target = $region8
  $region5: #{transformer_forward.28} parent=0 // loop_body
    %s17 = ssub.s32 %s12, 1
    %s18 = ssub.s32 %s12, 2
    %s19 = sadd.s32 %s12, 1
    %s20 = ssub.s32 %s12, %s19
    %p21 = scmp.eq.s32.totalorder %s20, 0
    %s23 = sadd.s32 %s22, 1
    %s24 = scalar_select %p21, %s22, %s23
    %p27 = pneg %p21
    %p28 = scmp.eq.s32.totalorder %s12, 1
    %p29 = por %p27, %p28
    %p30 = scmp.ne.s32.totalorder %s22, %s25
    %p31 = scmp.eq.s32.totalorder %s12, 0
    %p32 = por %p30, %p31
    %p33 = scmp.ne.s32.totalorder %s22, %s25
    %p34 = scmp.eq.s32.totalorder %s17, 1
    %p35 = por %p33, %p34
    %p36 = scmp.ne.s32.totalorder %s25, %s26
    %p37 = scmp.eq.s32.totalorder %s17, 0
    %p38 = por %p36, %p37
    %p39 = scmp.ne.s32.totalorder %s25, %s26
    %p40 = scmp.eq.s32.totalorder %s18, 1
    %p41 = por %p39, %p40
    %p43 = scmp.ne.s32.totalorder %s26, %s42
    %p44 = scmp.eq.s32.totalorder %s18, 0
    %p45 = por %p43, %p44
    %s46 = ssub.s32 %s12, %s19
    %p47 = scmp.eq.s32.totalorder %s46, 0
    %s49 = sadd.s32 %s48, 1
    %s50 = scalar_select %p47, %s48, %s49
    %p53 = pneg %p47
    %p54 = scmp.eq.s32.totalorder %s12, 1
    %p55 = por %p53, %p54
    %p56 = scmp.ne.s32.totalorder %s48, %s51
    %p57 = scmp.eq.s32.totalorder %s12, 0
    %p58 = por %p56, %p57
    %p59 = scmp.ne.s32.totalorder %s48, %s51
    %p60 = scmp.eq.s32.totalorder %s17, 1
    %p61 = por %p59, %p60
    %p62 = scmp.ne.s32.totalorder %s51, %s52
    %p63 = scmp.eq.s32.totalorder %s17, 0
    %p64 = por %p62, %p63
    %p65 = scmp.ne.s32.totalorder %s51, %s52
    %p66 = scmp.eq.s32.totalorder %s18, 1
    %p67 = por %p65, %p66
    %p69 = scmp.ne.s32.totalorder %s52, %s68
    %p70 = scmp.eq.s32.totalorder %s18, 0
    %p71 = por %p69, %p70
    %s73 = sadd.s32 %s72, 1
    %p76 = scmp.eq.s32.totalorder %s12, 1
    %p77 = scmp.ne.s32.totalorder %s72, %s74
    %p78 = scmp.eq.s32.totalorder %s12, 0
    %p79 = por %p77, %p78
    %p80 = scmp.ne.s32.totalorder %s72, %s74
    %p81 = scmp.eq.s32.totalorder %s17, 1
    %p82 = por %p80, %p81
    %p83 = scmp.ne.s32.totalorder %s74, %s75
    %p84 = scmp.eq.s32.totalorder %s17, 0
    %p85 = por %p83, %p84
    %p86 = scmp.ne.s32.totalorder %s74, %s75
    %p87 = scmp.eq.s32.totalorder %s18, 1
    %p88 = por %p86, %p87
    %p90 = scmp.ne.s32.totalorder %s75, %s89
    %p91 = scmp.eq.s32.totalorder %s18, 0
    %p92 = por %p90, %p91
    %s94 = sadd.s32 %s93, 1
    %p97 = scmp.eq.s32.totalorder %s12, 1
    %p98 = scmp.ne.s32.totalorder %s93, %s95
    %p99 = scmp.eq.s32.totalorder %s12, 0
    %p100 = por %p98, %p99
    %p101 = scmp.ne.s32.totalorder %s93, %s95
    %p102 = scmp.eq.s32.totalorder %s17, 1
    %p103 = por %p101, %p102
    %p104 = scmp.ne.s32.totalorder %s95, %s96
    %p105 = scmp.eq.s32.totalorder %s17, 0
    %p106 = por %p104, %p105
    %p107 = scmp.ne.s32.totalorder %s95, %s96
    %p108 = scmp.eq.s32.totalorder %s18, 1
    %p109 = por %p107, %p108
    %p111 = scmp.ne.s32.totalorder %s96, %s110
    %p112 = scmp.eq.s32.totalorder %s18, 0
    %p113 = por %p111, %p112
    %s115 = sadd.s32 %s114, 1
    %p118 = scmp.eq.s32.totalorder %s12, 1
    %p119 = scmp.ne.s32.totalorder %s114, %s116
    %p120 = scmp.eq.s32.totalorder %s12, 0
    %p121 = por %p119, %p120
    %p122 = scmp.ne.s32.totalorder %s114, %s116
    %p123 = scmp.eq.s32.totalorder %s17, 1
    %p124 = por %p122, %p123
    %p125 = scmp.ne.s32.totalorder %s116, %s117
    %p126 = scmp.eq.s32.totalorder %s17, 0
    %p127 = por %p125, %p126
    %p128 = scmp.ne.s32.totalorder %s116, %s117
    %p129 = scmp.eq.s32.totalorder %s18, 1
    %p130 = por %p128, %p129
    %p132 = scmp.ne.s32.totalorder %s117, %s131
    %p133 = scmp.eq.s32.totalorder %s18, 0
    %p134 = por %p132, %p133
    %s136 = sadd.s32 %s135, 1
    %p139 = scmp.eq.s32.totalorder %s12, 1
    %p140 = scmp.ne.s32.totalorder %s135, %s137
    %p141 = scmp.eq.s32.totalorder %s12, 0
    %p142 = por %p140, %p141
    %p143 = scmp.ne.s32.totalorder %s135, %s137
    %p144 = scmp.eq.s32.totalorder %s17, 1
    %p145 = por %p143, %p144
    %p146 = scmp.ne.s32.totalorder %s137, %s138
    %p147 = scmp.eq.s32.totalorder %s17, 0
    %p148 = por %p146, %p147
    %p149 = scmp.ne.s32.totalorder %s137, %s138
    %p150 = scmp.eq.s32.totalorder %s18, 1
    %p151 = por %p149, %p150
    %p153 = scmp.ne.s32.totalorder %s138, %s152
    %p154 = scmp.eq.s32.totalorder %s18, 0
    %p155 = por %p153, %p154
    %s156 = ssub.s32 %s12, %s19
    %p157 = scmp.eq.s32.totalorder %s156, 0
    %s159 = sadd.s32 %s158, 1
    %s160 = scalar_select %p157, %s158, %s159
    %p163 = pneg %p157
    %p164 = scmp.eq.s32.totalorder %s12, 1
    %p165 = por %p163, %p164
    %p166 = scmp.ne.s32.totalorder %s158, %s161
    %p167 = scmp.eq.s32.totalorder %s12, 0
    %p168 = por %p166, %p167
    %p169 = scmp.ne.s32.totalorder %s158, %s161
    %p170 = scmp.eq.s32.totalorder %s17, 1
    %p171 = por %p169, %p170
    %p172 = scmp.ne.s32.totalorder %s161, %s162
    %p173 = scmp.eq.s32.totalorder %s17, 0
    %p174 = por %p172, %p173
    %p175 = scmp.ne.s32.totalorder %s161, %s162
    %p176 = scmp.eq.s32.totalorder %s18, 1
    %p177 = por %p175, %p176
    %p179 = scmp.ne.s32.totalorder %s162, %s178
    %p180 = scmp.eq.s32.totalorder %s18, 0
    %p181 = por %p179, %p180
    %p182 = scmp.le.s32.totalorder 1, %s12
    %p183 = scmp.lt.s32.totalorder %s12, 3
    %p184 = pnand %p182, %p183
    %p185 = pneg %p184
    // Predicated region
    $region9: #{transformer_forward.28} parent=5 // pred_check
      _
    $region10: #{transformer_forward.28} parent=5 // pred_check_branch
      %187 = sbr.rel (%p184) target = $region12
    $region11: #{transformer_forward.28} parent=5 // pred_region
      %s188 = ssub.s32 %s12, 1
      // Predicated region
      $region13: #{transformer_forward.28} parent=11 // pred_check
        %p189 = pneg %p85
      $region14: #{transformer_forward.28} parent=11 // pred_check_branch
        %191 = sbr.rel (%p189) target = $region16
      $region15: #{transformer_forward.28} parent=11 // pred_region
        _
      $region16: #{transformer_forward.28} parent=11 // pred_fallthru
        _
      // Predicated region
      $region17: #{transformer_forward.28} parent=11 // pred_check
        %p192 = pneg %p106
      $region18: #{transformer_forward.28} parent=11 // pred_check_branch
        %194 = sbr.rel (%p192) target = $region20
      $region19: #{transformer_forward.28} parent=11 // pred_region
        _
      $region20: #{transformer_forward.28} parent=11 // pred_fallthru
        _
      // Predicated region
      $region21: #{transformer_forward.28} parent=11 // pred_check
        %p195 = pneg %p127
      $region22: #{transformer_forward.28} parent=11 // pred_check_branch
        %197 = sbr.rel (%p195) target = $region24
      $region23: #{transformer_forward.28} parent=11 // pred_region
        _
      $region24: #{transformer_forward.28} parent=11 // pred_fallthru
        _
      // Predicated region
      $region25: #{transformer_forward.28} parent=11 // pred_check
        %p198 = pneg %p148
      $region26: #{transformer_forward.28} parent=11 // pred_check_branch
        %200 = sbr.rel (%p198) target = $region28
      $region27: #{transformer_forward.28} parent=11 // pred_region
        _
      $region28: #{transformer_forward.28} parent=11 // pred_fallthru
        _
    $region12: #{transformer_forward.28} parent=5 // pred_fallthru
      _
    %p201 = scmp.lt.s32.totalorder %s12, 2
    // Predicated region
    $region29: #{transformer_forward.28} parent=5 // pred_check
      %p202 = pneg %p201
    $region30: #{transformer_forward.28} parent=5 // pred_check_branch
      %204 = sbr.rel (%p202) target = $region32
    $region31: #{transformer_forward.28} parent=5 // pred_region
      // Predicated region
      $region33: #{transformer_forward.28} parent=31 // pred_check
        %p205 = pneg %p32
      $region34: #{transformer_forward.28} parent=31 // pred_check_branch
        %207 = sbr.rel (%p205) target = $region36
      $region35: #{transformer_forward.28} parent=31 // pred_region
        %p208 = scmp.lt.s32.totalorder %s12, 1
        %s209 = scalar_select %p208, %s12, 1
        %s210 = smul.addr %s209, 4
        %s211 = scalar_lea.vmem %s0, %s210
      $region36: #{transformer_forward.28} parent=31 // pred_fallthru
        _
      // Predicated region
      $region37: #{transformer_forward.28} parent=31 // pred_check
        %p212 = pneg %p58
      $region38: #{transformer_forward.28} parent=31 // pred_check_branch
        %214 = sbr.rel (%p212) target = $region40
      $region39: #{transformer_forward.28} parent=31 // pred_region
        %p215 = scmp.lt.s32.totalorder %s12, 1
        %s216 = scalar_select %p215, %s12, 1
        %s217 = smul.addr %s216, 8
        %s218 = scalar_lea.vmem %s1, %s217
      $region40: #{transformer_forward.28} parent=31 // pred_fallthru
        _
    $region32: #{transformer_forward.28} parent=5 // pred_fallthru
      _
    %p219 = scmp.le.s32.totalorder 1, %s12
    %p220 = scmp.lt.s32.totalorder %s12, 3
    %p221 = pnand %p219, %p220
    %p222 = pneg %p221
    // Predicated region
    $region41: #{transformer_forward.28} parent=5 // pred_check
      _
    $region42: #{transformer_forward.28} parent=5 // pred_check_branch
      %224 = sbr.rel (%p221) target = $region44
    $region43: #{transformer_forward.28} parent=5 // pred_region
      %s225 = ssub.s32 %s12, 1
      %p226 = scmp.lt.s32.totalorder %s17, 1
      %s227 = scalar_select %p226, %s17, 1
      %s228 = smul.addr %s227, 4
      %s229 = scalar_lea.vmem %s0, %s228
      %p230 = pneg %p38
      %p231 = pneg %p35
      %p232 = scmp.lt.s32.totalorder %s17, 1
      %s233 = scalar_select %p232, %s17, 1
      %s234 = smul.addr %s233, 8
      %s235 = scalar_lea.vmem %s1, %s234
      %p236 = pneg %p64
      %p237 = pneg %p61
      %p238 = pneg %p85
      %p239 = pneg %p82
      %p240 = pneg %p106
      %p241 = pneg %p103
      %p242 = pneg %p127
      %p243 = pneg %p124
      %p244 = pneg %p148
      %p245 = pneg %p145
      %p246 = pneg %p174
      %p247 = pneg %p171
      %p248 = scmp.lt.s32.totalorder %s17, 1
      %s249 = scalar_select %p248, %s17, 1
      %s250 = smul.addr %s249, 8
      %s251 = scalar_lea.vmem %s6, %s250
      %p252 = scmp.lt.s32.totalorder %s17, 1
      %s253 = scalar_select %p252, %s17, 1
      %s254 = smul.addr %s253, 4
      %s255 = scalar_lea.vmem %s0, %s254
      %p256 = scmp.lt.s32.totalorder %s17, 1
      %s257 = scalar_select %p256, %s17, 1
      %s258 = smul.addr %s257, 8
      %s259 = scalar_lea.vmem %s1, %s258
      %p260 = scmp.lt.s32.totalorder %s17, 1
      %s261 = scalar_select %p260, %s17, 1
      %s262 = smul.addr %s261, 8
      %s263 = scalar_lea.vmem %s6, %s262
      %v265 = vld [vmem:[%s255] sm:$0xf]
      %v266 = vld [vmem:[%s2] sm:$0xf]
      %v267 = vld [vmem:[%s2 + $0x4] sm:$0xf]
      %v268 = vld [vmem:[%s2 + $0x8] sm:$0xf]
      %v269 = vld [vmem:[%s2 + $0xc] sm:$0xf]
      %v270 = vld [vmem:[%s3] sm:$0x1]
      %v272 = vlaneseq
      %v273 = vshrl.u32 %v272, 7
      %v274 = vsub.s32 0, %v273
      %v275 = vrot.slane %v270, %v274
      %v281 = vunpack.c.l.b16 %v266
      %v282 = vunpack.c.l.b16 %v267
      %v283 = vunpack.c.l.b16 %v268
      %v284 = vunpack.c.l.b16 %v269
      %v285 = vpack.c.b16 %v282, %v281
      %v286 = vpack.c.b16 %v284, %v283
      %vm289 = vcmask 261120
      %v291 = vsel %vm289, %v265, 0
      %293 = vmatprep.subr.bf16.mxu0 0
      %294 = vmatpush1.bf16.msra.mxu0 0
      %295 = vmatprep.subr.bf16.mxu0 0
      %296 = vmatpush1.bf16.msra.mxu0 0
      %297 = vmatprep.subr.bf16.mxu0 0
      %298 = vmatpush1.bf16.msra.mxu0 0
      %299 = vmatprep.subr.bf16.mxu0 0
      %300 = vmatpush1.bf16.msra.mxu0 0
      %301 = vmatprep.subr.bf16.mxu0 0
      %302 = vmatpush1.bf16.msra.mxu0 0
      %303 = vmatprep.subr.bf16.mxu0 0
      %304 = vmatpush1.bf16.msra.mxu0 0
      %305 = vmatprep.subr.bf16.mxu0 0
      %306 = vmatpush1.bf16.msra.mxu0 %v286
      %307 = vmatprep.subr.bf16.mxu0 0
      %308 = vmatpush1.bf16.msra.mxu0 %v285
      %309 = vmatprep.subr.bf16.mxu0 0
      %310 = vmatpush2.bf16.msra.mxu0 0
      %311 = vmatprep.subr.bf16.mxu0 0
      %312 = vmatpush2.bf16.msra.mxu0 0
      %313 = vmatprep.subr.bf16.mxu0 0
      %314 = vmatpush2.bf16.msra.mxu0 0
      %315 = vmatprep.subr.bf16.mxu0 0
      %316 = vmatpush2.bf16.msra.mxu0 0
      %317 = vmatprep.subr.bf16.mxu0 0
      %318 = vmatpush2.bf16.msra.mxu0 0
      %319 = vmatprep.subr.bf16.mxu0 0
      %320 = vmatpush2.bf16.msra.mxu0 0
      %321 = vmatprep.subr.bf16.mxu0 0
      %322 = vmatpush2.bf16.msra.mxu0 0
      %323 = vmatprep.subr.bf16.mxu0 0
      %324 = vmatpush2.bf16.msra.mxu0 0
      %325 = vmatprep.mubr.bf16.mxu0 0
      %326 = vmatmul.mubr.bf16.gmra.mxu0 %v291
      %v327 = vpop.f32.mrf.mxu0
      %v328 = vadd.f32 %v275, %v327
      %v329 = vpop.f32.mrf.mxu0
      %v330 = vpop.f32.mrf.mxu0
      %v331 = vpop.f32.mrf.mxu0
      %332 = vdwg.mxu0
      %v333 = vld [vmem:[%s259] sm:$0xff]
      %v334 = vadd.f32 %v328, %v333
      %v335 = vsel %vm289, %v334, 0.0
      %336 = vadd.xlane.f32.xlu0 %v335
      %v337 = vpop.xlane.xlu0 %336
      %v338 = vrcp.pop 32.0
      %v339 = vmul.f32 %v337, %v338
      %v340 = vsub.f32 %v334, %v339
      %v341 = vmul.f32 %v340, %v340
      %v342 = vsel %vm289, %v341, 0.0
      %343 = vadd.xlane.f32.xlu0 %v342
      %v344 = vpop.xlane.xlu0 %343
      %v345 = vmul.f32 %v344, %v338
      %v346 = vadd.f32 %v345, 1e-05
      %v347 = vrsqrt.pop %v346
      %v348 = vmul.f32 %v340, %v347
      %v349 = vld [vmem:[%s4] sm:$0x1]
      %v351 = vlaneseq
      %v352 = vshrl.u32 %v351, 7
      %v353 = vsub.s32 0, %v352
      %v354 = vrot.slane %v349, %v353
      %v356 = vmul.f32 %v348, %v354
      %v357 = vld [vmem:[%s5] sm:$0x1]
      %v359 = vlaneseq
      %v360 = vshrl.u32 %v359, 7
      %v361 = vsub.s32 0, %v360
      %v362 = vrot.slane %v357, %v361
      %v364 = vadd.f32 %v356, %v362
      %365 = vst.msk [vmem:[%s263] sm:$0xff] %vm289, %v364
      %p366 = scmp.lt.s32.totalorder %s17, 1
      %s367 = scalar_select %p366, %s17, 1
      %s368 = smul.addr %s367, 8
      %s369 = scalar_lea.vmem %s6, %s368
      // Predicated region
      $region45: #{transformer_forward.28} parent=43 // pred_check
        %p370 = pneg %p171
      $region46: #{transformer_forward.28} parent=43 // pred_check_branch
        %372 = sbr.rel (%p370) target = $region48
      $region47: #{transformer_forward.28} parent=43 // pred_region
        _
      $region48: #{transformer_forward.28} parent=43 // pred_fallthru
        _
    $region44: #{transformer_forward.28} parent=5 // pred_fallthru
      _
    %p373 = scmp.le.s32.totalorder 2, %s12
    // Predicated region
    $region49: #{transformer_forward.28} parent=5 // pred_check
      %p374 = pneg %p373
    $region50: #{transformer_forward.28} parent=5 // pred_check_branch
      %376 = sbr.rel (%p374) target = $region52
    $region51: #{transformer_forward.28} parent=5 // pred_region
      %s377 = ssub.s32 %s12, 2
      // Predicated region
      $region53: #{transformer_forward.28} parent=51 // pred_check
        %p378 = pneg %p177
      $region54: #{transformer_forward.28} parent=51 // pred_check_branch
        %380 = sbr.rel (%p378) target = $region56
      $region55: #{transformer_forward.28} parent=51 // pred_region
        %p381 = scmp.lt.s32.totalorder %s18, 1
        %s382 = scalar_select %p381, %s18, 1
        %s383 = smul.addr %s382, 8
        %s384 = scalar_lea.vmem %s6, %s383
      $region56: #{transformer_forward.28} parent=51 // pred_fallthru
        _
    $region52: #{transformer_forward.28} parent=5 // pred_fallthru
      _
  $region6: #{transformer_forward.28} parent=0 // loop_footer
    %s16 = sadd.s32 1, %s12
  $region7: #{transformer_forward.28} parent=0 // loop_footer_branch
    %11 = sbr.rel target = $region3
  $region8: #{transformer_forward.28} parent=0 // loop_exit
    _

// kernel: transformer_forward.29
$region0: #{transformer_forward.29}
  #allocation0 [shape = 'u32[]', space=smem, size = 0x4, offset = 0x4, fixed_abs, tag = 'smem constant byte address 0x4 - core index']
  #allocation1 [shape = 'u32[144,128]{1,0:T(1,128)}', space=vmem, size = 0x12000, scoped, tag = 'internal scratch']
  %s0 = inlined_call_operand.vmem [shape: f32[16,32], index: 0, kind: input, shape index: {}]
  %s1 = inlined_call_operand.vmem [shape: bf16[32,64], index: 1, kind: input, shape index: {}]
  %s2 = inlined_call_operand.vmem [shape: f32[1,64], index: 2, kind: input, shape index: {}]
  %s3 = inlined_call_operand.vmem [shape: bf16[64,32], index: 3, kind: input, shape index: {}]
  %s4 = inlined_call_operand.vmem [shape: f32[1,32], index: 4, kind: input, shape index: {}]
  %s5 = inlined_call_operand.vmem [shape: f32[1,32], index: 5, kind: input, shape index: {}]
  %s6 = inlined_call_operand.vmem [shape: f32[1,32], index: 6, kind: input, shape index: {}]
  %s7 = inlined_call_operand.vmem [shape: f32[16,32], index: 7, kind: output, shape index: {}]
  %s8 = sld [smem:[#allocation0]]
  $region61: #{transformer_forward.29} parent=0
    _
  %s10 = ssub.s32 1, %s8
  %s11 = scalar_select 0, %s10, %s8
  loop: start=0, step=1, limit=4
  $region2: #{transformer_forward.29} parent=0 // loop_pre_header
    _
  $region3: #{transformer_forward.29} parent=0 // loop_header
    %s13 = sphi 0, %s17
    %p14 = scmp.ge.s32.totalorder %s13, 4
    %s23 = sphi 0, %s25
    %s26 = sphi 0, %s23
    %s27 = sphi 0, %s26
    %s43 = sphi 0, %s27
    %s47 = sphi 0, %s47
    %s49 = sphi 0, %s47
    %s50 = sphi 0, %s49
    %s64 = sphi 0, %s50
    %s68 = sphi 0, %s68
    %s70 = sphi 0, %s68
    %s71 = sphi 0, %s70
    %s85 = sphi 0, %s71
    %s89 = sphi 0, %s89
    %s91 = sphi 0, %s89
    %s92 = sphi 0, %s91
    %s106 = sphi 0, %s92
    %s110 = sphi 0, %s110
    %s112 = sphi 0, %s110
    %s113 = sphi 0, %s112
    %s127 = sphi 0, %s113
    %s131 = sphi 0, %s131
    %s133 = sphi 0, %s131
    %s134 = sphi 0, %s133
    %s148 = sphi 0, %s134
    %s152 = sphi 0, %s152
    %s154 = sphi 0, %s152
    %s155 = sphi 0, %s154
    %s169 = sphi 0, %s155
    %s175 = sphi 0, %s177
    %s178 = sphi 0, %s175
    %s179 = sphi 0, %s178
    %s195 = sphi 0, %s179
  $region4: #{transformer_forward.29} parent=0 // loop_header_branch
    %16 = sbr.rel (%p14) target = $region8
  $region5: #{transformer_forward.29} parent=0 // loop_body
    %s18 = ssub.s32 %s13, 1
    %s19 = ssub.s32 %s13, 2
    %s20 = sadd.s32 %s13, 1
    %s21 = ssub.s32 %s13, %s20
    %p22 = scmp.eq.s32.totalorder %s21, 0
    %s24 = sadd.s32 %s23, 1
    %s25 = scalar_select %p22, %s23, %s24
    %p28 = pneg %p22
    %p29 = scmp.eq.s32.totalorder %s13, 1
    %p30 = por %p28, %p29
    %p31 = scmp.ne.s32.totalorder %s23, %s26
    %p32 = scmp.eq.s32.totalorder %s13, 0
    %p33 = por %p31, %p32
    %p34 = scmp.ne.s32.totalorder %s23, %s26
    %p35 = scmp.eq.s32.totalorder %s18, 1
    %p36 = por %p34, %p35
    %p37 = scmp.ne.s32.totalorder %s26, %s27
    %p38 = scmp.eq.s32.totalorder %s18, 0
    %p39 = por %p37, %p38
    %p40 = scmp.ne.s32.totalorder %s26, %s27
    %p41 = scmp.eq.s32.totalorder %s19, 1
    %p42 = por %p40, %p41
    %p44 = scmp.ne.s32.totalorder %s27, %s43
    %p45 = scmp.eq.s32.totalorder %s19, 0
    %p46 = por %p44, %p45
    %s48 = sadd.s32 %s47, 1
    %p51 = scmp.eq.s32.totalorder %s13, 1
    %p52 = scmp.ne.s32.totalorder %s47, %s49
    %p53 = scmp.eq.s32.totalorder %s13, 0
    %p54 = por %p52, %p53
    %p55 = scmp.ne.s32.totalorder %s47, %s49
    %p56 = scmp.eq.s32.totalorder %s18, 1
    %p57 = por %p55, %p56
    %p58 = scmp.ne.s32.totalorder %s49, %s50
    %p59 = scmp.eq.s32.totalorder %s18, 0
    %p60 = por %p58, %p59
    %p61 = scmp.ne.s32.totalorder %s49, %s50
    %p62 = scmp.eq.s32.totalorder %s19, 1
    %p63 = por %p61, %p62
    %p65 = scmp.ne.s32.totalorder %s50, %s64
    %p66 = scmp.eq.s32.totalorder %s19, 0
    %p67 = por %p65, %p66
    %s69 = sadd.s32 %s68, 1
    %p72 = scmp.eq.s32.totalorder %s13, 1
    %p73 = scmp.ne.s32.totalorder %s68, %s70
    %p74 = scmp.eq.s32.totalorder %s13, 0
    %p75 = por %p73, %p74
    %p76 = scmp.ne.s32.totalorder %s68, %s70
    %p77 = scmp.eq.s32.totalorder %s18, 1
    %p78 = por %p76, %p77
    %p79 = scmp.ne.s32.totalorder %s70, %s71
    %p80 = scmp.eq.s32.totalorder %s18, 0
    %p81 = por %p79, %p80
    %p82 = scmp.ne.s32.totalorder %s70, %s71
    %p83 = scmp.eq.s32.totalorder %s19, 1
    %p84 = por %p82, %p83
    %p86 = scmp.ne.s32.totalorder %s71, %s85
    %p87 = scmp.eq.s32.totalorder %s19, 0
    %p88 = por %p86, %p87
    %s90 = sadd.s32 %s89, 1
    %p93 = scmp.eq.s32.totalorder %s13, 1
    %p94 = scmp.ne.s32.totalorder %s89, %s91
    %p95 = scmp.eq.s32.totalorder %s13, 0
    %p96 = por %p94, %p95
    %p97 = scmp.ne.s32.totalorder %s89, %s91
    %p98 = scmp.eq.s32.totalorder %s18, 1
    %p99 = por %p97, %p98
    %p100 = scmp.ne.s32.totalorder %s91, %s92
    %p101 = scmp.eq.s32.totalorder %s18, 0
    %p102 = por %p100, %p101
    %p103 = scmp.ne.s32.totalorder %s91, %s92
    %p104 = scmp.eq.s32.totalorder %s19, 1
    %p105 = por %p103, %p104
    %p107 = scmp.ne.s32.totalorder %s92, %s106
    %p108 = scmp.eq.s32.totalorder %s19, 0
    %p109 = por %p107, %p108
    %s111 = sadd.s32 %s110, 1
    %p114 = scmp.eq.s32.totalorder %s13, 1
    %p115 = scmp.ne.s32.totalorder %s110, %s112
    %p116 = scmp.eq.s32.totalorder %s13, 0
    %p117 = por %p115, %p116
    %p118 = scmp.ne.s32.totalorder %s110, %s112
    %p119 = scmp.eq.s32.totalorder %s18, 1
    %p120 = por %p118, %p119
    %p121 = scmp.ne.s32.totalorder %s112, %s113
    %p122 = scmp.eq.s32.totalorder %s18, 0
    %p123 = por %p121, %p122
    %p124 = scmp.ne.s32.totalorder %s112, %s113
    %p125 = scmp.eq.s32.totalorder %s19, 1
    %p126 = por %p124, %p125
    %p128 = scmp.ne.s32.totalorder %s113, %s127
    %p129 = scmp.eq.s32.totalorder %s19, 0
    %p130 = por %p128, %p129
    %s132 = sadd.s32 %s131, 1
    %p135 = scmp.eq.s32.totalorder %s13, 1
    %p136 = scmp.ne.s32.totalorder %s131, %s133
    %p137 = scmp.eq.s32.totalorder %s13, 0
    %p138 = por %p136, %p137
    %p139 = scmp.ne.s32.totalorder %s131, %s133
    %p140 = scmp.eq.s32.totalorder %s18, 1
    %p141 = por %p139, %p140
    %p142 = scmp.ne.s32.totalorder %s133, %s134
    %p143 = scmp.eq.s32.totalorder %s18, 0
    %p144 = por %p142, %p143
    %p145 = scmp.ne.s32.totalorder %s133, %s134
    %p146 = scmp.eq.s32.totalorder %s19, 1
    %p147 = por %p145, %p146
    %p149 = scmp.ne.s32.totalorder %s134, %s148
    %p150 = scmp.eq.s32.totalorder %s19, 0
    %p151 = por %p149, %p150
    %s153 = sadd.s32 %s152, 1
    %p156 = scmp.eq.s32.totalorder %s13, 1
    %p157 = scmp.ne.s32.totalorder %s152, %s154
    %p158 = scmp.eq.s32.totalorder %s13, 0
    %p159 = por %p157, %p158
    %p160 = scmp.ne.s32.totalorder %s152, %s154
    %p161 = scmp.eq.s32.totalorder %s18, 1
    %p162 = por %p160, %p161
    %p163 = scmp.ne.s32.totalorder %s154, %s155
    %p164 = scmp.eq.s32.totalorder %s18, 0
    %p165 = por %p163, %p164
    %p166 = scmp.ne.s32.totalorder %s154, %s155
    %p167 = scmp.eq.s32.totalorder %s19, 1
    %p168 = por %p166, %p167
    %p170 = scmp.ne.s32.totalorder %s155, %s169
    %p171 = scmp.eq.s32.totalorder %s19, 0
    %p172 = por %p170, %p171
    %s173 = ssub.s32 %s13, %s20
    %p174 = scmp.eq.s32.totalorder %s173, 0
    %s176 = sadd.s32 %s175, 1
    %s177 = scalar_select %p174, %s175, %s176
    %p180 = pneg %p174
    %p181 = scmp.eq.s32.totalorder %s13, 1
    %p182 = por %p180, %p181
    %p183 = scmp.ne.s32.totalorder %s175, %s178
    %p184 = scmp.eq.s32.totalorder %s13, 0
    %p185 = por %p183, %p184
    %p186 = scmp.ne.s32.totalorder %s175, %s178
    %p187 = scmp.eq.s32.totalorder %s18, 1
    %p188 = por %p186, %p187
    %p189 = scmp.ne.s32.totalorder %s178, %s179
    %p190 = scmp.eq.s32.totalorder %s18, 0
    %p191 = por %p189, %p190
    %p192 = scmp.ne.s32.totalorder %s178, %s179
    %p193 = scmp.eq.s32.totalorder %s19, 1
    %p194 = por %p192, %p193
    %p196 = scmp.ne.s32.totalorder %s179, %s195
    %p197 = scmp.eq.s32.totalorder %s19, 0
    %p198 = por %p196, %p197
    %p199 = scmp.le.s32.totalorder 1, %s13
    %p200 = scmp.lt.s32.totalorder %s13, 3
    %p201 = pnand %p199, %p200
    %p202 = pneg %p201
    // Predicated region
    $region9: #{transformer_forward.29} parent=5 // pred_check
      _
    $region10: #{transformer_forward.29} parent=5 // pred_check_branch
      %204 = sbr.rel (%p201) target = $region12
    $region11: #{transformer_forward.29} parent=5 // pred_region
      %s205 = ssub.s32 %s13, 1
      // Predicated region
      $region13: #{transformer_forward.29} parent=11 // pred_check
        %p206 = pneg %p60
      $region14: #{transformer_forward.29} parent=11 // pred_check_branch
        %208 = sbr.rel (%p206) target = $region16
      $region15: #{transformer_forward.29} parent=11 // pred_region
        _
      $region16: #{transformer_forward.29} parent=11 // pred_fallthru
        _
      // Predicated region
      $region17: #{transformer_forward.29} parent=11 // pred_check
        %p209 = pneg %p81
      $region18: #{transformer_forward.29} parent=11 // pred_check_branch
        %211 = sbr.rel (%p209) target = $region20
      $region19: #{transformer_forward.29} parent=11 // pred_region
        _
      $region20: #{transformer_forward.29} parent=11 // pred_fallthru
        _
      // Predicated region
      $region21: #{transformer_forward.29} parent=11 // pred_check
        %p212 = pneg %p102
      $region22: #{transformer_forward.29} parent=11 // pred_check_branch
        %214 = sbr.rel (%p212) target = $region24
      $region23: #{transformer_forward.29} parent=11 // pred_region
        _
      $region24: #{transformer_forward.29} parent=11 // pred_fallthru
        _
      // Predicated region
      $region25: #{transformer_forward.29} parent=11 // pred_check
        %p215 = pneg %p123
      $region26: #{transformer_forward.29} parent=11 // pred_check_branch
        %217 = sbr.rel (%p215) target = $region28
      $region27: #{transformer_forward.29} parent=11 // pred_region
        _
      $region28: #{transformer_forward.29} parent=11 // pred_fallthru
        _
      // Predicated region
      $region29: #{transformer_forward.29} parent=11 // pred_check
        %p218 = pneg %p144
      $region30: #{transformer_forward.29} parent=11 // pred_check_branch
        %220 = sbr.rel (%p218) target = $region32
      $region31: #{transformer_forward.29} parent=11 // pred_region
        _
      $region32: #{transformer_forward.29} parent=11 // pred_fallthru
        _
      // Predicated region
      $region33: #{transformer_forward.29} parent=11 // pred_check
        %p221 = pneg %p165
      $region34: #{transformer_forward.29} parent=11 // pred_check_branch
        %223 = sbr.rel (%p221) target = $region36
      $region35: #{transformer_forward.29} parent=11 // pred_region
        _
      $region36: #{transformer_forward.29} parent=11 // pred_fallthru
        _
    $region12: #{transformer_forward.29} parent=5 // pred_fallthru
      _
    %p224 = scmp.lt.s32.totalorder %s13, 2
    // Predicated region
    $region37: #{transformer_forward.29} parent=5 // pred_check
      %p225 = pneg %p224
    $region38: #{transformer_forward.29} parent=5 // pred_check_branch
      %227 = sbr.rel (%p225) target = $region40
    $region39: #{transformer_forward.29} parent=5 // pred_region
      // Predicated region
      $region41: #{transformer_forward.29} parent=39 // pred_check
        %p228 = pneg %p33
      $region42: #{transformer_forward.29} parent=39 // pred_check_branch
        %230 = sbr.rel (%p228) target = $region44
      $region43: #{transformer_forward.29} parent=39 // pred_region
        %p231 = scmp.lt.s32.totalorder %s13, 1
        %s232 = scalar_select %p231, %s13, 1
        %s233 = smul.addr %s232, 8
        %s234 = scalar_lea.vmem %s0, %s233
      $region44: #{transformer_forward.29} parent=39 // pred_fallthru
        _
    $region40: #{transformer_forward.29} parent=5 // pred_fallthru
      _
    %p235 = scmp.le.s32.totalorder 1, %s13
    %p236 = scmp.lt.s32.totalorder %s13, 3
    %p237 = pnand %p235, %p236
    %p238 = pneg %p237
    // Predicated region
    $region45: #{transformer_forward.29} parent=5 // pred_check
      _
    $region46: #{transformer_forward.29} parent=5 // pred_check_branch
      %240 = sbr.rel (%p237) target = $region48
    $region47: #{transformer_forward.29} parent=5 // pred_region
      %s241 = ssub.s32 %s13, 1
      %p242 = scmp.lt.s32.totalorder %s18, 1
      %s243 = scalar_select %p242, %s18, 1
      %s244 = smul.addr %s243, 8
      %s245 = scalar_lea.vmem %s0, %s244
      %p246 = pneg %p39
      %p247 = pneg %p36
      %p248 = pneg %p60
      %p249 = pneg %p57
      %p250 = pneg %p81
      %p251 = pneg %p78
      %p252 = pneg %p102
      %p253 = pneg %p99
      %p254 = pneg %p123
      %p255 = pneg %p120
      %p256 = pneg %p144
      %p257 = pneg %p141
      %p258 = pneg %p165
      %p259 = pneg %p162
      %p260 = pneg %p191
      %p261 = pneg %p188
      %p262 = scmp.lt.s32.totalorder %s18, 1
      %s263 = scalar_select %p262, %s18, 1
      %s264 = smul.addr %s263, 8
      %s265 = scalar_lea.vmem %s7, %s264
      %p266 = scmp.lt.s32.totalorder %s18, 1
      %s267 = scalar_select %p266, %s18, 1
      %s268 = smul.addr %s267, 8
      %s269 = scalar_lea.vmem %s0, %s268
      %p270 = scmp.lt.s32.totalorder %s18, 1
      %s271 = scalar_select %p270, %s18, 1
      %s272 = smul.addr %s271, 8
      %s273 = scalar_lea.vmem %s7, %s272
      %v275 = vld [vmem:[%s269] sm:$0xff]
      %v276 = vpack.c.bf16 %v275, %v275
      %v277 = vld [vmem:[%s1] sm:$0xf]
      %v278 = vld [vmem:[%s1 + $0x4] sm:$0xf]
      %v279 = vld [vmem:[%s1 + $0x8] sm:$0xf]
      %v280 = vld [vmem:[%s1 + $0xc] sm:$0xf]
      %v281 = vld [vmem:[%s2] sm:$0x1]
      %v283 = vlaneseq
      %v284 = vshrl.u32 %v283, 7
      %v285 = vsub.s32 0, %v284
      %v286 = vrot.slane %v281, %v285
      %v292 = vunpack.c.l.b16 %v277
      %v293 = vunpack.c.l.b16 %v278
      %v294 = vunpack.c.l.b16 %v279
      %v295 = vunpack.c.l.b16 %v280
      %v296 = vpack.c.b16 %v293, %v292
      %v297 = vpack.c.b16 %v295, %v294
      %vm300 = vcmask 261120
      %v302 = vsel %vm300, %v276, 0
      %304 = vmatprep.subr.bf16.mxu0 0
      %305 = vmatpush1.bf16.msra.mxu0 0
      %306 = vmatprep.subr.bf16.mxu0 0
      %307 = vmatpush1.bf16.msra.mxu0 0
      %308 = vmatprep.subr.bf16.mxu0 0
      %309 = vmatpush1.bf16.msra.mxu0 0
      %310 = vmatprep.subr.bf16.mxu0 0
      %311 = vmatpush1.bf16.msra.mxu0 0
      %312 = vmatprep.subr.bf16.mxu0 0
      %313 = vmatpush1.bf16.msra.mxu0 0
      %314 = vmatprep.subr.bf16.mxu0 0
      %315 = vmatpush1.bf16.msra.mxu0 0
      %316 = vmatprep.subr.bf16.mxu0 0
      %317 = vmatpush1.bf16.msra.mxu0 %v297
      %318 = vmatprep.subr.bf16.mxu0 0
      %319 = vmatpush1.bf16.msra.mxu0 %v296
      %320 = vmatprep.subr.bf16.mxu0 0
      %321 = vmatpush2.bf16.msra.mxu0 0
      %322 = vmatprep.subr.bf16.mxu0 0
      %323 = vmatpush2.bf16.msra.mxu0 0
      %324 = vmatprep.subr.bf16.mxu0 0
      %325 = vmatpush2.bf16.msra.mxu0 0
      %326 = vmatprep.subr.bf16.mxu0 0
      %327 = vmatpush2.bf16.msra.mxu0 0
      %328 = vmatprep.subr.bf16.mxu0 0
      %329 = vmatpush2.bf16.msra.mxu0 0
      %330 = vmatprep.subr.bf16.mxu0 0
      %331 = vmatpush2.bf16.msra.mxu0 0
      %332 = vmatprep.subr.bf16.mxu0 0
      %333 = vmatpush2.bf16.msra.mxu0 0
      %334 = vmatprep.subr.bf16.mxu0 0
      %335 = vmatpush2.bf16.msra.mxu0 0
      %336 = vmatprep.mubr.bf16.mxu0 0
      %337 = vmatmul.mubr.bf16.gmra.mxu0 %v302
      %v338 = vpop.f32.mrf.mxu0
      %v339 = vadd.f32 %v286, %v338
      %v340 = vpop.f32.mrf.mxu0
      %v341 = vpop.f32.mrf.mxu0
      %v342 = vpop.f32.mrf.mxu0
      %343 = vdwg.mxu0
      %v344 = vmax.f32 %v339, 0.0
      %v345 = vpack.c.bf16 %v344, %v344
      %v346 = vld [vmem:[%s3] sm:$0xf]
      %v347 = vld [vmem:[%s3 + $0x4] sm:$0xf]
      %v348 = vld [vmem:[%s3 + $0x8] sm:$0xf]
      %v349 = vld [vmem:[%s3 + $0xc] sm:$0xf]
      %v350 = vld [vmem:[%s3 + $0x10] sm:$0xf]
      %v351 = vld [vmem:[%s3 + $0x14] sm:$0xf]
      %v352 = vld [vmem:[%s3 + $0x18] sm:$0xf]
      %v353 = vld [vmem:[%s3 + $0x1c] sm:$0xf]
      %v354 = vld [vmem:[%s4] sm:$0x1]
      %v356 = vlaneseq
      %v357 = vshrl.u32 %v356, 7
      %v358 = vsub.s32 0, %v357
      %v359 = vrot.slane %v354, %v358
      %v369 = vunpack.c.l.b16 %v346
      %v370 = vunpack.c.l.b16 %v347
      %v371 = vunpack.c.l.b16 %v348
      %v372 = vunpack.c.l.b16 %v349
      %v373 = vunpack.c.l.b16 %v350
      %v374 = vunpack.c.l.b16 %v351
      %v375 = vunpack.c.l.b16 %v352
      %v376 = vunpack.c.l.b16 %v353
      %v377 = vpack.c.b16 %v370, %v369
      %v378 = vpack.c.b16 %v372, %v371
      %v379 = vpack.c.b16 %v374, %v373
      %v380 = vpack.c.b16 %v376, %v375
      %vm385 = vcmask 523264
      %v387 = vsel %vm385, %v345, 0
      %389 = vmatprep.subr.bf16.mxu0 0
      %390 = vmatpush1.bf16.msra.mxu0 0
      %391 = vmatprep.subr.bf16.mxu0 0
      %392 = vmatpush1.bf16.msra.mxu0 0
      %393 = vmatprep.subr.bf16.mxu0 0
      %394 = vmatpush1.bf16.msra.mxu0 0
      %395 = vmatprep.subr.bf16.mxu0 0
      %396 = vmatpush1.bf16.msra.mxu0 0
      %397 = vmatprep.subr.bf16.mxu0 0
      %398 = vmatpush1.bf16.msra.mxu0 %v380
      %399 = vmatprep.subr.bf16.mxu0 0
      %400 = vmatpush1.bf16.msra.mxu0 %v379
      %401 = vmatprep.subr.bf16.mxu0 0
      %402 = vmatpush1.bf16.msra.mxu0 %v378
      %403 = vmatprep.subr.bf16.mxu0 0
      %404 = vmatpush1.bf16.msra.mxu0 %v377
      %405 = vmatprep.subr.bf16.mxu0 0
      %406 = vmatpush2.bf16.msra.mxu0 0
      %407 = vmatprep.subr.bf16.mxu0 0
      %408 = vmatpush2.bf16.msra.mxu0 0
      %409 = vmatprep.subr.bf16.mxu0 0
      %410 = vmatpush2.bf16.msra.mxu0 0
      %411 = vmatprep.subr.bf16.mxu0 0
      %412 = vmatpush2.bf16.msra.mxu0 0
      %413 = vmatprep.subr.bf16.mxu0 0
      %414 = vmatpush2.bf16.msra.mxu0 0
      %415 = vmatprep.subr.bf16.mxu0 0
      %416 = vmatpush2.bf16.msra.mxu0 0
      %417 = vmatprep.subr.bf16.mxu0 0
      %418 = vmatpush2.bf16.msra.mxu0 0
      %419 = vmatprep.subr.bf16.mxu0 0
      %420 = vmatpush2.bf16.msra.mxu0 0
      %421 = vmatprep.mubr.bf16.mxu0 0
      %422 = vmatmul.mubr.bf16.gmra.mxu0 %v387
      %v423 = vpop.f32.mrf.mxu0
      %v424 = vadd.f32 %v359, %v423
      %v425 = vpop.f32.mrf.mxu0
      %v426 = vpop.f32.mrf.mxu0
      %v427 = vpop.f32.mrf.mxu0
      %428 = vdwg.mxu0
      %v429 = vadd.f32 %v424, %v275
      %v430 = vsel %vm300, %v429, 0.0
      %431 = vadd.xlane.f32.xlu0 %v430
      %v432 = vpop.xlane.xlu0 %431
      %v433 = vrcp.pop 32.0
      %v434 = vmul.f32 %v432, %v433
      %v435 = vsub.f32 %v429, %v434
      %v436 = vmul.f32 %v435, %v435
      %v437 = vsel %vm300, %v436, 0.0
      %438 = vadd.xlane.f32.xlu0 %v437
      %v439 = vpop.xlane.xlu0 %438
      %v440 = vmul.f32 %v439, %v433
      %v441 = vadd.f32 %v440, 1e-05
      %v442 = vrsqrt.pop %v441
      %v443 = vmul.f32 %v435, %v442
      %v444 = vld [vmem:[%s5] sm:$0x1]
      %v446 = vlaneseq
      %v447 = vshrl.u32 %v446, 7
      %v448 = vsub.s32 0, %v447
      %v449 = vrot.slane %v444, %v448
      %v451 = vmul.f32 %v443, %v449
      %v452 = vld [vmem:[%s6] sm:$0x1]
      %v454 = vlaneseq
      %v455 = vshrl.u32 %v454, 7
      %v456 = vsub.s32 0, %v455
      %v457 = vrot.slane %v452, %v456
      %v459 = vadd.f32 %v451, %v457
      %460 = vst.msk [vmem:[%s273] sm:$0xff] %vm300, %v459
      %p461 = scmp.lt.s32.totalorder %s18, 1
      %s462 = scalar_select %p461, %s18, 1
      %s463 = smul.addr %s462, 8
      %s464 = scalar_lea.vmem %s7, %s463
      // Predicated region
      $region49: #{transformer_forward.29} parent=47 // pred_check
        %p465 = pneg %p188
      $region50: #{transformer_forward.29} parent=47 // pred_check_branch
        %467 = sbr.rel (%p465) target = $region52
      $region51: #{transformer_forward.29} parent=47 // pred_region
        _
      $region52: #{transformer_forward.29} parent=47 // pred_fallthru
        _
    $region48: #{transformer_forward.29} parent=5 // pred_fallthru
      _
    %p468 = scmp.le.s32.totalorder 2, %s13
    // Predicated region
    $region53: #{transformer_forward.29} parent=5 // pred_check
      %p469 = pneg %p468
    $region54: #{transformer_forward.29} parent=5 // pred_check_branch
      %471 = sbr.rel (%p469) target = $region56
    $region55: #{transformer_forward.29} parent=5 // pred_region
      %s472 = ssub.s32 %s13, 2
      // Predicated region
      $region57: #{transformer_forward.29} parent=55 // pred_check
        %p473 = pneg %p194
      $region58: #{transformer_forward.29} parent=55 // pred_check_branch
        %475 = sbr.rel (%p473) target = $region60
      $region59: #{transformer_forward.29} parent=55 // pred_region
        %p476 = scmp.lt.s32.totalorder %s19, 1
        %s477 = scalar_select %p476, %s19, 1
        %s478 = smul.addr %s477, 8
        %s479 = scalar_lea.vmem %s7, %s478
      $region60: #{transformer_forward.29} parent=55 // pred_fallthru
        _
    $region56: #{transformer_forward.29} parent=5 // pred_fallthru
      _
  $region6: #{transformer_forward.29} parent=0 // loop_footer
    %s17 = sadd.s32 1, %s13
  $region7: #{transformer_forward.29} parent=0 // loop_footer_branch
    %12 = sbr.rel target = $region3
  $region8: #{transformer_forward.29} parent=0 // loop_exit
    _

// kernel: transformer_forward.38
$region0: #{transformer_forward.38}
  #allocation0 [shape = 'u32[]', space=smem, size = 0x4, offset = 0x4, fixed_abs, tag = 'smem constant byte address 0x4 - core index']
  #allocation1 [shape = 'u32[144,128]{1,0:T(1,128)}', space=vmem, size = 0x12000, scoped, tag = 'internal scratch']
  %s0 = inlined_call_operand.vmem [shape: f32[16,32], index: 0, kind: input, shape index: {}]
  %s1 = inlined_call_operand.vmem [shape: bf16[32,64], index: 1, kind: input, shape index: {}]
  %s2 = inlined_call_operand.vmem [shape: f32[1,64], index: 2, kind: input, shape index: {}]
  %s3 = inlined_call_operand.vmem [shape: bf16[16,32], index: 3, kind: output, shape index: {0}]
  %s4 = inlined_call_operand.vmem [shape: bf16[16,32], index: 4, kind: output, shape index: {1}]
  %5 = xla_tuple %s3, %s4
  %s6 = sld [smem:[#allocation0]]
  $region53: #{transformer_forward.38} parent=0
    _
  %s8 = ssub.s32 1, %s6
  %s9 = scalar_select 0, %s8, %s6
  loop: start=0, step=1, limit=4
  $region2: #{transformer_forward.38} parent=0 // loop_pre_header
    _
  $region3: #{transformer_forward.38} parent=0 // loop_header
    %s11 = sphi 0, %s15
    %p12 = scmp.ge.s32.totalorder %s11, 4
    %s21 = sphi 0, %s23
    %s24 = sphi 0, %s21
    %s25 = sphi 0, %s24
    %s41 = sphi 0, %s25
    %s45 = sphi 0, %s45
    %s47 = sphi 0, %s45
    %s48 = sphi 0, %s47
    %s62 = sphi 0, %s48
    %s66 = sphi 0, %s66
    %s68 = sphi 0, %s66
    %s69 = sphi 0, %s68
    %s83 = sphi 0, %s69
    %s89 = sphi 0, %s91
    %s92 = sphi 0, %s89
    %s93 = sphi 0, %s92
    %s109 = sphi 0, %s93
    %s115 = sphi 0, %s117
    %s118 = sphi 0, %s115
    %s119 = sphi 0, %s118
    %s135 = sphi 0, %s119
  $region4: #{transformer_forward.38} parent=0 // loop_header_branch
    %14 = sbr.rel (%p12) target = $region8
  $region5: #{transformer_forward.38} parent=0 // loop_body
    %s16 = ssub.s32 %s11, 1
    %s17 = ssub.s32 %s11, 2
    %s18 = sadd.s32 %s11, 1
    %s19 = ssub.s32 %s11, %s18
    %p20 = scmp.eq.s32.totalorder %s19, 0
    %s22 = sadd.s32 %s21, 1
    %s23 = scalar_select %p20, %s21, %s22
    %p26 = pneg %p20
    %p27 = scmp.eq.s32.totalorder %s11, 1
    %p28 = por %p26, %p27
    %p29 = scmp.ne.s32.totalorder %s21, %s24
    %p30 = scmp.eq.s32.totalorder %s11, 0
    %p31 = por %p29, %p30
    %p32 = scmp.ne.s32.totalorder %s21, %s24
    %p33 = scmp.eq.s32.totalorder %s16, 1
    %p34 = por %p32, %p33
    %p35 = scmp.ne.s32.totalorder %s24, %s25
    %p36 = scmp.eq.s32.totalorder %s16, 0
    %p37 = por %p35, %p36
    %p38 = scmp.ne.s32.totalorder %s24, %s25
    %p39 = scmp.eq.s32.totalorder %s17, 1
    %p40 = por %p38, %p39
    %p42 = scmp.ne.s32.totalorder %s25, %s41
    %p43 = scmp.eq.s32.totalorder %s17, 0
    %p44 = por %p42, %p43
    %s46 = sadd.s32 %s45, 1
    %p49 = scmp.eq.s32.totalorder %s11, 1
    %p50 = scmp.ne.s32.totalorder %s45, %s47
    %p51 = scmp.eq.s32.totalorder %s11, 0
    %p52 = por %p50, %p51
    %p53 = scmp.ne.s32.totalorder %s45, %s47
    %p54 = scmp.eq.s32.totalorder %s16, 1
    %p55 = por %p53, %p54
    %p56 = scmp.ne.s32.totalorder %s47, %s48
    %p57 = scmp.eq.s32.totalorder %s16, 0
    %p58 = por %p56, %p57
    %p59 = scmp.ne.s32.totalorder %s47, %s48
    %p60 = scmp.eq.s32.totalorder %s17, 1
    %p61 = por %p59, %p60
    %p63 = scmp.ne.s32.totalorder %s48, %s62
    %p64 = scmp.eq.s32.totalorder %s17, 0
    %p65 = por %p63, %p64
    %s67 = sadd.s32 %s66, 1
    %p70 = scmp.eq.s32.totalorder %s11, 1
    %p71 = scmp.ne.s32.totalorder %s66, %s68
    %p72 = scmp.eq.s32.totalorder %s11, 0
    %p73 = por %p71, %p72
    %p74 = scmp.ne.s32.totalorder %s66, %s68
    %p75 = scmp.eq.s32.totalorder %s16, 1
    %p76 = por %p74, %p75
    %p77 = scmp.ne.s32.totalorder %s68, %s69
    %p78 = scmp.eq.s32.totalorder %s16, 0
    %p79 = por %p77, %p78
    %p80 = scmp.ne.s32.totalorder %s68, %s69
    %p81 = scmp.eq.s32.totalorder %s17, 1
    %p82 = por %p80, %p81
    %p84 = scmp.ne.s32.totalorder %s69, %s83
    %p85 = scmp.eq.s32.totalorder %s17, 0
    %p86 = por %p84, %p85
    %s87 = ssub.s32 %s11, %s18
    %p88 = scmp.eq.s32.totalorder %s87, 0
    %s90 = sadd.s32 %s89, 1
    %s91 = scalar_select %p88, %s89, %s90
    %p94 = pneg %p88
    %p95 = scmp.eq.s32.totalorder %s11, 1
    %p96 = por %p94, %p95
    %p97 = scmp.ne.s32.totalorder %s89, %s92
    %p98 = scmp.eq.s32.totalorder %s11, 0
    %p99 = por %p97, %p98
    %p100 = scmp.ne.s32.totalorder %s89, %s92
    %p101 = scmp.eq.s32.totalorder %s16, 1
    %p102 = por %p100, %p101
    %p103 = scmp.ne.s32.totalorder %s92, %s93
    %p104 = scmp.eq.s32.totalorder %s16, 0
    %p105 = por %p103, %p104
    %p106 = scmp.ne.s32.totalorder %s92, %s93
    %p107 = scmp.eq.s32.totalorder %s17, 1
    %p108 = por %p106, %p107
    %p110 = scmp.ne.s32.totalorder %s93, %s109
    %p111 = scmp.eq.s32.totalorder %s17, 0
    %p112 = por %p110, %p111
    %s113 = ssub.s32 %s11, %s18
    %p114 = scmp.eq.s32.totalorder %s113, 0
    %s116 = sadd.s32 %s115, 1
    %s117 = scalar_select %p114, %s115, %s116
    %p120 = pneg %p114
    %p121 = scmp.eq.s32.totalorder %s11, 1
    %p122 = por %p120, %p121
    %p123 = scmp.ne.s32.totalorder %s115, %s118
    %p124 = scmp.eq.s32.totalorder %s11, 0
    %p125 = por %p123, %p124
    %p126 = scmp.ne.s32.totalorder %s115, %s118
    %p127 = scmp.eq.s32.totalorder %s16, 1
    %p128 = por %p126, %p127
    %p129 = scmp.ne.s32.totalorder %s118, %s119
    %p130 = scmp.eq.s32.totalorder %s16, 0
    %p131 = por %p129, %p130
    %p132 = scmp.ne.s32.totalorder %s118, %s119
    %p133 = scmp.eq.s32.totalorder %s17, 1
    %p134 = por %p132, %p133
    %p136 = scmp.ne.s32.totalorder %s119, %s135
    %p137 = scmp.eq.s32.totalorder %s17, 0
    %p138 = por %p136, %p137
    %p139 = scmp.le.s32.totalorder 1, %s11
    %p140 = scmp.lt.s32.totalorder %s11, 3
    %p141 = pnand %p139, %p140
    %p142 = pneg %p141
    // Predicated region
    $region9: #{transformer_forward.38} parent=5 // pred_check
      _
    $region10: #{transformer_forward.38} parent=5 // pred_check_branch
      %144 = sbr.rel (%p141) target = $region12
    $region11: #{transformer_forward.38} parent=5 // pred_region
      %s145 = ssub.s32 %s11, 1
      // Predicated region
      $region13: #{transformer_forward.38} parent=11 // pred_check
        %p146 = pneg %p58
      $region14: #{transformer_forward.38} parent=11 // pred_check_branch
        %148 = sbr.rel (%p146) target = $region16
      $region15: #{transformer_forward.38} parent=11 // pred_region
        _
      $region16: #{transformer_forward.38} parent=11 // pred_fallthru
        _
      // Predicated region
      $region17: #{transformer_forward.38} parent=11 // pred_check
        %p149 = pneg %p79
      $region18: #{transformer_forward.38} parent=11 // pred_check_branch
        %151 = sbr.rel (%p149) target = $region20
      $region19: #{transformer_forward.38} parent=11 // pred_region
        _
      $region20: #{transformer_forward.38} parent=11 // pred_fallthru
        _
    $region12: #{transformer_forward.38} parent=5 // pred_fallthru
      _
    %p152 = scmp.lt.s32.totalorder %s11, 2
    // Predicated region
    $region21: #{transformer_forward.38} parent=5 // pred_check
      %p153 = pneg %p152
    $region22: #{transformer_forward.38} parent=5 // pred_check_branch
      %155 = sbr.rel (%p153) target = $region24
    $region23: #{transformer_forward.38} parent=5 // pred_region
      // Predicated region
      $region25: #{transformer_forward.38} parent=23 // pred_check
        %p156 = pneg %p31
      $region26: #{transformer_forward.38} parent=23 // pred_check_branch
        %158 = sbr.rel (%p156) target = $region28
      $region27: #{transformer_forward.38} parent=23 // pred_region
        %p159 = scmp.lt.s32.totalorder %s11, 1
        %s160 = scalar_select %p159, %s11, 1
        %s161 = smul.addr %s160, 8
        %s162 = scalar_lea.vmem %s0, %s161
      $region28: #{transformer_forward.38} parent=23 // pred_fallthru
        _
    $region24: #{transformer_forward.38} parent=5 // pred_fallthru
      _
    %p163 = scmp.le.s32.totalorder 1, %s11
    %p164 = scmp.lt.s32.totalorder %s11, 3
    %p165 = pnand %p163, %p164
    %p166 = pneg %p165
    // Predicated region
    $region29: #{transformer_forward.38} parent=5 // pred_check
      _
    $region30: #{transformer_forward.38} parent=5 // pred_check_branch
      %168 = sbr.rel (%p165) target = $region32
    $region31: #{transformer_forward.38} parent=5 // pred_region
      %s169 = ssub.s32 %s11, 1
      %p170 = scmp.lt.s32.totalorder %s16, 1
      %s171 = scalar_select %p170, %s16, 1
      %s172 = smul.addr %s171, 8
      %s173 = scalar_lea.vmem %s0, %s172
      %p174 = pneg %p37
      %p175 = pneg %p34
      %p176 = pneg %p58
      %p177 = pneg %p55
      %p178 = pneg %p79
      %p179 = pneg %p76
      %p180 = pneg %p105
      %p181 = pneg %p102
      %p182 = scmp.lt.s32.totalorder %s16, 1
      %s183 = scalar_select %p182, %s16, 1
      %s184 = smul.addr %s183, 4
      %s185 = scalar_lea.vmem %s3, %s184
      %p186 = pneg %p131
      %p187 = pneg %p128
      %p188 = scmp.lt.s32.totalorder %s16, 1
      %s189 = scalar_select %p188, %s16, 1
      %s190 = smul.addr %s189, 4
      %s191 = scalar_lea.vmem %s4, %s190
      %p192 = scmp.lt.s32.totalorder %s16, 1
      %s193 = scalar_select %p192, %s16, 1
      %s194 = smul.addr %s193, 8
      %s195 = scalar_lea.vmem %s0, %s194
      %p196 = scmp.lt.s32.totalorder %s16, 1
      %s197 = scalar_select %p196, %s16, 1
      %s198 = smul.addr %s197, 4
      %s199 = scalar_lea.vmem %s3, %s198
      %p200 = scmp.lt.s32.totalorder %s16, 1
      %s201 = scalar_select %p200, %s16, 1
      %s202 = smul.addr %s201, 4
      %s203 = scalar_lea.vmem %s4, %s202
      %v205 = vld [vmem:[%s195] sm:$0xff]
      %v206 = vpack.c.bf16 %v205, %v205
      %v207 = vld [vmem:[%s1] sm:$0xf]
      %v208 = vld [vmem:[%s1 + $0x4] sm:$0xf]
      %v209 = vld [vmem:[%s1 + $0x8] sm:$0xf]
      %v210 = vld [vmem:[%s1 + $0xc] sm:$0xf]
      %v211 = vld [vmem:[%s2] sm:$0x1]
      %v213 = vlaneseq
      %v214 = vshrl.u32 %v213, 7
      %v215 = vsub.s32 0, %v214
      %v216 = vrot.slane %v211, %v215
      %v222 = vunpack.c.l.b16 %v207
      %v223 = vunpack.c.l.b16 %v208
      %v224 = vunpack.c.l.b16 %v209
      %v225 = vunpack.c.l.b16 %v210
      %v226 = vpack.c.b16 %v223, %v222
      %v227 = vpack.c.b16 %v225, %v224
      %vm230 = vcmask 261120
      %v232 = vsel %vm230, %v206, 0
      %234 = vmatprep.subr.bf16.mxu0 0
      %235 = vmatpush1.bf16.msra.mxu0 0
      %236 = vmatprep.subr.bf16.mxu0 0
      %237 = vmatpush1.bf16.msra.mxu0 0
      %238 = vmatprep.subr.bf16.mxu0 0
      %239 = vmatpush1.bf16.msra.mxu0 0
      %240 = vmatprep.subr.bf16.mxu0 0
      %241 = vmatpush1.bf16.msra.mxu0 0
      %242 = vmatprep.subr.bf16.mxu0 0
      %243 = vmatpush1.bf16.msra.mxu0 0
      %244 = vmatprep.subr.bf16.mxu0 0
      %245 = vmatpush1.bf16.msra.mxu0 0
      %246 = vmatprep.subr.bf16.mxu0 0
      %247 = vmatpush1.bf16.msra.mxu0 %v227
      %248 = vmatprep.subr.bf16.mxu0 0
      %249 = vmatpush1.bf16.msra.mxu0 %v226
      %250 = vmatprep.subr.bf16.mxu0 0
      %251 = vmatpush2.bf16.msra.mxu0 0
      %252 = vmatprep.subr.bf16.mxu0 0
      %253 = vmatpush2.bf16.msra.mxu0 0
      %254 = vmatprep.subr.bf16.mxu0 0
      %255 = vmatpush2.bf16.msra.mxu0 0
      %256 = vmatprep.subr.bf16.mxu0 0
      %257 = vmatpush2.bf16.msra.mxu0 0
      %258 = vmatprep.subr.bf16.mxu0 0
      %259 = vmatpush2.bf16.msra.mxu0 0
      %260 = vmatprep.subr.bf16.mxu0 0
      %261 = vmatpush2.bf16.msra.mxu0 0
      %262 = vmatprep.subr.bf16.mxu0 0
      %263 = vmatpush2.bf16.msra.mxu0 0
      %264 = vmatprep.subr.bf16.mxu0 0
      %265 = vmatpush2.bf16.msra.mxu0 0
      %266 = vmatprep.mubr.bf16.mxu0 0
      %267 = vmatmul.mubr.bf16.gmra.mxu0 %v232
      %v268 = vpop.f32.mrf.mxu0
      %v269 = vadd.f32 %v216, %v268
      %v270 = vpop.f32.mrf.mxu0
      %v271 = vpop.f32.mrf.mxu0
      %v272 = vpop.f32.mrf.mxu0
      %273 = vdwg.mxu0
      %v274 = vpack.c.bf16 %v269, %v269
      %vm275 = vcmask 257024
      %276 = vst.msk [vmem:[%s199] sm:$0xf] %vm275, %v274
      %v278 = vunpack.c.l.b16 %v274
      %v279 = vpack.c.b16 %v278, %v278
      %280 = vrot.lane.b32.xlu0 %v279, 96
      %v281 = vpop.permute.xlu0 %280
      %283 = vst.msk [vmem:[%s203] sm:$0xf] %vm275, %v281
      %p284 = scmp.lt.s32.totalorder %s16, 1
      %s285 = scalar_select %p284, %s16, 1
      %s286 = smul.addr %s285, 4
      %s287 = scalar_lea.vmem %s3, %s286
      %p288 = scmp.lt.s32.totalorder %s16, 1
      %s289 = scalar_select %p288, %s16, 1
      %s290 = smul.addr %s289, 4
      %s291 = scalar_lea.vmem %s4, %s290
      // Predicated region
      $region33: #{transformer_forward.38} parent=31 // pred_check
        %p292 = pneg %p102
      $region34: #{transformer_forward.38} parent=31 // pred_check_branch
        %294 = sbr.rel (%p292) target = $region36
      $region35: #{transformer_forward.38} parent=31 // pred_region
        _
      $region36: #{transformer_forward.38} parent=31 // pred_fallthru
        _
      // Predicated region
      $region37: #{transformer_forward.38} parent=31 // pred_check
        %p295 = pneg %p128
      $region38: #{transformer_forward.38} parent=31 // pred_check_branch
        %297 = sbr.rel (%p295) target = $region40
      $region39: #{transformer_forward.38} parent=31 // pred_region
        _
      $region40: #{transformer_forward.38} parent=31 // pred_fallthru
        _
    $region32: #{transformer_forward.38} parent=5 // pred_fallthru
      _
    %p298 = scmp.le.s32.totalorder 2, %s11
    // Predicated region
    $region41: #{transformer_forward.38} parent=5 // pred_check
      %p299 = pneg %p298
    $region42: #{transformer_forward.38} parent=5 // pred_check_branch
      %301 = sbr.rel (%p299) target = $region44
    $region43: #{transformer_forward.38} parent=5 // pred_region
      %s302 = ssub.s32 %s11, 2
      // Predicated region
      $region45: #{transformer_forward.38} parent=43 // pred_check
        %p303 = pneg %p108
      $region46: #{transformer_forward.38} parent=43 // pred_check_branch
        %305 = sbr.rel (%p303) target = $region48
      $region47: #{transformer_forward.38} parent=43 // pred_region
        %p306 = scmp.lt.s32.totalorder %s17, 1
        %s307 = scalar_select %p306, %s17, 1
        %s308 = smul.addr %s307, 4
        %s309 = scalar_lea.vmem %s3, %s308
      $region48: #{transformer_forward.38} parent=43 // pred_fallthru
        _
      // Predicated region
      $region49: #{transformer_forward.38} parent=43 // pred_check
        %p310 = pneg %p134
      $region50: #{transformer_forward.38} parent=43 // pred_check_branch
        %312 = sbr.rel (%p310) target = $region52
      $region51: #{transformer_forward.38} parent=43 // pred_region
        %p313 = scmp.lt.s32.totalorder %s17, 1
        %s314 = scalar_select %p313, %s17, 1
        %s315 = smul.addr %s314, 4
        %s316 = scalar_lea.vmem %s4, %s315
      $region52: #{transformer_forward.38} parent=43 // pred_fallthru
        _
    $region44: #{transformer_forward.38} parent=5 // pred_fallthru
      _
  $region6: #{transformer_forward.38} parent=0 // loop_footer
    %s15 = sadd.s32 1, %s11
  $region7: #{transformer_forward.38} parent=0 // loop_footer_branch
    %10 = sbr.rel target = $region3
  $region8: #{transformer_forward.38} parent=0 // loop_exit
    _

// kernel: transformer_forward.37
$region0: #{transformer_forward.37}
  #allocation0 [shape = 'u32[]', space=smem, size = 0x4, offset = 0x4, fixed_abs, tag = 'smem constant byte address 0x4 - core index']
  #allocation1 [shape = 'u32[144,128]{1,0:T(1,128)}', space=vmem, size = 0x12000, scoped, tag = 'internal scratch']
  %s0 = inlined_call_operand.vmem [shape: f32[16,32], index: 0, kind: input, shape index: {}]
  %s1 = inlined_call_operand.vmem [shape: bf16[32,32], index: 1, kind: input, shape index: {}]
  %s2 = inlined_call_operand.vmem [shape: f32[1,32], index: 2, kind: input, shape index: {}]
  %s3 = inlined_call_operand.vmem [shape: bf16[16,32], index: 3, kind: output, shape index: {}]
  %s4 = sld [smem:[#allocation0]]
  $region45: #{transformer_forward.37} parent=0
    _
  %s6 = ssub.s32 1, %s4
  %s7 = scalar_select 0, %s6, %s4
  loop: start=0, step=1, limit=4
  $region2: #{transformer_forward.37} parent=0 // loop_pre_header
    _
  $region3: #{transformer_forward.37} parent=0 // loop_header
    %s9 = sphi 0, %s13
    %p10 = scmp.ge.s32.totalorder %s9, 4
    %s19 = sphi 0, %s21
    %s22 = sphi 0, %s19
    %s23 = sphi 0, %s22
    %s39 = sphi 0, %s23
    %s43 = sphi 0, %s43
    %s45 = sphi 0, %s43
    %s46 = sphi 0, %s45
    %s60 = sphi 0, %s46
    %s64 = sphi 0, %s64
    %s66 = sphi 0, %s64
    %s67 = sphi 0, %s66
    %s81 = sphi 0, %s67
    %s87 = sphi 0, %s89
    %s90 = sphi 0, %s87
    %s91 = sphi 0, %s90
    %s107 = sphi 0, %s91
  $region4: #{transformer_forward.37} parent=0 // loop_header_branch
    %12 = sbr.rel (%p10) target = $region8
  $region5: #{transformer_forward.37} parent=0 // loop_body
    %s14 = ssub.s32 %s9, 1
    %s15 = ssub.s32 %s9, 2
    %s16 = sadd.s32 %s9, 1
    %s17 = ssub.s32 %s9, %s16
    %p18 = scmp.eq.s32.totalorder %s17, 0
    %s20 = sadd.s32 %s19, 1
    %s21 = scalar_select %p18, %s19, %s20
    %p24 = pneg %p18
    %p25 = scmp.eq.s32.totalorder %s9, 1
    %p26 = por %p24, %p25
    %p27 = scmp.ne.s32.totalorder %s19, %s22
    %p28 = scmp.eq.s32.totalorder %s9, 0
    %p29 = por %p27, %p28
    %p30 = scmp.ne.s32.totalorder %s19, %s22
    %p31 = scmp.eq.s32.totalorder %s14, 1
    %p32 = por %p30, %p31
    %p33 = scmp.ne.s32.totalorder %s22, %s23
    %p34 = scmp.eq.s32.totalorder %s14, 0
    %p35 = por %p33, %p34
    %p36 = scmp.ne.s32.totalorder %s22, %s23
    %p37 = scmp.eq.s32.totalorder %s15, 1
    %p38 = por %p36, %p37
    %p40 = scmp.ne.s32.totalorder %s23, %s39
    %p41 = scmp.eq.s32.totalorder %s15, 0
    %p42 = por %p40, %p41
    %s44 = sadd.s32 %s43, 1
    %p47 = scmp.eq.s32.totalorder %s9, 1
    %p48 = scmp.ne.s32.totalorder %s43, %s45
    %p49 = scmp.eq.s32.totalorder %s9, 0
    %p50 = por %p48, %p49
    %p51 = scmp.ne.s32.totalorder %s43, %s45
    %p52 = scmp.eq.s32.totalorder %s14, 1
    %p53 = por %p51, %p52
    %p54 = scmp.ne.s32.totalorder %s45, %s46
    %p55 = scmp.eq.s32.totalorder %s14, 0
    %p56 = por %p54, %p55
    %p57 = scmp.ne.s32.totalorder %s45, %s46
    %p58 = scmp.eq.s32.totalorder %s15, 1
    %p59 = por %p57, %p58
    %p61 = scmp.ne.s32.totalorder %s46, %s60
    %p62 = scmp.eq.s32.totalorder %s15, 0
    %p63 = por %p61, %p62
    %s65 = sadd.s32 %s64, 1
    %p68 = scmp.eq.s32.totalorder %s9, 1
    %p69 = scmp.ne.s32.totalorder %s64, %s66
    %p70 = scmp.eq.s32.totalorder %s9, 0
    %p71 = por %p69, %p70
    %p72 = scmp.ne.s32.totalorder %s64, %s66
    %p73 = scmp.eq.s32.totalorder %s14, 1
    %p74 = por %p72, %p73
    %p75 = scmp.ne.s32.totalorder %s66, %s67
    %p76 = scmp.eq.s32.totalorder %s14, 0
    %p77 = por %p75, %p76
    %p78 = scmp.ne.s32.totalorder %s66, %s67
    %p79 = scmp.eq.s32.totalorder %s15, 1
    %p80 = por %p78, %p79
    %p82 = scmp.ne.s32.totalorder %s67, %s81
    %p83 = scmp.eq.s32.totalorder %s15, 0
    %p84 = por %p82, %p83
    %s85 = ssub.s32 %s9, %s16
    %p86 = scmp.eq.s32.totalorder %s85, 0
    %s88 = sadd.s32 %s87, 1
    %s89 = scalar_select %p86, %s87, %s88
    %p92 = pneg %p86
    %p93 = scmp.eq.s32.totalorder %s9, 1
    %p94 = por %p92, %p93
    %p95 = scmp.ne.s32.totalorder %s87, %s90
    %p96 = scmp.eq.s32.totalorder %s9, 0
    %p97 = por %p95, %p96
    %p98 = scmp.ne.s32.totalorder %s87, %s90
    %p99 = scmp.eq.s32.totalorder %s14, 1
    %p100 = por %p98, %p99
    %p101 = scmp.ne.s32.totalorder %s90, %s91
    %p102 = scmp.eq.s32.totalorder %s14, 0
    %p103 = por %p101, %p102
    %p104 = scmp.ne.s32.totalorder %s90, %s91
    %p105 = scmp.eq.s32.totalorder %s15, 1
    %p106 = por %p104, %p105
    %p108 = scmp.ne.s32.totalorder %s91, %s107
    %p109 = scmp.eq.s32.totalorder %s15, 0
    %p110 = por %p108, %p109
    %p111 = scmp.le.s32.totalorder 1, %s9
    %p112 = scmp.lt.s32.totalorder %s9, 3
    %p113 = pnand %p111, %p112
    %p114 = pneg %p113
    // Predicated region
    $region9: #{transformer_forward.37} parent=5 // pred_check
      _
    $region10: #{transformer_forward.37} parent=5 // pred_check_branch
      %116 = sbr.rel (%p113) target = $region12
    $region11: #{transformer_forward.37} parent=5 // pred_region
      %s117 = ssub.s32 %s9, 1
      // Predicated region
      $region13: #{transformer_forward.37} parent=11 // pred_check
        %p118 = pneg %p56
      $region14: #{transformer_forward.37} parent=11 // pred_check_branch
        %120 = sbr.rel (%p118) target = $region16
      $region15: #{transformer_forward.37} parent=11 // pred_region
        _
      $region16: #{transformer_forward.37} parent=11 // pred_fallthru
        _
      // Predicated region
      $region17: #{transformer_forward.37} parent=11 // pred_check
        %p121 = pneg %p77
      $region18: #{transformer_forward.37} parent=11 // pred_check_branch
        %123 = sbr.rel (%p121) target = $region20
      $region19: #{transformer_forward.37} parent=11 // pred_region
        _
      $region20: #{transformer_forward.37} parent=11 // pred_fallthru
        _
    $region12: #{transformer_forward.37} parent=5 // pred_fallthru
      _
    %p124 = scmp.lt.s32.totalorder %s9, 2
    // Predicated region
    $region21: #{transformer_forward.37} parent=5 // pred_check
      %p125 = pneg %p124
    $region22: #{transformer_forward.37} parent=5 // pred_check_branch
      %127 = sbr.rel (%p125) target = $region24
    $region23: #{transformer_forward.37} parent=5 // pred_region
      // Predicated region
      $region25: #{transformer_forward.37} parent=23 // pred_check
        %p128 = pneg %p29
      $region26: #{transformer_forward.37} parent=23 // pred_check_branch
        %130 = sbr.rel (%p128) target = $region28
      $region27: #{transformer_forward.37} parent=23 // pred_region
        %p131 = scmp.lt.s32.totalorder %s9, 1
        %s132 = scalar_select %p131, %s9, 1
        %s133 = smul.addr %s132, 8
        %s134 = scalar_lea.vmem %s0, %s133
      $region28: #{transformer_forward.37} parent=23 // pred_fallthru
        _
    $region24: #{transformer_forward.37} parent=5 // pred_fallthru
      _
    %p135 = scmp.le.s32.totalorder 1, %s9
    %p136 = scmp.lt.s32.totalorder %s9, 3
    %p137 = pnand %p135, %p136
    %p138 = pneg %p137
    // Predicated region
    $region29: #{transformer_forward.37} parent=5 // pred_check
      _
    $region30: #{transformer_forward.37} parent=5 // pred_check_branch
      %140 = sbr.rel (%p137) target = $region32
    $region31: #{transformer_forward.37} parent=5 // pred_region
      %s141 = ssub.s32 %s9, 1
      %p142 = scmp.lt.s32.totalorder %s14, 1
      %s143 = scalar_select %p142, %s14, 1
      %s144 = smul.addr %s143, 8
      %s145 = scalar_lea.vmem %s0, %s144
      %p146 = pneg %p35
      %p147 = pneg %p32
      %p148 = pneg %p56
      %p149 = pneg %p53
      %p150 = pneg %p77
      %p151 = pneg %p74
      %p152 = pneg %p103
      %p153 = pneg %p100
      %p154 = scmp.lt.s32.totalorder %s14, 1
      %s155 = scalar_select %p154, %s14, 1
      %s156 = smul.addr %s155, 4
      %s157 = scalar_lea.vmem %s3, %s156
      %p158 = scmp.lt.s32.totalorder %s14, 1
      %s159 = scalar_select %p158, %s14, 1
      %s160 = smul.addr %s159, 8
      %s161 = scalar_lea.vmem %s0, %s160
      %p162 = scmp.lt.s32.totalorder %s14, 1
      %s163 = scalar_select %p162, %s14, 1
      %s164 = smul.addr %s163, 4
      %s165 = scalar_lea.vmem %s3, %s164
      %v167 = vld [vmem:[%s161] sm:$0xff]
      %v168 = vpack.c.bf16 %v167, %v167
      %v169 = vld [vmem:[%s1] sm:$0xf]
      %v170 = vld [vmem:[%s1 + $0x4] sm:$0xf]
      %v171 = vld [vmem:[%s1 + $0x8] sm:$0xf]
      %v172 = vld [vmem:[%s1 + $0xc] sm:$0xf]
      %v173 = vld [vmem:[%s2] sm:$0x1]
      %v175 = vlaneseq
      %v176 = vshrl.u32 %v175, 7
      %v177 = vsub.s32 0, %v176
      %v178 = vrot.slane %v173, %v177
      %v184 = vunpack.c.l.b16 %v169
      %v185 = vunpack.c.l.b16 %v170
      %v186 = vunpack.c.l.b16 %v171
      %v187 = vunpack.c.l.b16 %v172
      %v188 = vpack.c.b16 %v185, %v184
      %v189 = vpack.c.b16 %v187, %v186
      %vm192 = vcmask 261120
      %v194 = vsel %vm192, %v168, 0
      %196 = vmatprep.subr.bf16.mxu0 0
      %197 = vmatpush1.bf16.msra.mxu0 0
      %198 = vmatprep.subr.bf16.mxu0 0
      %199 = vmatpush1.bf16.msra.mxu0 0
      %200 = vmatprep.subr.bf16.mxu0 0
      %201 = vmatpush1.bf16.msra.mxu0 0
      %202 = vmatprep.subr.bf16.mxu0 0
      %203 = vmatpush1.bf16.msra.mxu0 0
      %204 = vmatprep.subr.bf16.mxu0 0
      %205 = vmatpush1.bf16.msra.mxu0 0
      %206 = vmatprep.subr.bf16.mxu0 0
      %207 = vmatpush1.bf16.msra.mxu0 0
      %208 = vmatprep.subr.bf16.mxu0 0
      %209 = vmatpush1.bf16.msra.mxu0 %v189
      %210 = vmatprep.subr.bf16.mxu0 0
      %211 = vmatpush1.bf16.msra.mxu0 %v188
      %212 = vmatprep.subr.bf16.mxu0 0
      %213 = vmatpush2.bf16.msra.mxu0 0
      %214 = vmatprep.subr.bf16.mxu0 0
      %215 = vmatpush2.bf16.msra.mxu0 0
      %216 = vmatprep.subr.bf16.mxu0 0
      %217 = vmatpush2.bf16.msra.mxu0 0
      %218 = vmatprep.subr.bf16.mxu0 0
      %219 = vmatpush2.bf16.msra.mxu0 0
      %220 = vmatprep.subr.bf16.mxu0 0
      %221 = vmatpush2.bf16.msra.mxu0 0
      %222 = vmatprep.subr.bf16.mxu0 0
      %223 = vmatpush2.bf16.msra.mxu0 0
      %224 = vmatprep.subr.bf16.mxu0 0
      %225 = vmatpush2.bf16.msra.mxu0 0
      %226 = vmatprep.subr.bf16.mxu0 0
      %227 = vmatpush2.bf16.msra.mxu0 0
      %228 = vmatprep.mubr.bf16.mxu0 0
      %229 = vmatmul.mubr.bf16.gmra.mxu0 %v194
      %v230 = vpop.f32.mrf.mxu0
      %v231 = vadd.f32 %v178, %v230
      %v232 = vpop.f32.mrf.mxu0
      %v233 = vpop.f32.mrf.mxu0
      %v234 = vpop.f32.mrf.mxu0
      %235 = vdwg.mxu0
      %v236 = vmul.f32 %v231, 0.35355338
      %v237 = vpack.c.bf16 %v236, %v236
      %vm238 = vcmask 257024
      %239 = vst.msk [vmem:[%s165] sm:$0xf] %vm238, %v237
      %p240 = scmp.lt.s32.totalorder %s14, 1
      %s241 = scalar_select %p240, %s14, 1
      %s242 = smul.addr %s241, 4
      %s243 = scalar_lea.vmem %s3, %s242
      // Predicated region
      $region33: #{transformer_forward.37} parent=31 // pred_check
        %p244 = pneg %p100
      $region34: #{transformer_forward.37} parent=31 // pred_check_branch
        %246 = sbr.rel (%p244) target = $region36
      $region35: #{transformer_forward.37} parent=31 // pred_region
        _
      $region36: #{transformer_forward.37} parent=31 // pred_fallthru
        _
    $region32: #{transformer_forward.37} parent=5 // pred_fallthru
      _
    %p247 = scmp.le.s32.totalorder 2, %s9
    // Predicated region
    $region37: #{transformer_forward.37} parent=5 // pred_check
      %p248 = pneg %p247
    $region38: #{transformer_forward.37} parent=5 // pred_check_branch
      %250 = sbr.rel (%p248) target = $region40
    $region39: #{transformer_forward.37} parent=5 // pred_region
      %s251 = ssub.s32 %s9, 2
      // Predicated region
      $region41: #{transformer_forward.37} parent=39 // pred_check
        %p252 = pneg %p106
      $region42: #{transformer_forward.37} parent=39 // pred_check_branch
        %254 = sbr.rel (%p252) target = $region44
      $region43: #{transformer_forward.37} parent=39 // pred_region
        %p255 = scmp.lt.s32.totalorder %s15, 1
        %s256 = scalar_select %p255, %s15, 1
        %s257 = smul.addr %s256, 4
        %s258 = scalar_lea.vmem %s3, %s257
      $region44: #{transformer_forward.37} parent=39 // pred_fallthru
        _
    $region40: #{transformer_forward.37} parent=5 // pred_fallthru
      _
  $region6: #{transformer_forward.37} parent=0 // loop_footer
    %s13 = sadd.s32 1, %s9
  $region7: #{transformer_forward.37} parent=0 // loop_footer_branch
    %8 = sbr.rel target = $region3
  $region8: #{transformer_forward.37} parent=0 // loop_exit
    _

// kernel: transformer_forward.50
$region0: #{transformer_forward.50}
  #allocation0 [shape = 'u32[]', space=smem, size = 0x4, offset = 0x4, fixed_abs, tag = 'smem constant byte address 0x4 - core index']
  #allocation1 [shape = 'u32[144,128]{1,0:T(1,128)}', space=vmem, size = 0x12000, scoped, tag = 'internal scratch']
  #allocation2 [shape = 'f32[8,1]{1,0:T(8,128)}', space=vmem, size = 0x1000, scoped, tag = 'scratch operand']
  #allocation3 [shape = 'f32[8,1]{1,0:T(8,128)}', space=vmem, size = 0x1000, scoped, tag = 'scratch operand']
  %s0 = inlined_call_operand.vmem [shape: f32[16,32], index: 0, kind: input, shape index: {}]
  %s1 = inlined_call_operand.vmem [shape: bf16[32,11], index: 1, kind: input, shape index: {}]
  %s2 = inlined_call_operand.vmem [shape: f32[16,1], index: 2, kind: output, shape index: {0}]
  %s3 = inlined_call_operand.vmem [shape: f32[16,1], index: 3, kind: output, shape index: {1}]
  %4 = xla_tuple %s2, %s3
  %s5 = sld [smem:[#allocation0]]
  $region57: #{transformer_forward.50} parent=0
    _
  %s7 = ssub.s32 1, %s5
  %s8 = scalar_select 0, %s7, %s5
  loop: start=0, step=1, limit=4
  $region2: #{transformer_forward.50} parent=0 // loop_pre_header
    _
  $region3: #{transformer_forward.50} parent=0 // loop_header
    %s10 = sphi 0, %s14
    %p11 = scmp.ge.s32.totalorder %s10, 4
    %s17 = sphi 0, %s29
    %s18 = sphi 0, %s25
    %s19 = sphi 0, %s17
    %s20 = sphi 0, %s18
    %s21 = sphi 0, %s19
    %s22 = sphi 0, %s20
    %s32 = sphi 0, %s34
    %s35 = sphi 0, %s32
    %s36 = sphi 0, %s35
    %s52 = sphi 0, %s36
    %s58 = sphi 0, %s60
    %s61 = sphi 0, %s58
    %s62 = sphi 0, %s61
    %s78 = sphi 0, %s62
    %s84 = sphi 0, %s86
    %s87 = sphi 0, %s84
    %s88 = sphi 0, %s87
    %s104 = sphi 0, %s88
    %s110 = sphi 0, %s112
    %s113 = sphi 0, %s110
    %s114 = sphi 0, %s113
    %s130 = sphi 0, %s114
  $region4: #{transformer_forward.50} parent=0 // loop_header_branch
    %13 = sbr.rel (%p11) target = $region8
  $region5: #{transformer_forward.50} parent=0 // loop_body
    %s15 = ssub.s32 %s10, 1
    %s16 = ssub.s32 %s10, 2
    %s23 = sadd.s32 1, %s18
    %p24 = scmp.ge.s32.totalorder %s23, 1
    %s25 = scalar_select %p24, 0, %s23
    %s26 = sadd.s32 1, %s17
    %s27 = scalar_select %p24, %s26, %s17
    %p28 = scmp.ge.s32.totalorder %s27, 2
    %s29 = scalar_select %p28, 0, %s27
    %s30 = ssub.s32 %s17, %s29
    %p31 = scmp.eq.s32.totalorder %s30, 0
    %s33 = sadd.s32 %s32, 1
    %s34 = scalar_select %p31, %s32, %s33
    %p37 = pneg %p31
    %p38 = scmp.eq.s32.totalorder %s10, 1
    %p39 = por %p37, %p38
    %p40 = scmp.ne.s32.totalorder %s32, %s35
    %p41 = scmp.eq.s32.totalorder %s10, 0
    %p42 = por %p40, %p41
    %p43 = scmp.ne.s32.totalorder %s32, %s35
    %p44 = scmp.eq.s32.totalorder %s15, 1
    %p45 = por %p43, %p44
    %p46 = scmp.ne.s32.totalorder %s35, %s36
    %p47 = scmp.eq.s32.totalorder %s15, 0
    %p48 = por %p46, %p47
    %p49 = scmp.ne.s32.totalorder %s35, %s36
    %p50 = scmp.eq.s32.totalorder %s16, 1
    %p51 = por %p49, %p50
    %p53 = scmp.ne.s32.totalorder %s36, %s52
    %p54 = scmp.eq.s32.totalorder %s16, 0
    %p55 = por %p53, %p54
    %s56 = ssub.s32 %s18, %s25
    %p57 = scmp.eq.s32.totalorder %s56, 0
    %s59 = sadd.s32 %s58, 1
    %s60 = scalar_select %p57, %s58, %s59
    %p63 = pneg %p57
    %p64 = scmp.eq.s32.totalorder %s10, 1
    %p65 = por %p63, %p64
    %p66 = scmp.ne.s32.totalorder %s58, %s61
    %p67 = scmp.eq.s32.totalorder %s10, 0
    %p68 = por %p66, %p67
    %p69 = scmp.ne.s32.totalorder %s58, %s61
    %p70 = scmp.eq.s32.totalorder %s15, 1
    %p71 = por %p69, %p70
    %p72 = scmp.ne.s32.totalorder %s61, %s62
    %p73 = scmp.eq.s32.totalorder %s15, 0
    %p74 = por %p72, %p73
    %p75 = scmp.ne.s32.totalorder %s61, %s62
    %p76 = scmp.eq.s32.totalorder %s16, 1
    %p77 = por %p75, %p76
    %p79 = scmp.ne.s32.totalorder %s62, %s78
    %p80 = scmp.eq.s32.totalorder %s16, 0
    %p81 = por %p79, %p80
    %s82 = ssub.s32 %s17, %s29
    %p83 = scmp.eq.s32.totalorder %s82, 0
    %s85 = sadd.s32 %s84, 1
    %s86 = scalar_select %p83, %s84, %s85
    %p89 = pneg %p83
    %p90 = scmp.eq.s32.totalorder %s10, 1
    %p91 = por %p89, %p90
    %p92 = scmp.ne.s32.totalorder %s84, %s87
    %p93 = scmp.eq.s32.totalorder %s10, 0
    %p94 = por %p92, %p93
    %p95 = scmp.ne.s32.totalorder %s84, %s87
    %p96 = scmp.eq.s32.totalorder %s15, 1
    %p97 = por %p95, %p96
    %p98 = scmp.ne.s32.totalorder %s87, %s88
    %p99 = scmp.eq.s32.totalorder %s15, 0
    %p100 = por %p98, %p99
    %p101 = scmp.ne.s32.totalorder %s87, %s88
    %p102 = scmp.eq.s32.totalorder %s16, 1
    %p103 = por %p101, %p102
    %p105 = scmp.ne.s32.totalorder %s88, %s104
    %p106 = scmp.eq.s32.totalorder %s16, 0
    %p107 = por %p105, %p106
    %s108 = ssub.s32 %s17, %s29
    %p109 = scmp.eq.s32.totalorder %s108, 0
    %s111 = sadd.s32 %s110, 1
    %s112 = scalar_select %p109, %s110, %s111
    %p115 = pneg %p109
    %p116 = scmp.eq.s32.totalorder %s10, 1
    %p117 = por %p115, %p116
    %p118 = scmp.ne.s32.totalorder %s110, %s113
    %p119 = scmp.eq.s32.totalorder %s10, 0
    %p120 = por %p118, %p119
    %p121 = scmp.ne.s32.totalorder %s110, %s113
    %p122 = scmp.eq.s32.totalorder %s15, 1
    %p123 = por %p121, %p122
    %p124 = scmp.ne.s32.totalorder %s113, %s114
    %p125 = scmp.eq.s32.totalorder %s15, 0
    %p126 = por %p124, %p125
    %p127 = scmp.ne.s32.totalorder %s113, %s114
    %p128 = scmp.eq.s32.totalorder %s16, 1
    %p129 = por %p127, %p128
    %p131 = scmp.ne.s32.totalorder %s114, %s130
    %p132 = scmp.eq.s32.totalorder %s16, 0
    %p133 = por %p131, %p132
    %p134 = scmp.le.s32.totalorder 1, %s10
    %p135 = scmp.lt.s32.totalorder %s10, 3
    %p136 = pnand %p134, %p135
    %p137 = pneg %p136
    // Predicated region
    $region9: #{transformer_forward.50} parent=5 // pred_check
      _
    $region10: #{transformer_forward.50} parent=5 // pred_check_branch
      %139 = sbr.rel (%p136) target = $region12
    $region11: #{transformer_forward.50} parent=5 // pred_region
      %s140 = ssub.s32 %s10, 1
      // Predicated region
      $region13: #{transformer_forward.50} parent=11 // pred_check
        %p141 = pneg %p74
      $region14: #{transformer_forward.50} parent=11 // pred_check_branch
        %143 = sbr.rel (%p141) target = $region16
      $region15: #{transformer_forward.50} parent=11 // pred_region
        %p144 = scmp.lt.s32.totalorder %s20, 0
        %s145 = scalar_select %p144, %s20, 0
        %s146 = smul.addr %s145, 4
        %s147 = scalar_lea.vmem %s1, %s146
      $region16: #{transformer_forward.50} parent=11 // pred_fallthru
        _
    $region12: #{transformer_forward.50} parent=5 // pred_fallthru
      _
    %p148 = scmp.lt.s32.totalorder %s10, 2
    // Predicated region
    $region17: #{transformer_forward.50} parent=5 // pred_check
      %p149 = pneg %p148
    $region18: #{transformer_forward.50} parent=5 // pred_check_branch
      %151 = sbr.rel (%p149) target = $region20
    $region19: #{transformer_forward.50} parent=5 // pred_region
      // Predicated region
      $region21: #{transformer_forward.50} parent=19 // pred_check
        %p152 = pneg %p42
      $region22: #{transformer_forward.50} parent=19 // pred_check_branch
        %154 = sbr.rel (%p152) target = $region24
      $region23: #{transformer_forward.50} parent=19 // pred_region
        %p155 = scmp.lt.s32.totalorder %s17, 1
        %s156 = scalar_select %p155, %s17, 1
        %s157 = smul.addr %s156, 8
        %s158 = scalar_lea.vmem %s0, %s157
      $region24: #{transformer_forward.50} parent=19 // pred_fallthru
        _
    $region20: #{transformer_forward.50} parent=5 // pred_fallthru
      _
    %p159 = scmp.le.s32.totalorder 1, %s10
    %p160 = scmp.lt.s32.totalorder %s10, 3
    %p161 = pnand %p159, %p160
    %p162 = pneg %p161
    // Predicated region
    $region25: #{transformer_forward.50} parent=5 // pred_check
      _
    $region26: #{transformer_forward.50} parent=5 // pred_check_branch
      %164 = sbr.rel (%p161) target = $region28
    $region27: #{transformer_forward.50} parent=5 // pred_region
      %s165 = ssub.s32 %s10, 1
      %p166 = scmp.lt.s32.totalorder %s19, 1
      %s167 = scalar_select %p166, %s19, 1
      %s168 = smul.addr %s167, 8
      %s169 = scalar_lea.vmem %s0, %s168
      %p170 = pneg %p48
      %p171 = pneg %p45
      %p172 = scmp.lt.s32.totalorder %s20, 0
      %s173 = scalar_select %p172, %s20, 0
      %s174 = smul.addr %s173, 4
      %s175 = scalar_lea.vmem %s1, %s174
      %p176 = pneg %p74
      %p177 = pneg %p71
      %p178 = pneg %p100
      %p179 = pneg %p97
      %p180 = scmp.lt.s32.totalorder %s19, 1
      %s181 = scalar_select %p180, %s19, 1
      %s182 = smul.addr %s181, 8
      %s183 = scalar_lea.vmem %s2, %s182
      %p184 = pneg %p126
      %p185 = pneg %p123
      %p186 = scmp.lt.s32.totalorder %s19, 1
      %s187 = scalar_select %p186, %s19, 1
      %s188 = smul.addr %s187, 8
      %s189 = scalar_lea.vmem %s3, %s188
      %p190 = scmp.lt.s32.totalorder %s19, 1
      %s191 = scalar_select %p190, %s19, 1
      %s192 = smul.addr %s191, 8
      %s193 = scalar_lea.vmem %s0, %s192
      %p194 = scmp.lt.s32.totalorder %s20, 0
      %s195 = scalar_select %p194, %s20, 0
      %s196 = smul.addr %s195, 4
      %s197 = scalar_lea.vmem %s1, %s196
      %p198 = scmp.lt.s32.totalorder %s19, 1
      %s199 = scalar_select %p198, %s19, 1
      %s200 = smul.addr %s199, 8
      %s201 = scalar_lea.vmem %s2, %s200
      %p202 = scmp.lt.s32.totalorder %s19, 1
      %s203 = scalar_select %p202, %s19, 1
      %s204 = smul.addr %s203, 8
      %s205 = scalar_lea.vmem %s3, %s204
      %p207 = scmp.eq.s32.totalorder %s20, 0
      // Predicated region
      $region29: #{transformer_forward.50} parent=27 // pred_check
        %p208 = pneg %p207
      $region30: #{transformer_forward.50} parent=27 // pred_check_branch
        %210 = sbr.rel (%p208) target = $region32
      $region31: #{transformer_forward.50} parent=27 // pred_region
        %vm211 = vcmask 7168
        %212 = vst.msk [vmem:[#allocation2] sm:$0xff] %vm211, -inf
        %213 = vst.msk [vmem:[#allocation3] sm:$0xff] %vm211, 0.0
      $region32: #{transformer_forward.50} parent=27 // pred_fallthru
        _
      %v214 = vld [vmem:[%s193] sm:$0xff]
      %v215 = vpack.c.bf16 %v214, %v214
      %v216 = vld [vmem:[%s197] sm:$0xf]
      %v217 = vld [vmem:[%s197 + $0x4] sm:$0xf]
      %v218 = vld [vmem:[%s197 + $0x8] sm:$0xf]
      %v219 = vld [vmem:[%s197 + $0xc] sm:$0xf]
      %v224 = vunpack.c.l.b16 %v216
      %v225 = vunpack.c.l.b16 %v217
      %v226 = vunpack.c.l.b16 %v218
      %v227 = vunpack.c.l.b16 %v219
      %v228 = vpack.c.b16 %v225, %v224
      %v229 = vpack.c.b16 %v227, %v226
      %vm232 = vcmask 261120
      %v234 = vsel %vm232, %v215, 0
      %236 = vmatprep.subr.bf16.mxu0 0
      %237 = vmatpush1.bf16.msra.mxu0 0
      %238 = vmatprep.subr.bf16.mxu0 0
      %239 = vmatpush1.bf16.msra.mxu0 0
      %240 = vmatprep.subr.bf16.mxu0 0
      %241 = vmatpush1.bf16.msra.mxu0 0
      %242 = vmatprep.subr.bf16.mxu0 0
      %243 = vmatpush1.bf16.msra.mxu0 0
      %244 = vmatprep.subr.bf16.mxu0 0
      %245 = vmatpush1.bf16.msra.mxu0 0
      %246 = vmatprep.subr.bf16.mxu0 0
      %247 = vmatpush1.bf16.msra.mxu0 0
      %248 = vmatprep.subr.bf16.mxu0 0
      %249 = vmatpush1.bf16.msra.mxu0 %v229
      %250 = vmatprep.subr.bf16.mxu0 0
      %251 = vmatpush1.bf16.msra.mxu0 %v228
      %252 = vmatprep.subr.bf16.mxu0 0
      %253 = vmatpush2.bf16.msra.mxu0 0
      %254 = vmatprep.subr.bf16.mxu0 0
      %255 = vmatpush2.bf16.msra.mxu0 0
      %256 = vmatprep.subr.bf16.mxu0 0
      %257 = vmatpush2.bf16.msra.mxu0 0
      %258 = vmatprep.subr.bf16.mxu0 0
      %259 = vmatpush2.bf16.msra.mxu0 0
      %260 = vmatprep.subr.bf16.mxu0 0
      %261 = vmatpush2.bf16.msra.mxu0 0
      %262 = vmatprep.subr.bf16.mxu0 0
      %263 = vmatpush2.bf16.msra.mxu0 0
      %264 = vmatprep.subr.bf16.mxu0 0
      %265 = vmatpush2.bf16.msra.mxu0 0
      %266 = vmatprep.subr.bf16.mxu0 0
      %267 = vmatpush2.bf16.msra.mxu0 0
      %268 = vmatprep.mubr.bf16.mxu0 0
      %269 = vmatmul.mubr.bf16.gmra.mxu0 %v234
      %v270 = vpop.f32.mrf.mxu0
      %v271 = vadd.f32 0.0, %v270
      %v272 = vpop.f32.mrf.mxu0
      %v273 = vpop.f32.mrf.mxu0
      %v274 = vpop.f32.mrf.mxu0
      %275 = vdwg.mxu0
      %v276 = vld [vmem:[#allocation2] sm:$0xff]
      %vm277 = vcmask 89088
      %v278 = vsel %vm277, %v271, -inf
      %279 = vmax.xlane.f32.xlu0 %v278
      %v280 = vpop.xlane.xlu0 %279
      %v281 = vmax.f32 %v276, %v280
      %v282 = vsub.f32 %v276, %v281
      %v283 = vmul.f32 %v282, 1.442695
      %v284 = vpow.pop %v283
      %v285 = vld [vmem:[#allocation3] sm:$0xff]
      %v286 = vmul.f32 %v284, %v285
      %288 = vset.pattern.permute.xlu0 0
      %289 = vperm.xlu0 %288, %v281
      %v290 = vpop.permute.xlu0 %289
      %v292 = vsub.f32 %v271, %v290
      %v293 = vmul.f32 %v292, 1.442695
      %v294 = vpow.pop %v293
      %v295 = vsel %vm277, %v294, 0.0
      %296 = vadd.xlane.f32.xlu0 %v295
      %v297 = vpop.xlane.xlu0 %296
      %v298 = vadd.f32 %v286, %v297
      %vm299 = vcmask 7168
      %300 = vst.msk [vmem:[#allocation3] sm:$0xff] %vm299, %v298
      %301 = vst.msk [vmem:[#allocation2] sm:$0xff] %vm299, %v281
      // Predicated region
      $region33: #{transformer_forward.50} parent=27 // pred_check
        %p302 = pneg %p207
      $region34: #{transformer_forward.50} parent=27 // pred_check_branch
        %304 = sbr.rel (%p302) target = $region36
      $region35: #{transformer_forward.50} parent=27 // pred_region
        %v305 = vld [vmem:[#allocation2] sm:$0xff]
        %306 = vst.msk [vmem:[%s201] sm:$0xff] %vm299, %v305
        %v307 = vld [vmem:[#allocation3] sm:$0xff]
        %v308 = vrcp.pop %v307
        %v309 = vmul.f32 1.0, %v308
        %310 = vst.msk [vmem:[%s205] sm:$0xff] %vm299, %v309
      $region36: #{transformer_forward.50} parent=27 // pred_fallthru
        _
      %p311 = scmp.lt.s32.totalorder %s19, 1
      %s312 = scalar_select %p311, %s19, 1
      %s313 = smul.addr %s312, 8
      %s314 = scalar_lea.vmem %s2, %s313
      %p315 = scmp.lt.s32.totalorder %s19, 1
      %s316 = scalar_select %p315, %s19, 1
      %s317 = smul.addr %s316, 8
      %s318 = scalar_lea.vmem %s3, %s317
      // Predicated region
      $region37: #{transformer_forward.50} parent=27 // pred_check
        %p319 = pneg %p97
      $region38: #{transformer_forward.50} parent=27 // pred_check_branch
        %321 = sbr.rel (%p319) target = $region40
      $region39: #{transformer_forward.50} parent=27 // pred_region
        _
      $region40: #{transformer_forward.50} parent=27 // pred_fallthru
        _
      // Predicated region
      $region41: #{transformer_forward.50} parent=27 // pred_check
        %p322 = pneg %p123
      $region42: #{transformer_forward.50} parent=27 // pred_check_branch
        %324 = sbr.rel (%p322) target = $region44
      $region43: #{transformer_forward.50} parent=27 // pred_region
        _
      $region44: #{transformer_forward.50} parent=27 // pred_fallthru
        _
    $region28: #{transformer_forward.50} parent=5 // pred_fallthru
      _
    %p325 = scmp.le.s32.totalorder 2, %s10
    // Predicated region
    $region45: #{transformer_forward.50} parent=5 // pred_check
      %p326 = pneg %p325
    $region46: #{transformer_forward.50} parent=5 // pred_check_branch
      %328 = sbr.rel (%p326) target = $region48
    $region47: #{transformer_forward.50} parent=5 // pred_region
      %s329 = ssub.s32 %s10, 2
      // Predicated region
      $region49: #{transformer_forward.50} parent=47 // pred_check
        %p330 = pneg %p103
      $region50: #{transformer_forward.50} parent=47 // pred_check_branch
        %332 = sbr.rel (%p330) target = $region52
      $region51: #{transformer_forward.50} parent=47 // pred_region
        %p333 = scmp.lt.s32.totalorder %s21, 1
        %s334 = scalar_select %p333, %s21, 1
        %s335 = smul.addr %s334, 8
        %s336 = scalar_lea.vmem %s2, %s335
      $region52: #{transformer_forward.50} parent=47 // pred_fallthru
        _
      // Predicated region
      $region53: #{transformer_forward.50} parent=47 // pred_check
        %p337 = pneg %p129
      $region54: #{transformer_forward.50} parent=47 // pred_check_branch
        %339 = sbr.rel (%p337) target = $region56
      $region55: #{transformer_forward.50} parent=47 // pred_region
        %p340 = scmp.lt.s32.totalorder %s21, 1
        %s341 = scalar_select %p340, %s21, 1
        %s342 = smul.addr %s341, 8
        %s343 = scalar_lea.vmem %s3, %s342
      $region56: #{transformer_forward.50} parent=47 // pred_fallthru
        _
    $region48: #{transformer_forward.50} parent=5 // pred_fallthru
      _
  $region6: #{transformer_forward.50} parent=0 // loop_footer
    %s14 = sadd.s32 1, %s10
  $region7: #{transformer_forward.50} parent=0 // loop_footer_branch
    %9 = sbr.rel target = $region3
  $region8: #{transformer_forward.50} parent=0 // loop_exit
    _

// kernel: transformer_forward.51
$region0: #{transformer_forward.51}
  #allocation0 [shape = 'u32[]', space=smem, size = 0x4, offset = 0x4, fixed_abs, tag = 'smem constant byte address 0x4 - core index']
  #allocation1 [shape = 'u32[144,128]{1,0:T(1,128)}', space=vmem, size = 0x12000, scoped, tag = 'internal scratch']
  %s0 = inlined_call_operand.vmem [shape: f32[16,32], index: 0, kind: input, shape index: {}]
  %s1 = inlined_call_operand.vmem [shape: bf16[32,11], index: 1, kind: input, shape index: {}]
  %s2 = inlined_call_operand.vmem [shape: f32[16,1], index: 2, kind: input, shape index: {}]
  %s3 = inlined_call_operand.vmem [shape: f32[16,1], index: 3, kind: input, shape index: {}]
  %s4 = inlined_call_operand.hbm [shape: f32[16,11], index: 4, kind: output, shape index: {}]
  %s5 = sld [smem:[#allocation0]]
  $region49: #{transformer_forward.51} parent=0
    _
  %s7 = ssub.s32 1, %s5
  %s8 = scalar_select 0, %s7, %s5
  $region1: #{transformer_forward.51} parent=0
    #allocation2 [shape = 'u8[8192]{0}', space=vmem, size = 0x2000, scoped, tag = 'output window, operand 0']
    #allocation3 [shape = 's32[2]{0}', space=sflag, size = 0x8, scoped, tag = 'scoped memory for transformer_forward.51']
    %9 = vsyncpa [#allocation3], 0
    %s10 = scalar_lea.sflag [#allocation3], 1
    %11 = vsyncpa %s10, 0
    loop: start=0, step=1, limit=4
    $region2: #{transformer_forward.51} parent=1 // loop_pre_header
      _
    $region3: #{transformer_forward.51} parent=1 // loop_header
      %s13 = sphi 0, %s17
      %p14 = scmp.ge.s32.totalorder %s13, 4
      %s20 = sphi 0, %s32
      %s21 = sphi 0, %s28
      %s22 = sphi 0, %s20
      %s23 = sphi 0, %s21
      %s24 = sphi 0, %s22
      %s25 = sphi 0, %s23
      %s35 = sphi 0, %s37
      %s38 = sphi 0, %s35
      %s39 = sphi 0, %s38
      %s55 = sphi 0, %s39
      %s61 = sphi 0, %s63
      %s64 = sphi 0, %s61
      %s65 = sphi 0, %s64
      %s81 = sphi 0, %s65
      %s87 = sphi 0, %s89
      %s90 = sphi 0, %s87
      %s91 = sphi 0, %s90
      %s107 = sphi 0, %s91
      %s113 = sphi 0, %s115
      %s116 = sphi 0, %s113
      %s117 = sphi 0, %s116
      %s133 = sphi 0, %s117
      %s141 = sphi 0, %s143
      %s144 = sphi 0, %s141
      %s145 = sphi 0, %s144
      %s161 = sphi 0, %s145
    $region4: #{transformer_forward.51} parent=1 // loop_header_branch
      %16 = sbr.rel (%p14) target = $region8
    $region5: #{transformer_forward.51} parent=1 // loop_body
      %s18 = ssub.s32 %s13, 1
      %s19 = ssub.s32 %s13, 2
      %s26 = sadd.s32 1, %s21
      %p27 = scmp.ge.s32.totalorder %s26, 1
      %s28 = scalar_select %p27, 0, %s26
      %s29 = sadd.s32 1, %s20
      %s30 = scalar_select %p27, %s29, %s20
      %p31 = scmp.ge.s32.totalorder %s30, 2
      %s32 = scalar_select %p31, 0, %s30
      %s33 = ssub.s32 %s20, %s32
      %p34 = scmp.eq.s32.totalorder %s33, 0
      %s36 = sadd.s32 %s35, 1
      %s37 = scalar_select %p34, %s35, %s36
      %p40 = pneg %p34
      %p41 = scmp.eq.s32.totalorder %s13, 1
      %p42 = por %p40, %p41
      %p43 = scmp.ne.s32.totalorder %s35, %s38
      %p44 = scmp.eq.s32.totalorder %s13, 0
      %p45 = por %p43, %p44
      %p46 = scmp.ne.s32.totalorder %s35, %s38
      %p47 = scmp.eq.s32.totalorder %s18, 1
      %p48 = por %p46, %p47
      %p49 = scmp.ne.s32.totalorder %s38, %s39
      %p50 = scmp.eq.s32.totalorder %s18, 0
      %p51 = por %p49, %p50
      %p52 = scmp.ne.s32.totalorder %s38, %s39
      %p53 = scmp.eq.s32.totalorder %s19, 1
      %p54 = por %p52, %p53
      %p56 = scmp.ne.s32.totalorder %s39, %s55
      %p57 = scmp.eq.s32.totalorder %s19, 0
      %p58 = por %p56, %p57
      %s59 = ssub.s32 %s21, %s28
      %p60 = scmp.eq.s32.totalorder %s59, 0
      %s62 = sadd.s32 %s61, 1
      %s63 = scalar_select %p60, %s61, %s62
      %p66 = pneg %p60
      %p67 = scmp.eq.s32.totalorder %s13, 1
      %p68 = por %p66, %p67
      %p69 = scmp.ne.s32.totalorder %s61, %s64
      %p70 = scmp.eq.s32.totalorder %s13, 0
      %p71 = por %p69, %p70
      %p72 = scmp.ne.s32.totalorder %s61, %s64
      %p73 = scmp.eq.s32.totalorder %s18, 1
      %p74 = por %p72, %p73
      %p75 = scmp.ne.s32.totalorder %s64, %s65
      %p76 = scmp.eq.s32.totalorder %s18, 0
      %p77 = por %p75, %p76
      %p78 = scmp.ne.s32.totalorder %s64, %s65
      %p79 = scmp.eq.s32.totalorder %s19, 1
      %p80 = por %p78, %p79
      %p82 = scmp.ne.s32.totalorder %s65, %s81
      %p83 = scmp.eq.s32.totalorder %s19, 0
      %p84 = por %p82, %p83
      %s85 = ssub.s32 %s20, %s32
      %p86 = scmp.eq.s32.totalorder %s85, 0
      %s88 = sadd.s32 %s87, 1
      %s89 = scalar_select %p86, %s87, %s88
      %p92 = pneg %p86
      %p93 = scmp.eq.s32.totalorder %s13, 1
      %p94 = por %p92, %p93
      %p95 = scmp.ne.s32.totalorder %s87, %s90
      %p96 = scmp.eq.s32.totalorder %s13, 0
      %p97 = por %p95, %p96
      %p98 = scmp.ne.s32.totalorder %s87, %s90
      %p99 = scmp.eq.s32.totalorder %s18, 1
      %p100 = por %p98, %p99
      %p101 = scmp.ne.s32.totalorder %s90, %s91
      %p102 = scmp.eq.s32.totalorder %s18, 0
      %p103 = por %p101, %p102
      %p104 = scmp.ne.s32.totalorder %s90, %s91
      %p105 = scmp.eq.s32.totalorder %s19, 1
      %p106 = por %p104, %p105
      %p108 = scmp.ne.s32.totalorder %s91, %s107
      %p109 = scmp.eq.s32.totalorder %s19, 0
      %p110 = por %p108, %p109
      %s111 = ssub.s32 %s20, %s32
      %p112 = scmp.eq.s32.totalorder %s111, 0
      %s114 = sadd.s32 %s113, 1
      %s115 = scalar_select %p112, %s113, %s114
      %p118 = pneg %p112
      %p119 = scmp.eq.s32.totalorder %s13, 1
      %p120 = por %p118, %p119
      %p121 = scmp.ne.s32.totalorder %s113, %s116
      %p122 = scmp.eq.s32.totalorder %s13, 0
      %p123 = por %p121, %p122
      %p124 = scmp.ne.s32.totalorder %s113, %s116
      %p125 = scmp.eq.s32.totalorder %s18, 1
      %p126 = por %p124, %p125
      %p127 = scmp.ne.s32.totalorder %s116, %s117
      %p128 = scmp.eq.s32.totalorder %s18, 0
      %p129 = por %p127, %p128
      %p130 = scmp.ne.s32.totalorder %s116, %s117
      %p131 = scmp.eq.s32.totalorder %s19, 1
      %p132 = por %p130, %p131
      %p134 = scmp.ne.s32.totalorder %s117, %s133
      %p135 = scmp.eq.s32.totalorder %s19, 0
      %p136 = por %p134, %p135
      %s137 = ssub.s32 %s20, %s32
      %s138 = ssub.s32 %s21, %s28
      %s139 = sor.u32 %s137, %s138
      %p140 = scmp.eq.s32.totalorder %s139, 0
      %s142 = sadd.s32 %s141, 1
      %s143 = scalar_select %p140, %s141, %s142
      %p146 = pneg %p140
      %p147 = scmp.eq.s32.totalorder %s13, 1
      %p148 = por %p146, %p147
      %p149 = scmp.ne.s32.totalorder %s141, %s144
      %p150 = scmp.eq.s32.totalorder %s13, 0
      %p151 = por %p149, %p150
      %p152 = scmp.ne.s32.totalorder %s141, %s144
      %p153 = scmp.eq.s32.totalorder %s18, 1
      %p154 = por %p152, %p153
      %p155 = scmp.ne.s32.totalorder %s144, %s145
      %p156 = scmp.eq.s32.totalorder %s18, 0
      %p157 = por %p155, %p156
      %p158 = scmp.ne.s32.totalorder %s144, %s145
      %p159 = scmp.eq.s32.totalorder %s19, 1
      %p160 = por %p158, %p159
      %p162 = scmp.ne.s32.totalorder %s145, %s161
      %p163 = scmp.eq.s32.totalorder %s19, 0
      %p164 = por %p162, %p163
      %p165 = scmp.le.s32.totalorder 1, %s13
      %p166 = scmp.lt.s32.totalorder %s13, 3
      %p167 = pnand %p165, %p166
      %p168 = pneg %p167
      // Predicated region
      $region9: #{transformer_forward.51} parent=5 // pred_check
        _
      $region10: #{transformer_forward.51} parent=5 // pred_check_branch
        %170 = sbr.rel (%p167) target = $region12
      $region11: #{transformer_forward.51} parent=5 // pred_region
        %s171 = ssub.s32 %s13, 1
        // Predicated region
        $region13: #{transformer_forward.51} parent=11 // pred_check
          %p172 = pneg %p77
        $region14: #{transformer_forward.51} parent=11 // pred_check_branch
          %174 = sbr.rel (%p172) target = $region16
        $region15: #{transformer_forward.51} parent=11 // pred_region
          %p175 = scmp.lt.s32.totalorder %s23, 0
          %s176 = scalar_select %p175, %s23, 0
          %s177 = smul.addr %s176, 4
          %s178 = scalar_lea.vmem %s1, %s177
        $region16: #{transformer_forward.51} parent=11 // pred_fallthru
          _
      $region12: #{transformer_forward.51} parent=5 // pred_fallthru
        _
      %p179 = scmp.lt.s32.totalorder %s13, 2
      // Predicated region
      $region17: #{transformer_forward.51} parent=5 // pred_check
        %p180 = pneg %p179
      $region18: #{transformer_forward.51} parent=5 // pred_check_branch
        %182 = sbr.rel (%p180) target = $region20
      $region19: #{transformer_forward.51} parent=5 // pred_region
        // Predicated region
        $region21: #{transformer_forward.51} parent=19 // pred_check
          %p183 = pneg %p45
        $region22: #{transformer_forward.51} parent=19 // pred_check_branch
          %185 = sbr.rel (%p183) target = $region24
        $region23: #{transformer_forward.51} parent=19 // pred_region
          %p186 = scmp.lt.s32.totalorder %s20, 1
          %s187 = scalar_select %p186, %s20, 1
          %s188 = smul.addr %s187, 8
          %s189 = scalar_lea.vmem %s0, %s188
        $region24: #{transformer_forward.51} parent=19 // pred_fallthru
          _
        // Predicated region
        $region25: #{transformer_forward.51} parent=19 // pred_check
          %p190 = pneg %p97
        $region26: #{transformer_forward.51} parent=19 // pred_check_branch
          %192 = sbr.rel (%p190) target = $region28
        $region27: #{transformer_forward.51} parent=19 // pred_region
          %p193 = scmp.lt.s32.totalorder %s20, 1
          %s194 = scalar_select %p193, %s20, 1
          %s195 = smul.addr %s194, 8
          %s196 = scalar_lea.vmem %s2, %s195
        $region28: #{transformer_forward.51} parent=19 // pred_fallthru
          _
        // Predicated region
        $region29: #{transformer_forward.51} parent=19 // pred_check
          %p197 = pneg %p123
        $region30: #{transformer_forward.51} parent=19 // pred_check_branch
          %199 = sbr.rel (%p197) target = $region32
        $region31: #{transformer_forward.51} parent=19 // pred_region
          %p200 = scmp.lt.s32.totalorder %s20, 1
          %s201 = scalar_select %p200, %s20, 1
          %s202 = smul.addr %s201, 8
          %s203 = scalar_lea.vmem %s3, %s202
        $region32: #{transformer_forward.51} parent=19 // pred_fallthru
          _
      $region20: #{transformer_forward.51} parent=5 // pred_fallthru
        _
      %p204 = scmp.le.s32.totalorder 1, %s13
      %p205 = scmp.lt.s32.totalorder %s13, 3
      %p206 = pnand %p204, %p205
      %p207 = pneg %p206
      // Predicated region
      $region33: #{transformer_forward.51} parent=5 // pred_check
        _
      $region34: #{transformer_forward.51} parent=5 // pred_check_branch
        %209 = sbr.rel (%p206) target = $region36
      $region35: #{transformer_forward.51} parent=5 // pred_region
        %s210 = ssub.s32 %s13, 1
        %p211 = scmp.lt.s32.totalorder %s22, 1
        %s212 = scalar_select %p211, %s22, 1
        %s213 = smul.addr %s212, 8
        %s214 = scalar_lea.vmem %s0, %s213
        %p215 = pneg %p51
        %p216 = pneg %p48
        %p217 = scmp.lt.s32.totalorder %s23, 0
        %s218 = scalar_select %p217, %s23, 0
        %s219 = smul.addr %s218, 4
        %s220 = scalar_lea.vmem %s1, %s219
        %p221 = pneg %p77
        %p222 = pneg %p74
        %p223 = scmp.lt.s32.totalorder %s22, 1
        %s224 = scalar_select %p223, %s22, 1
        %s225 = smul.addr %s224, 8
        %s226 = scalar_lea.vmem %s2, %s225
        %p227 = pneg %p103
        %p228 = pneg %p100
        %p229 = scmp.lt.s32.totalorder %s22, 1
        %s230 = scalar_select %p229, %s22, 1
        %s231 = smul.addr %s230, 8
        %s232 = scalar_lea.vmem %s3, %s231
        %p233 = pneg %p129
        %p234 = pneg %p126
        %p235 = pneg %p157
        %p236 = pneg %p154
        %s237 = sand.u32 %s144, 1
        %s238 = scalar_lea.sflag [#allocation3], %s237
        %s239 = sand.u32 %s144, 1
        %s240 = smul.addr %s239, 8
        %s241 = scalar_lea.vmem [#allocation2], %s240
        %p242 = scmp.lt.s32.totalorder %s22, 1
        %s243 = scalar_select %p242, %s22, 1
        %s244 = smul.addr %s243, 8
        %s245 = scalar_lea.vmem %s0, %s244
        %p246 = scmp.lt.s32.totalorder %s23, 0
        %s247 = scalar_select %p246, %s23, 0
        %s248 = smul.addr %s247, 4
        %s249 = scalar_lea.vmem %s1, %s248
        %p250 = scmp.lt.s32.totalorder %s22, 1
        %s251 = scalar_select %p250, %s22, 1
        %s252 = smul.addr %s251, 8
        %s253 = scalar_lea.vmem %s2, %s252
        %p254 = scmp.lt.s32.totalorder %s22, 1
        %s255 = scalar_select %p254, %s22, 1
        %s256 = smul.addr %s255, 8
        %s257 = scalar_lea.vmem %s3, %s256
        %v259 = vld [vmem:[%s245] sm:$0xff]
        %v260 = vpack.c.bf16 %v259, %v259
        %v261 = vld [vmem:[%s249] sm:$0xf]
        %v262 = vld [vmem:[%s249 + $0x4] sm:$0xf]
        %v263 = vld [vmem:[%s249 + $0x8] sm:$0xf]
        %v264 = vld [vmem:[%s249 + $0xc] sm:$0xf]
        %v269 = vunpack.c.l.b16 %v261
        %v270 = vunpack.c.l.b16 %v262
        %v271 = vunpack.c.l.b16 %v263
        %v272 = vunpack.c.l.b16 %v264
        %v273 = vpack.c.b16 %v270, %v269
        %v274 = vpack.c.b16 %v272, %v271
        %vm277 = vcmask 261120
        %v279 = vsel %vm277, %v260, 0
        %281 = vmatprep.subr.bf16.mxu0 0
        %282 = vmatpush1.bf16.msra.mxu0 0
        %283 = vmatprep.subr.bf16.mxu0 0
        %284 = vmatpush1.bf16.msra.mxu0 0
        %285 = vmatprep.subr.bf16.mxu0 0
        %286 = vmatpush1.bf16.msra.mxu0 0
        %287 = vmatprep.subr.bf16.mxu0 0
        %288 = vmatpush1.bf16.msra.mxu0 0
        %289 = vmatprep.subr.bf16.mxu0 0
        %290 = vmatpush1.bf16.msra.mxu0 0
        %291 = vmatprep.subr.bf16.mxu0 0
        %292 = vmatpush1.bf16.msra.mxu0 0
        %293 = vmatprep.subr.bf16.mxu0 0
        %294 = vmatpush1.bf16.msra.mxu0 %v274
        %295 = vmatprep.subr.bf16.mxu0 0
        %296 = vmatpush1.bf16.msra.mxu0 %v273
        %297 = vmatprep.subr.bf16.mxu0 0
        %298 = vmatpush2.bf16.msra.mxu0 0
        %299 = vmatprep.subr.bf16.mxu0 0
        %300 = vmatpush2.bf16.msra.mxu0 0
        %301 = vmatprep.subr.bf16.mxu0 0
        %302 = vmatpush2.bf16.msra.mxu0 0
        %303 = vmatprep.subr.bf16.mxu0 0
        %304 = vmatpush2.bf16.msra.mxu0 0
        %305 = vmatprep.subr.bf16.mxu0 0
        %306 = vmatpush2.bf16.msra.mxu0 0
        %307 = vmatprep.subr.bf16.mxu0 0
        %308 = vmatpush2.bf16.msra.mxu0 0
        %309 = vmatprep.subr.bf16.mxu0 0
        %310 = vmatpush2.bf16.msra.mxu0 0
        %311 = vmatprep.subr.bf16.mxu0 0
        %312 = vmatpush2.bf16.msra.mxu0 0
        %313 = vmatprep.mubr.bf16.mxu0 0
        %314 = vmatmul.mubr.bf16.gmra.mxu0 %v279
        %v315 = vpop.f32.mrf.mxu0
        %v316 = vadd.f32 0.0, %v315
        %v317 = vpop.f32.mrf.mxu0
        %v318 = vpop.f32.mrf.mxu0
        %v319 = vpop.f32.mrf.mxu0
        %320 = vdwg.mxu0
        %v321 = vld [vmem:[%s253] sm:$0xff]
        %323 = vset.pattern.permute.xlu0 0
        %324 = vperm.xlu0 %323, %v321
        %v325 = vpop.permute.xlu0 %324
        %v327 = vsub.f32 %v316, %v325
        %v328 = vmul.f32 %v327, 1.442695
        %v329 = vpow.pop %v328
        %v330 = vld [vmem:[%s257] sm:$0xff]
        %332 = vset.pattern.permute.xlu0 0
        %333 = vperm.xlu0 %332, %v330
        %v334 = vpop.permute.xlu0 %333
        %v336 = vmul.f32 %v329, %v334
        %vm337 = vcmask 89088
        %338 = vst.msk [vmem:[%s241] sm:$0xff] %vm337, %v336
        %s339 = sand.u32 %s144, 1
        %s340 = scalar_lea.sflag [#allocation3], %s339
        %s341 = sand.u32 %s144, 1
        %s342 = smul.addr %s341, 8
        %s343 = scalar_lea.vmem [#allocation2], %s342
        // Predicated region
        $region37: #{transformer_forward.51} parent=35 // pred_check
          %p344 = pneg %p154
        $region38: #{transformer_forward.51} parent=35 // pred_check_branch
          %346 = sbr.rel (%p344) target = $region40
        $region39: #{transformer_forward.51} parent=35 // pred_region
          %s348 = ssub.s32 128, 128
          %349 = vsyncadd %s340, %s348
          %s350 = sadd.s32 %s23, %s22
          %s351 = smul.addr %s350, 128
          %s352 = scalar_lea.hbm %s4, %s351
          %s354 = sshll.u32 %s343, 4
          %s355 = int_to_ptr.vmem [resolvable:$true] %s354
          %357 = dma.vmem_to_hbm [thread:$0]  %s355, 128, %s352, %s340
        $region40: #{transformer_forward.51} parent=35 // pred_fallthru
          _
      $region36: #{transformer_forward.51} parent=5 // pred_fallthru
        _
      %p358 = scmp.le.s32.totalorder 2, %s13
      // Predicated region
      $region41: #{transformer_forward.51} parent=5 // pred_check
        %p359 = pneg %p358
      $region42: #{transformer_forward.51} parent=5 // pred_check_branch
        %361 = sbr.rel (%p359) target = $region44
      $region43: #{transformer_forward.51} parent=5 // pred_region
        %s362 = ssub.s32 %s13, 2
        // Predicated region
        $region45: #{transformer_forward.51} parent=43 // pred_check
          %p363 = pneg %p160
        $region46: #{transformer_forward.51} parent=43 // pred_check_branch
          %365 = sbr.rel (%p363) target = $region48
        $region47: #{transformer_forward.51} parent=43 // pred_region
          %s366 = sand.u32 %s145, 1
          %s367 = scalar_lea.sflag [#allocation3], %s366
          %s368 = sand.u32 %s145, 1
          %s369 = smul.addr %s368, 8
          %s370 = scalar_lea.vmem [#allocation2], %s369
          %371 = dma.done %s367, 128
        $region48: #{transformer_forward.51} parent=43 // pred_fallthru
          _
      $region44: #{transformer_forward.51} parent=5 // pred_fallthru
        _
    $region6: #{transformer_forward.51} parent=1 // loop_footer
      %s17 = sadd.s32 1, %s13
    $region7: #{transformer_forward.51} parent=1 // loop_footer_branch
      %12 = sbr.rel target = $region3
    $region8: #{transformer_forward.51} parent=1 // loop_exit
      _
    %372 = vsyncpa [#allocation3], 1
    %s373 = scalar_lea.sflag [#allocation3], 1
    %374 = vsyncpa %s373, 1

</llo_original>
